<compile_context>
chip_gen: v7x
topology: tpu7x:2x2x1
jax: 0.10.0
libtpu: 0.0.40
codegen_flags: <defaults>
</compile_context>

<pallas_src>
import jax
import jax.numpy as jnp
from jax.experimental import pallas as pl
from jax.experimental.pallas import tpu as pltpu


LN_EPS = 1e-5  # PyTorch nn.LayerNorm default


def _layernorm_silu(h_f32, gamma_bf16, beta_bf16):
    """LayerNorm (f32 statistics, PyTorch biased-variance semantics) + SiLU.

    Statistics (mean/var/rsqrt) are computed in f32; the post-normalization
    affine and the SiLU multiply run in bf16 so the result feeds the next MXU
    matmul directly. exp + approximate reciprocal issue on the EUP slot.
    """
    mean = jnp.mean(h_f32, axis=-1, keepdims=True)
    var = jnp.mean(jnp.square(h_f32 - mean), axis=-1, keepdims=True)
    hn = ((h_f32 - mean) * jax.lax.rsqrt(var + LN_EPS)).astype(jnp.bfloat16)
    hn = hn * gamma_bf16 + beta_bf16
    sig = pl.reciprocal(1.0 + jnp.exp(-hn.astype(jnp.float32)), approx=True)
    return hn * sig.astype(jnp.bfloat16)


def qnet_kernel(s_ref, a_ref,
                w1s_ref, w1a_ref, w2_ref, w3_ref,   # bf16 weights
                b_ref,    # (3, H) f32 : [b1, b2, b3]
                ln_ref,   # (6, H) bf16: [g1, be1, g2, be2, g3, be3]
                w4_ref,   # (1, H) bf16 head weight (row layout)
                b4_ref,   # (1,)  f32 head bias, SMEM scalar
                o_ref):   # (1, TILE_B) f32, lane-dense
    # ---- Block 1: split-input Linear (replaces concat) + LayerNorm + SiLU ----
    h = (jnp.dot(s_ref[...], w1s_ref[...], preferred_element_type=jnp.float32)
         + jnp.dot(a_ref[...], w1a_ref[...], preferred_element_type=jnp.float32)
         + b_ref[0:1, :])
    h = _layernorm_silu(h, ln_ref[0:1, :], ln_ref[1:2, :])

    # ---- Block 2 ----
    h = jnp.dot(h, w2_ref[...], preferred_element_type=jnp.float32) + b_ref[1:2, :]
    h = _layernorm_silu(h, ln_ref[2:3, :], ln_ref[3:4, :])

    # ---- Block 3 ----
    h = jnp.dot(h, w3_ref[...], preferred_element_type=jnp.float32) + b_ref[2:3, :]
    h = _layernorm_silu(h, ln_ref[4:5, :], ln_ref[5:6, :])

    # ---- Head: q = w4_row (1,H) . h (TILE_B,H)^T -> (1, TILE_B), lane-dense ----
    q = jax.lax.dot_general(
        w4_ref[...], h,
        dimension_numbers=(((1,), (1,)), ((), ())),
        preferred_element_type=jnp.float32)
    o_ref[...] = (q + b4_ref[0]).astype(o_ref.dtype)


def init_qnet_params(key, s_dim, a_dim, hidden):
    """PyTorch-style init (uniform +-1/sqrt(fan_in); LN gamma=1, beta=0), f32."""
    dims_in = [s_dim + a_dim, hidden, hidden, hidden]
    dims_out = [hidden, hidden, hidden, 1]
    params = {}
    for i, (din, dout) in enumerate(zip(dims_in, dims_out), start=1):
        key, kw, kb = jax.random.split(key, 3)
        bound = 1.0 / (din ** 0.5)
        params[f"w{i}"] = jax.random.uniform(
            kw, (din, dout), jnp.float32, minval=-bound, maxval=bound)
        params[f"b{i}"] = jax.random.uniform(
            kb, (1, dout), jnp.float32, minval=-bound, maxval=bound)
    for i in range(1, 4):
        params[f"g{i}"] = jnp.ones((1, hidden), jnp.float32)
        params[f"be{i}"] = jnp.zeros((1, hidden), jnp.float32)
    return params


def pack_qnet_params(params, s_dim):
    """Repack f32 params into the kernel's argument layout / dtypes."""
    w1 = params["w1"]
    w1s = w1[:s_dim].astype(jnp.bfloat16)           # (s_dim, H)
    w1a = w1[s_dim:].astype(jnp.bfloat16)           # (a_dim, H)
    w2 = params["w2"].astype(jnp.bfloat16)          # (H, H)
    w3 = params["w3"].astype(jnp.bfloat16)          # (H, H)
    b_slab = jnp.concatenate(
        [params["b1"], params["b2"], params["b3"]], axis=0)       # (3, H) f32
    ln_slab = jnp.concatenate(
        [params["g1"], params["be1"], params["g2"], params["be2"],
         params["g3"], params["be3"]], axis=0).astype(jnp.bfloat16)  # (6, H) bf16
    w4_row = params["w4"].T.astype(jnp.bfloat16)    # (1, H)
    b4 = params["b4"].reshape(-1)                   # (1,) f32 -> SMEM
    return w1s, w1a, w2, w3, b_slab, ln_slab, w4_row, b4


def qnet_forward(s, a, params, *, tile_b=256):
    B, s_dim = s.shape
    a_dim = a.shape[1]
    hidden = params["w2"].shape[0]

    n_tiles = pl.cdiv(B, tile_b)
    b_pad = n_tiles * tile_b
    if b_pad != B:
        s = jnp.pad(s, ((0, b_pad - B), (0, 0)))
        a = jnp.pad(a, ((0, b_pad - B), (0, 0)))
    s_bf = s.astype(jnp.bfloat16)
    a_bf = a.astype(jnp.bfloat16)

    w1s, w1a, w2, w3, b_slab, ln_slab, w4_row, b4 = pack_qnet_params(params, s_dim)

    const = lambda i: (0, 0)  # weights / params: same block every grid step
    in_specs = [
        pl.BlockSpec((tile_b, s_dim), lambda i: (i, 0)),   # s tile
        pl.BlockSpec((tile_b, a_dim), lambda i: (i, 0)),   # a tile
        pl.BlockSpec((s_dim, hidden), const),              # w1 (state part)
        pl.BlockSpec((a_dim, hidden), const),              # w1 (action part)
        pl.BlockSpec((hidden, hidden), const),             # w2
        pl.BlockSpec((hidden, hidden), const),             # w3
        pl.BlockSpec((3, hidden), const),                  # bias slab (f32)
        pl.BlockSpec((6, hidden), const),                  # LN gamma/beta slab (bf16)
        pl.BlockSpec((1, hidden), const),                  # w4 row (bf16)
        pl.BlockSpec(memory_space=pltpu.MemorySpace.SMEM), # b4 scalar
    ]
    out_specs = pl.BlockSpec((1, tile_b), lambda i: (0, i))  # lane-dense slab

    flops = 2 * b_pad * ((s_dim + a_dim) * hidden + 2 * hidden * hidden + hidden)
    transcendentals = 3 * b_pad * hidden  # one exp per element per block
    bytes_accessed = (
        b_pad * (s_dim + a_dim) * 2                              # bf16 inputs
        + ((s_dim + a_dim) * hidden + 2 * hidden * hidden + hidden) * 2  # bf16 weights
        + (3 * hidden) * 4 + (6 * hidden) * 2 + 4                # biases / LN / b4
        + b_pad * 4)                                             # f32 output

    out_row = pl.pallas_call(
        qnet_kernel,
        out_shape=jax.ShapeDtypeStruct((1, b_pad), jnp.float32),
        grid=(n_tiles,),
        in_specs=in_specs,
        out_specs=out_specs,
        compiler_params=pltpu.CompilerParams(
            dimension_semantics=("parallel",),
            vmem_limit_bytes=32 * 1024 * 1024),
        cost_estimate=pl.CostEstimate(
            flops=flops,
            transcendentals=transcendentals,
            bytes_accessed=bytes_accessed),
    )(s_bf, a_bf, w1s, w1a, w2, w3, b_slab, ln_slab, w4_row, b4)

    # Lane-major slab -> (B, 1), dropping any batch padding.
    return out_row[0, :B].reshape(B, 1)


def qnet_reference(s, a, params):
    """Exact f32 PyTorch-semantics forward."""
    h = jnp.concatenate([s, a], axis=-1)
    for i in range(1, 4):
        h = jnp.dot(h, params[f"w{i}"]) + params[f"b{i}"]
        mean = jnp.mean(h, axis=-1, keepdims=True)
        var = jnp.mean((h - mean) ** 2, axis=-1, keepdims=True)
        h = (h - mean) / jnp.sqrt(var + LN_EPS)
        h = h * params[f"g{i}"] + params[f"be{i}"]
        h = h * jax.nn.sigmoid(h)
    return jnp.dot(h, params["w4"]) + params["b4"]


def qnet_reference_bf16(s, a, params, s_dim):
    """Mirrors the kernel's rounding: bf16 matmul operands with f32 accumulation,
    f32 LN statistics, bf16 post-norm affine + SiLU multiply, exact sigmoid."""
    bf = jnp.bfloat16

    def ln_silu(h, g, be):
        mean = jnp.mean(h, axis=-1, keepdims=True)
        var = jnp.mean((h - mean) ** 2, axis=-1, keepdims=True)
        hn = ((h - mean) * jax.lax.rsqrt(var + LN_EPS)).astype(bf)
        hn = hn * g.astype(bf) + be.astype(bf)
        sig = jax.nn.sigmoid(hn.astype(jnp.float32))
        return hn * sig.astype(bf)

    w1 = params["w1"]
    h = (jnp.dot(s.astype(bf), w1[:s_dim].astype(bf),
                 preferred_element_type=jnp.float32)
         + jnp.dot(a.astype(bf), w1[s_dim:].astype(bf),
                   preferred_element_type=jnp.float32)
         + params["b1"])
    h = ln_silu(h, params["g1"], params["be1"])
    h = jnp.dot(h, params["w2"].astype(bf),
                preferred_element_type=jnp.float32) + params["b2"]
    h = ln_silu(h, params["g2"], params["be2"])
    h = jnp.dot(h, params["w3"].astype(bf),
                preferred_element_type=jnp.float32) + params["b3"]
    h = ln_silu(h, params["g3"], params["be3"])
    return jnp.dot(h, params["w4"].astype(bf),
                   preferred_element_type=jnp.float32) + params["b4"]


if __name__ == "__main__":
    # hidden=256 is the module default; B=512 with tile_b=256 -> 2 "parallel"
    # batch tiles (even count so v7x megacore can split them, full 256-row MXU
    # pushes on v6e/v7x).
    B, S_DIM, A_DIM, HIDDEN = 512, 8, 4, 256
    TILE_B = 256

    key = jax.random.PRNGKey(0)
    k_s, k_a, k_p = jax.random.split(key, 3)
    s = jax.random.normal(k_s, (B, S_DIM), jnp.float32)
    a = jax.random.normal(k_a, (B, A_DIM), jnp.float32)
    params = init_qnet_params(k_p, S_DIM, A_DIM, HIDDEN)

    out = qnet_forward(s, a, params, tile_b=TILE_B)
    out = jax.block_until_ready(out)
    assert out.shape == (B, 1), out.shape

    # Tight check vs a reference that mirrors the kernel's bf16 rounding
    # (remaining delta is the approx EUP reciprocal + accumulation order).
    ref_bf16 = qnet_reference_bf16(s, a, params, S_DIM)
    err_bf16 = float(jnp.max(jnp.abs(out - ref_bf16)))
    assert jnp.allclose(out, ref_bf16, atol=2e-2, rtol=2e-2), (
        f"bf16-emulating reference mismatch: max abs err {err_bf16}")

    # Loose check vs exact f32 PyTorch semantics.
    ref_f32 = qnet_reference(s, a, params)
    err_f32 = float(jnp.max(jnp.abs(out - ref_f32)))
    assert jnp.allclose(out, ref_f32, atol=8e-2, rtol=8e-2), (
        f"f32 reference mismatch: max abs err {err_f32}")

    print("KERNEL_OK")
</pallas_src>

<mosaic_0001>
module attributes {stable_mosaic.version = 11 : i64} {
  func.func @qnet_kernel(%arg0: i32, %arg1: memref<256x8xbf16, #tpu.memory_space<vmem>>, %arg2: memref<256x4xbf16, #tpu.memory_space<vmem>>, %arg3: memref<8x256xbf16, #tpu.memory_space<vmem>>, %arg4: memref<4x256xbf16, #tpu.memory_space<vmem>>, %arg5: memref<256x256xbf16, #tpu.memory_space<vmem>>, %arg6: memref<256x256xbf16, #tpu.memory_space<vmem>>, %arg7: memref<3x256xf32, #tpu.memory_space<vmem>>, %arg8: memref<6x256xbf16, #tpu.memory_space<vmem>>, %arg9: memref<1x256xbf16, #tpu.memory_space<vmem>>, %arg10: memref<1xf32, #tpu.memory_space<smem>>, %arg11: memref<1x256xf32, #tpu.memory_space<vmem>>) attributes {dimension_semantics = [#tpu.dimension_semantics<parallel>], iteration_bounds = array<i64: 2>, scalar_prefetch = 0 : i64, scratch_operands = 0 : i64, tpu.core_type = #tpu.core_type<tc>, window_params = [{transform_indices = @transform_0, window_bounds = array<i64: 256, 8>}, {transform_indices = @transform_1, window_bounds = array<i64: 256, 4>}, {pipeline_mode = #tpu.pipeline_mode<synchronous>, transform_indices = @transform_2, window_bounds = array<i64: 8, 256>}, {pipeline_mode = #tpu.pipeline_mode<synchronous>, transform_indices = @transform_3, window_bounds = array<i64: 4, 256>}, {pipeline_mode = #tpu.pipeline_mode<synchronous>, transform_indices = @transform_4, window_bounds = array<i64: 256, 256>}, {pipeline_mode = #tpu.pipeline_mode<synchronous>, transform_indices = @transform_5, window_bounds = array<i64: 256, 256>}, {pipeline_mode = #tpu.pipeline_mode<synchronous>, transform_indices = @transform_6, window_bounds = array<i64: 3, 256>}, {pipeline_mode = #tpu.pipeline_mode<synchronous>, transform_indices = @transform_7, window_bounds = array<i64: 6, 256>}, {pipeline_mode = #tpu.pipeline_mode<synchronous>, transform_indices = @transform_8, window_bounds = array<i64: 1, 256>}, {transform_indices = @transform_9, window_bounds = array<i64: 1>}, {transform_indices = @transform_10, window_bounds = array<i64: 1, 256>}]} {
    %c0 = arith.constant 0 : index
    %c0_0 = arith.constant 0 : index
    %0 = vector.load %arg1[%c0, %c0_0] : memref<256x8xbf16, #tpu.memory_space<vmem>>, vector<256x8xbf16>
    %c0_1 = arith.constant 0 : index
    %c0_2 = arith.constant 0 : index
    %1 = vector.load %arg3[%c0_1, %c0_2] : memref<8x256xbf16, #tpu.memory_space<vmem>>, vector<8x256xbf16>
    %cst = arith.constant dense<0.000000e+00> : vector<256x256xf32>
    %2 = tpu.matmul %0, %1, %cst {dimension_numbers = #tpu.dot_dimension_numbers<[1], [0], [0], [1], [0, 0, 1, 1], [], []>} : vector<256x8xbf16>, vector<8x256xbf16>, vector<256x256xf32> -> vector<256x256xf32>
    %c0_3 = arith.constant 0 : index
    %c0_4 = arith.constant 0 : index
    %3 = vector.load %arg2[%c0_3, %c0_4] : memref<256x4xbf16, #tpu.memory_space<vmem>>, vector<256x4xbf16>
    %c0_5 = arith.constant 0 : index
    %c0_6 = arith.constant 0 : index
    %4 = vector.load %arg4[%c0_5, %c0_6] : memref<4x256xbf16, #tpu.memory_space<vmem>>, vector<4x256xbf16>
    %cst_7 = arith.constant dense<0.000000e+00> : vector<256x256xf32>
    %5 = tpu.matmul %3, %4, %cst_7 {dimension_numbers = #tpu.dot_dimension_numbers<[1], [0], [0], [1], [0, 0, 1, 1], [], []>} : vector<256x4xbf16>, vector<4x256xbf16>, vector<256x256xf32> -> vector<256x256xf32>
    %6 = arith.addf %2, %5 : vector<256x256xf32>
    %c0_8 = arith.constant 0 : index
    %c0_9 = arith.constant 0 : index
    %7 = vector.load %arg7[%c0_8, %c0_9] : memref<3x256xf32, #tpu.memory_space<vmem>>, vector<1x256xf32>
    %8 = vector.broadcast %7 : vector<1x256xf32> to vector<256x256xf32>
    %9 = arith.addf %6, %8 : vector<256x256xf32>
    %c0_10 = arith.constant 0 : index
    %c0_11 = arith.constant 0 : index
    %10 = vector.load %arg8[%c0_10, %c0_11] : memref<6x256xbf16, #tpu.memory_space<vmem>>, vector<1x256xbf16>
    %c1 = arith.constant 1 : index
    %c0_12 = arith.constant 0 : index
    %11 = vector.load %arg8[%c1, %c0_12] : memref<6x256xbf16, #tpu.memory_space<vmem>>, vector<1x256xbf16>
    %cst_13 = arith.constant dense<0.000000e+00> : vector<256xf32>
    %12 = vector.multi_reduction <add>, %9, %cst_13 [1] : vector<256x256xf32> to vector<256xf32>
    %13 = vector.shape_cast %12 : vector<256xf32> to vector<256x1xf32>
    %cst_14 = arith.constant 2.560000e+02 : f32
    %14 = vector.broadcast %cst_14 : f32 to vector<256x1xf32>
    %15 = arith.divf %13, %14 : vector<256x1xf32>
    %16 = vector.broadcast %15 : vector<256x1xf32> to vector<256x256xf32>
    %17 = arith.subf %9, %16 : vector<256x256xf32>
    %18 = arith.mulf %17, %17 : vector<256x256xf32>
    %cst_15 = arith.constant dense<0.000000e+00> : vector<256xf32>
    %19 = vector.multi_reduction <add>, %18, %cst_15 [1] : vector<256x256xf32> to vector<256xf32>
    %20 = vector.shape_cast %19 : vector<256xf32> to vector<256x1xf32>
    %cst_16 = arith.constant 2.560000e+02 : f32
    %21 = vector.broadcast %cst_16 : f32 to vector<256x1xf32>
    %22 = arith.divf %20, %21 : vector<256x1xf32>
    %23 = vector.broadcast %15 : vector<256x1xf32> to vector<256x256xf32>
    %24 = arith.subf %9, %23 : vector<256x256xf32>
    %cst_17 = arith.constant 9.99999974E-6 : f32
    %25 = vector.broadcast %cst_17 : f32 to vector<256x1xf32>
    %26 = arith.addf %22, %25 : vector<256x1xf32>
    %27 = math.rsqrt %26 : vector<256x1xf32>
    %28 = vector.broadcast %27 : vector<256x1xf32> to vector<256x256xf32>
    %29 = arith.mulf %24, %28 : vector<256x256xf32>
    %30 = arith.truncf %29 : vector<256x256xf32> to vector<256x256xbf16>
    %31 = vector.broadcast %10 : vector<1x256xbf16> to vector<256x256xbf16>
    %32 = arith.mulf %30, %31 : vector<256x256xbf16>
    %33 = vector.broadcast %11 : vector<1x256xbf16> to vector<256x256xbf16>
    %34 = arith.addf %32, %33 : vector<256x256xbf16>
    %35 = arith.extf %34 : vector<256x256xbf16> to vector<256x256xf32>
    %cst_18 = arith.constant 0.000000e+00 : f32
    %36 = vector.broadcast %cst_18 : f32 to vector<256x256xf32>
    %37 = arith.subf %36, %35 : vector<256x256xf32>
    %38 = math.exp %37 : vector<256x256xf32>
    %cst_19 = arith.constant 1.000000e+00 : f32
    %39 = vector.broadcast %cst_19 : f32 to vector<256x256xf32>
    %40 = arith.addf %39, %38 : vector<256x256xf32>
    %41 = tpu.reciprocal %40 {approx = true} : vector<256x256xf32> -> vector<256x256xf32>
    %42 = arith.truncf %41 : vector<256x256xf32> to vector<256x256xbf16>
    %43 = arith.mulf %34, %42 : vector<256x256xbf16>
    %c0_20 = arith.constant 0 : index
    %c0_21 = arith.constant 0 : index
    %44 = vector.load %arg5[%c0_20, %c0_21] : memref<256x256xbf16, #tpu.memory_space<vmem>>, vector<256x256xbf16>
    %cst_22 = arith.constant dense<0.000000e+00> : vector<256x256xf32>
    %45 = tpu.matmul %43, %44, %cst_22 {dimension_numbers = #tpu.dot_dimension_numbers<[1], [0], [0], [1], [0, 0, 1, 1], [], []>} : vector<256x256xbf16>, vector<256x256xbf16>, vector<256x256xf32> -> vector<256x256xf32>
    %c1_23 = arith.constant 1 : index
    %c0_24 = arith.constant 0 : index
    %46 = vector.load %arg7[%c1_23, %c0_24] : memref<3x256xf32, #tpu.memory_space<vmem>>, vector<1x256xf32>
    %47 = vector.broadcast %46 : vector<1x256xf32> to vector<256x256xf32>
    %48 = arith.addf %45, %47 : vector<256x256xf32>
    %c2 = arith.constant 2 : index
    %c0_25 = arith.constant 0 : index
    %49 = vector.load %arg8[%c2, %c0_25] : memref<6x256xbf16, #tpu.memory_space<vmem>>, vector<1x256xbf16>
    %c3 = arith.constant 3 : index
    %c0_26 = arith.constant 0 : index
    %50 = vector.load %arg8[%c3, %c0_26] : memref<6x256xbf16, #tpu.memory_space<vmem>>, vector<1x256xbf16>
    %cst_27 = arith.constant dense<0.000000e+00> : vector<256xf32>
    %51 = vector.multi_reduction <add>, %48, %cst_27 [1] : vector<256x256xf32> to vector<256xf32>
    %52 = vector.shape_cast %51 : vector<256xf32> to vector<256x1xf32>
    %cst_28 = arith.constant 2.560000e+02 : f32
    %53 = vector.broadcast %cst_28 : f32 to vector<256x1xf32>
    %54 = arith.divf %52, %53 : vector<256x1xf32>
    %55 = vector.broadcast %54 : vector<256x1xf32> to vector<256x256xf32>
    %56 = arith.subf %48, %55 : vector<256x256xf32>
    %57 = arith.mulf %56, %56 : vector<256x256xf32>
    %cst_29 = arith.constant dense<0.000000e+00> : vector<256xf32>
    %58 = vector.multi_reduction <add>, %57, %cst_29 [1] : vector<256x256xf32> to vector<256xf32>
    %59 = vector.shape_cast %58 : vector<256xf32> to vector<256x1xf32>
    %cst_30 = arith.constant 2.560000e+02 : f32
    %60 = vector.broadcast %cst_30 : f32 to vector<256x1xf32>
    %61 = arith.divf %59, %60 : vector<256x1xf32>
    %62 = vector.broadcast %54 : vector<256x1xf32> to vector<256x256xf32>
    %63 = arith.subf %48, %62 : vector<256x256xf32>
    %cst_31 = arith.constant 9.99999974E-6 : f32
    %64 = vector.broadcast %cst_31 : f32 to vector<256x1xf32>
    %65 = arith.addf %61, %64 : vector<256x1xf32>
    %66 = math.rsqrt %65 : vector<256x1xf32>
    %67 = vector.broadcast %66 : vector<256x1xf32> to vector<256x256xf32>
    %68 = arith.mulf %63, %67 : vector<256x256xf32>
    %69 = arith.truncf %68 : vector<256x256xf32> to vector<256x256xbf16>
    %70 = vector.broadcast %49 : vector<1x256xbf16> to vector<256x256xbf16>
    %71 = arith.mulf %69, %70 : vector<256x256xbf16>
    %72 = vector.broadcast %50 : vector<1x256xbf16> to vector<256x256xbf16>
    %73 = arith.addf %71, %72 : vector<256x256xbf16>
    %74 = arith.extf %73 : vector<256x256xbf16> to vector<256x256xf32>
    %cst_32 = arith.constant 0.000000e+00 : f32
    %75 = vector.broadcast %cst_32 : f32 to vector<256x256xf32>
    %76 = arith.subf %75, %74 : vector<256x256xf32>
    %77 = math.exp %76 : vector<256x256xf32>
    %cst_33 = arith.constant 1.000000e+00 : f32
    %78 = vector.broadcast %cst_33 : f32 to vector<256x256xf32>
    %79 = arith.addf %78, %77 : vector<256x256xf32>
    %80 = tpu.reciprocal %79 {approx = true} : vector<256x256xf32> -> vector<256x256xf32>
    %81 = arith.truncf %80 : vector<256x256xf32> to vector<256x256xbf16>
    %82 = arith.mulf %73, %81 : vector<256x256xbf16>
    %c0_34 = arith.constant 0 : index
    %c0_35 = arith.constant 0 : index
    %83 = vector.load %arg6[%c0_34, %c0_35] : memref<256x256xbf16, #tpu.memory_space<vmem>>, vector<256x256xbf16>
    %cst_36 = arith.constant dense<0.000000e+00> : vector<256x256xf32>
    %84 = tpu.matmul %82, %83, %cst_36 {dimension_numbers = #tpu.dot_dimension_numbers<[1], [0], [0], [1], [0, 0, 1, 1], [], []>} : vector<256x256xbf16>, vector<256x256xbf16>, vector<256x256xf32> -> vector<256x256xf32>
    %c2_37 = arith.constant 2 : index
    %c0_38 = arith.constant 0 : index
    %85 = vector.load %arg7[%c2_37, %c0_38] : memref<3x256xf32, #tpu.memory_space<vmem>>, vector<1x256xf32>
    %86 = vector.broadcast %85 : vector<1x256xf32> to vector<256x256xf32>
    %87 = arith.addf %84, %86 : vector<256x256xf32>
    %c4 = arith.constant 4 : index
    %c0_39 = arith.constant 0 : index
    %88 = vector.load %arg8[%c4, %c0_39] : memref<6x256xbf16, #tpu.memory_space<vmem>>, vector<1x256xbf16>
    %c5 = arith.constant 5 : index
    %c0_40 = arith.constant 0 : index
    %89 = vector.load %arg8[%c5, %c0_40] : memref<6x256xbf16, #tpu.memory_space<vmem>>, vector<1x256xbf16>
    %cst_41 = arith.constant dense<0.000000e+00> : vector<256xf32>
    %90 = vector.multi_reduction <add>, %87, %cst_41 [1] : vector<256x256xf32> to vector<256xf32>
    %91 = vector.shape_cast %90 : vector<256xf32> to vector<256x1xf32>
    %cst_42 = arith.constant 2.560000e+02 : f32
    %92 = vector.broadcast %cst_42 : f32 to vector<256x1xf32>
    %93 = arith.divf %91, %92 : vector<256x1xf32>
    %94 = vector.broadcast %93 : vector<256x1xf32> to vector<256x256xf32>
    %95 = arith.subf %87, %94 : vector<256x256xf32>
    %96 = arith.mulf %95, %95 : vector<256x256xf32>
    %cst_43 = arith.constant dense<0.000000e+00> : vector<256xf32>
    %97 = vector.multi_reduction <add>, %96, %cst_43 [1] : vector<256x256xf32> to vector<256xf32>
    %98 = vector.shape_cast %97 : vector<256xf32> to vector<256x1xf32>
    %cst_44 = arith.constant 2.560000e+02 : f32
    %99 = vector.broadcast %cst_44 : f32 to vector<256x1xf32>
    %100 = arith.divf %98, %99 : vector<256x1xf32>
    %101 = vector.broadcast %93 : vector<256x1xf32> to vector<256x256xf32>
    %102 = arith.subf %87, %101 : vector<256x256xf32>
    %cst_45 = arith.constant 9.99999974E-6 : f32
    %103 = vector.broadcast %cst_45 : f32 to vector<256x1xf32>
    %104 = arith.addf %100, %103 : vector<256x1xf32>
    %105 = math.rsqrt %104 : vector<256x1xf32>
    %106 = vector.broadcast %105 : vector<256x1xf32> to vector<256x256xf32>
    %107 = arith.mulf %102, %106 : vector<256x256xf32>
    %108 = arith.truncf %107 : vector<256x256xf32> to vector<256x256xbf16>
    %109 = vector.broadcast %88 : vector<1x256xbf16> to vector<256x256xbf16>
    %110 = arith.mulf %108, %109 : vector<256x256xbf16>
    %111 = vector.broadcast %89 : vector<1x256xbf16> to vector<256x256xbf16>
    %112 = arith.addf %110, %111 : vector<256x256xbf16>
    %113 = arith.extf %112 : vector<256x256xbf16> to vector<256x256xf32>
    %cst_46 = arith.constant 0.000000e+00 : f32
    %114 = vector.broadcast %cst_46 : f32 to vector<256x256xf32>
    %115 = arith.subf %114, %113 : vector<256x256xf32>
    %116 = math.exp %115 : vector<256x256xf32>
    %cst_47 = arith.constant 1.000000e+00 : f32
    %117 = vector.broadcast %cst_47 : f32 to vector<256x256xf32>
    %118 = arith.addf %117, %116 : vector<256x256xf32>
    %119 = tpu.reciprocal %118 {approx = true} : vector<256x256xf32> -> vector<256x256xf32>
    %120 = arith.truncf %119 : vector<256x256xf32> to vector<256x256xbf16>
    %121 = arith.mulf %112, %120 : vector<256x256xbf16>
    %c0_48 = arith.constant 0 : index
    %c0_49 = arith.constant 0 : index
    %122 = vector.load %arg9[%c0_48, %c0_49] : memref<1x256xbf16, #tpu.memory_space<vmem>>, vector<1x256xbf16>
    %cst_50 = arith.constant dense<0.000000e+00> : vector<1x256xf32>
    %123 = tpu.matmul %122, %121, %cst_50 {dimension_numbers = #tpu.dot_dimension_numbers<[1], [1], [0], [0], [0, 0, 1, 0], [], []>} : vector<1x256xbf16>, vector<256x256xbf16>, vector<1x256xf32> -> vector<1x256xf32>
    %c0_51 = arith.constant 0 : index
    %124 = memref.load %arg10[%c0_51] : memref<1xf32, #tpu.memory_space<smem>>
    %125 = vector.broadcast %124 : f32 to vector<1x256xf32>
    %126 = arith.addf %123, %125 : vector<1x256xf32>
    %c0_52 = arith.constant 0 : index
    %c0_53 = arith.constant 0 : index
    %127 = vector.load %arg11[%c0_52, %c0_53] : memref<1x256xf32, #tpu.memory_space<vmem>>, vector<1x256xf32>
    tpu.vector_store %arg11[%c0_52, %c0_53], %126 {strides = array<i32>} : memref<1x256xf32, #tpu.memory_space<vmem>>, vector<1x256xf32>,
    return
  }
  func.func @transform_0(%arg0: i32) -> (i32, i32) {
    %c0_i32 = arith.constant 0 : i32
    %c0_i32_0 = arith.constant 0 : i32
    return %arg0, %c0_i32 : i32, i32
  }
  func.func @transform_1(%arg0: i32) -> (i32, i32) {
    %c0_i32 = arith.constant 0 : i32
    %c0_i32_0 = arith.constant 0 : i32
    return %arg0, %c0_i32 : i32, i32
  }
  func.func @transform_2(%arg0: i32) -> (i32, i32) {
    %c0_i32 = arith.constant 0 : i32
    %c0_i32_0 = arith.constant 0 : i32
    %c0_i32_1 = arith.constant 0 : i32
    return %c0_i32, %c0_i32_0 : i32, i32
  }
  func.func @transform_3(%arg0: i32) -> (i32, i32) {
    %c0_i32 = arith.constant 0 : i32
    %c0_i32_0 = arith.constant 0 : i32
    %c0_i32_1 = arith.constant 0 : i32
    return %c0_i32, %c0_i32_0 : i32, i32
  }
  func.func @transform_4(%arg0: i32) -> (i32, i32) {
    %c0_i32 = arith.constant 0 : i32
    %c0_i32_0 = arith.constant 0 : i32
    %c0_i32_1 = arith.constant 0 : i32
    return %c0_i32, %c0_i32_0 : i32, i32
  }
  func.func @transform_5(%arg0: i32) -> (i32, i32) {
    %c0_i32 = arith.constant 0 : i32
    %c0_i32_0 = arith.constant 0 : i32
    %c0_i32_1 = arith.constant 0 : i32
    return %c0_i32, %c0_i32_0 : i32, i32
  }
  func.func @transform_6(%arg0: i32) -> (i32, i32) {
    %c0_i32 = arith.constant 0 : i32
    %c0_i32_0 = arith.constant 0 : i32
    %c0_i32_1 = arith.constant 0 : i32
    return %c0_i32, %c0_i32_0 : i32, i32
  }
  func.func @transform_7(%arg0: i32) -> (i32, i32) {
    %c0_i32 = arith.constant 0 : i32
    %c0_i32_0 = arith.constant 0 : i32
    %c0_i32_1 = arith.constant 0 : i32
    return %c0_i32, %c0_i32_0 : i32, i32
  }
  func.func @transform_8(%arg0: i32) -> (i32, i32) {
    %c0_i32 = arith.constant 0 : i32
    %c0_i32_0 = arith.constant 0 : i32
    %c0_i32_1 = arith.constant 0 : i32
    return %c0_i32, %c0_i32_0 : i32, i32
  }
  func.func @transform_9(%arg0: i32) -> i32 {
    %c0_i32 = arith.constant 0 : i32
    %c0_i32_0 = arith.constant 0 : i32
    return %c0_i32 : i32
  }
  func.func @transform_10(%arg0: i32) -> (i32, i32) {
    %c0_i32 = arith.constant 0 : i32
    %c0_i32_0 = arith.constant 0 : i32
    return %c0_i32, %arg0 : i32, i32
  }
}

</mosaic_0001>

<llo_original>
// kernel: tpu_custom_call.1
$region0: #{tpu_custom_call.1}
  #allocation0 [shape = 'u32[]', space=smem, size = 0x4, offset = 0x4, fixed_abs, tag = 'smem constant byte address 0x4 - core index']
  #allocation1 [shape = 'u32[144,128]{1,0:T(1,128)}', space=vmem, size = 0x12000, scoped, tag = 'internal scratch']
  #allocation2 [shape = 'f32[1]{0:T(128)S(6)}', space=smem, size = 0x200, scoped, tag = 'scoped memory for tpu_custom_call.1']
  %s0 = inlined_call_operand.vmem [shape: bf16[512,8], index: 0, kind: input, shape index: {}]
  %s1 = inlined_call_operand.vmem [shape: bf16[512,4], index: 1, kind: input, shape index: {}]
  %s2 = inlined_call_operand.vmem [shape: bf16[8,256], index: 2, kind: input, shape index: {}]
  %s3 = inlined_call_operand.vmem [shape: bf16[4,256], index: 3, kind: input, shape index: {}]
  %s4 = inlined_call_operand.vmem [shape: bf16[256,256], index: 4, kind: input, shape index: {}]
  %s5 = inlined_call_operand.vmem [shape: bf16[256,256], index: 5, kind: input, shape index: {}]
  %s6 = inlined_call_operand.vmem [shape: f32[3,256], index: 6, kind: input, shape index: {}]
  %s7 = inlined_call_operand.vmem [shape: bf16[6,256], index: 7, kind: input, shape index: {}]
  %s8 = inlined_call_operand.vmem [shape: bf16[1,256], index: 8, kind: input, shape index: {}]
  %s9 = inlined_call_operand.<no memory space> [shape: f32[1], index: 9, kind: input, shape index: {}]
  %s10 = inlined_call_operand.hbm [shape: f32[1,512], index: 10, kind: output, shape index: {}]
  %s11 = sld [smem:[#allocation0]]
  $region73: #{tpu_custom_call.1} parent=0
    _
  %s13 = ssub.s32 1, %s11
  %s14 = scalar_select 0, %s13, %s11
  %15 = sst [smem:[#allocation2]] %s9
  $region1: #{tpu_custom_call.1} parent=0
    #allocation3 [shape = 'u8[2048]{0}', space=vmem, size = 0x800, scoped, tag = 'output window, operand 0']
    #allocation4 [shape = 's32[2]{0}', space=sflag, size = 0x8, scoped, tag = 'scoped memory for tpu_custom_call.1']
    %16 = vsyncpa [#allocation4], 0
    %s17 = scalar_lea.sflag [#allocation4], 1
    %18 = vsyncpa %s17, 0
    loop: start=0, step=1, limit=4
    $region2: #{tpu_custom_call.1} parent=1 // loop_pre_header
      _
    $region3: #{tpu_custom_call.1} parent=1 // loop_header
      %s20 = sphi 0, %s24
      %p21 = scmp.ge.s32.totalorder %s20, 4
      %s30 = sphi 0, %s32
      %s33 = sphi 0, %s30
      %s34 = sphi 0, %s33
      %s50 = sphi 0, %s34
      %s56 = sphi 0, %s58
      %s59 = sphi 0, %s56
      %s60 = sphi 0, %s59
      %s76 = sphi 0, %s60
      %s80 = sphi 0, %s80
      %s82 = sphi 0, %s80
      %s83 = sphi 0, %s82
      %s97 = sphi 0, %s83
      %s101 = sphi 0, %s101
      %s103 = sphi 0, %s101
      %s104 = sphi 0, %s103
      %s118 = sphi 0, %s104
      %s122 = sphi 0, %s122
      %s124 = sphi 0, %s122
      %s125 = sphi 0, %s124
      %s139 = sphi 0, %s125
      %s143 = sphi 0, %s143
      %s145 = sphi 0, %s143
      %s146 = sphi 0, %s145
      %s160 = sphi 0, %s146
      %s164 = sphi 0, %s164
      %s166 = sphi 0, %s164
      %s167 = sphi 0, %s166
      %s181 = sphi 0, %s167
      %s185 = sphi 0, %s185
      %s187 = sphi 0, %s185
      %s188 = sphi 0, %s187
      %s202 = sphi 0, %s188
      %s206 = sphi 0, %s206
      %s208 = sphi 0, %s206
      %s209 = sphi 0, %s208
      %s223 = sphi 0, %s209
      %s227 = sphi 0, %s227
      %s229 = sphi 0, %s227
      %s230 = sphi 0, %s229
      %s244 = sphi 0, %s230
      %s250 = sphi 0, %s252
      %s253 = sphi 0, %s250
      %s254 = sphi 0, %s253
      %s270 = sphi 0, %s254
    $region4: #{tpu_custom_call.1} parent=1 // loop_header_branch
      %23 = sbr.rel (%p21) target = $region8
    $region5: #{tpu_custom_call.1} parent=1 // loop_body
      %s25 = ssub.s32 %s20, 1
      %s26 = ssub.s32 %s20, 2
      %s27 = sadd.s32 %s20, 1
      %s28 = ssub.s32 %s20, %s27
      %p29 = scmp.eq.s32.totalorder %s28, 0
      %s31 = sadd.s32 %s30, 1
      %s32 = scalar_select %p29, %s30, %s31
      %p35 = pneg %p29
      %p36 = scmp.eq.s32.totalorder %s20, 1
      %p37 = por %p35, %p36
      %p38 = scmp.ne.s32.totalorder %s30, %s33
      %p39 = scmp.eq.s32.totalorder %s20, 0
      %p40 = por %p38, %p39
      %p41 = scmp.ne.s32.totalorder %s30, %s33
      %p42 = scmp.eq.s32.totalorder %s25, 1
      %p43 = por %p41, %p42
      %p44 = scmp.ne.s32.totalorder %s33, %s34
      %p45 = scmp.eq.s32.totalorder %s25, 0
      %p46 = por %p44, %p45
      %p47 = scmp.ne.s32.totalorder %s33, %s34
      %p48 = scmp.eq.s32.totalorder %s26, 1
      %p49 = por %p47, %p48
      %p51 = scmp.ne.s32.totalorder %s34, %s50
      %p52 = scmp.eq.s32.totalorder %s26, 0
      %p53 = por %p51, %p52
      %s54 = ssub.s32 %s20, %s27
      %p55 = scmp.eq.s32.totalorder %s54, 0
      %s57 = sadd.s32 %s56, 1
      %s58 = scalar_select %p55, %s56, %s57
      %p61 = pneg %p55
      %p62 = scmp.eq.s32.totalorder %s20, 1
      %p63 = por %p61, %p62
      %p64 = scmp.ne.s32.totalorder %s56, %s59
      %p65 = scmp.eq.s32.totalorder %s20, 0
      %p66 = por %p64, %p65
      %p67 = scmp.ne.s32.totalorder %s56, %s59
      %p68 = scmp.eq.s32.totalorder %s25, 1
      %p69 = por %p67, %p68
      %p70 = scmp.ne.s32.totalorder %s59, %s60
      %p71 = scmp.eq.s32.totalorder %s25, 0
      %p72 = por %p70, %p71
      %p73 = scmp.ne.s32.totalorder %s59, %s60
      %p74 = scmp.eq.s32.totalorder %s26, 1
      %p75 = por %p73, %p74
      %p77 = scmp.ne.s32.totalorder %s60, %s76
      %p78 = scmp.eq.s32.totalorder %s26, 0
      %p79 = por %p77, %p78
      %s81 = sadd.s32 %s80, 1
      %p84 = scmp.eq.s32.totalorder %s20, 1
      %p85 = scmp.ne.s32.totalorder %s80, %s82
      %p86 = scmp.eq.s32.totalorder %s20, 0
      %p87 = por %p85, %p86
      %p88 = scmp.ne.s32.totalorder %s80, %s82
      %p89 = scmp.eq.s32.totalorder %s25, 1
      %p90 = por %p88, %p89
      %p91 = scmp.ne.s32.totalorder %s82, %s83
      %p92 = scmp.eq.s32.totalorder %s25, 0
      %p93 = por %p91, %p92
      %p94 = scmp.ne.s32.totalorder %s82, %s83
      %p95 = scmp.eq.s32.totalorder %s26, 1
      %p96 = por %p94, %p95
      %p98 = scmp.ne.s32.totalorder %s83, %s97
      %p99 = scmp.eq.s32.totalorder %s26, 0
      %p100 = por %p98, %p99
      %s102 = sadd.s32 %s101, 1
      %p105 = scmp.eq.s32.totalorder %s20, 1
      %p106 = scmp.ne.s32.totalorder %s101, %s103
      %p107 = scmp.eq.s32.totalorder %s20, 0
      %p108 = por %p106, %p107
      %p109 = scmp.ne.s32.totalorder %s101, %s103
      %p110 = scmp.eq.s32.totalorder %s25, 1
      %p111 = por %p109, %p110
      %p112 = scmp.ne.s32.totalorder %s103, %s104
      %p113 = scmp.eq.s32.totalorder %s25, 0
      %p114 = por %p112, %p113
      %p115 = scmp.ne.s32.totalorder %s103, %s104
      %p116 = scmp.eq.s32.totalorder %s26, 1
      %p117 = por %p115, %p116
      %p119 = scmp.ne.s32.totalorder %s104, %s118
      %p120 = scmp.eq.s32.totalorder %s26, 0
      %p121 = por %p119, %p120
      %s123 = sadd.s32 %s122, 1
      %p126 = scmp.eq.s32.totalorder %s20, 1
      %p127 = scmp.ne.s32.totalorder %s122, %s124
      %p128 = scmp.eq.s32.totalorder %s20, 0
      %p129 = por %p127, %p128
      %p130 = scmp.ne.s32.totalorder %s122, %s124
      %p131 = scmp.eq.s32.totalorder %s25, 1
      %p132 = por %p130, %p131
      %p133 = scmp.ne.s32.totalorder %s124, %s125
      %p134 = scmp.eq.s32.totalorder %s25, 0
      %p135 = por %p133, %p134
      %p136 = scmp.ne.s32.totalorder %s124, %s125
      %p137 = scmp.eq.s32.totalorder %s26, 1
      %p138 = por %p136, %p137
      %p140 = scmp.ne.s32.totalorder %s125, %s139
      %p141 = scmp.eq.s32.totalorder %s26, 0
      %p142 = por %p140, %p141
      %s144 = sadd.s32 %s143, 1
      %p147 = scmp.eq.s32.totalorder %s20, 1
      %p148 = scmp.ne.s32.totalorder %s143, %s145
      %p149 = scmp.eq.s32.totalorder %s20, 0
      %p150 = por %p148, %p149
      %p151 = scmp.ne.s32.totalorder %s143, %s145
      %p152 = scmp.eq.s32.totalorder %s25, 1
      %p153 = por %p151, %p152
      %p154 = scmp.ne.s32.totalorder %s145, %s146
      %p155 = scmp.eq.s32.totalorder %s25, 0
      %p156 = por %p154, %p155
      %p157 = scmp.ne.s32.totalorder %s145, %s146
      %p158 = scmp.eq.s32.totalorder %s26, 1
      %p159 = por %p157, %p158
      %p161 = scmp.ne.s32.totalorder %s146, %s160
      %p162 = scmp.eq.s32.totalorder %s26, 0
      %p163 = por %p161, %p162
      %s165 = sadd.s32 %s164, 1
      %p168 = scmp.eq.s32.totalorder %s20, 1
      %p169 = scmp.ne.s32.totalorder %s164, %s166
      %p170 = scmp.eq.s32.totalorder %s20, 0
      %p171 = por %p169, %p170
      %p172 = scmp.ne.s32.totalorder %s164, %s166
      %p173 = scmp.eq.s32.totalorder %s25, 1
      %p174 = por %p172, %p173
      %p175 = scmp.ne.s32.totalorder %s166, %s167
      %p176 = scmp.eq.s32.totalorder %s25, 0
      %p177 = por %p175, %p176
      %p178 = scmp.ne.s32.totalorder %s166, %s167
      %p179 = scmp.eq.s32.totalorder %s26, 1
      %p180 = por %p178, %p179
      %p182 = scmp.ne.s32.totalorder %s167, %s181
      %p183 = scmp.eq.s32.totalorder %s26, 0
      %p184 = por %p182, %p183
      %s186 = sadd.s32 %s185, 1
      %p189 = scmp.eq.s32.totalorder %s20, 1
      %p190 = scmp.ne.s32.totalorder %s185, %s187
      %p191 = scmp.eq.s32.totalorder %s20, 0
      %p192 = por %p190, %p191
      %p193 = scmp.ne.s32.totalorder %s185, %s187
      %p194 = scmp.eq.s32.totalorder %s25, 1
      %p195 = por %p193, %p194
      %p196 = scmp.ne.s32.totalorder %s187, %s188
      %p197 = scmp.eq.s32.totalorder %s25, 0
      %p198 = por %p196, %p197
      %p199 = scmp.ne.s32.totalorder %s187, %s188
      %p200 = scmp.eq.s32.totalorder %s26, 1
      %p201 = por %p199, %p200
      %p203 = scmp.ne.s32.totalorder %s188, %s202
      %p204 = scmp.eq.s32.totalorder %s26, 0
      %p205 = por %p203, %p204
      %s207 = sadd.s32 %s206, 1
      %p210 = scmp.eq.s32.totalorder %s20, 1
      %p211 = scmp.ne.s32.totalorder %s206, %s208
      %p212 = scmp.eq.s32.totalorder %s20, 0
      %p213 = por %p211, %p212
      %p214 = scmp.ne.s32.totalorder %s206, %s208
      %p215 = scmp.eq.s32.totalorder %s25, 1
      %p216 = por %p214, %p215
      %p217 = scmp.ne.s32.totalorder %s208, %s209
      %p218 = scmp.eq.s32.totalorder %s25, 0
      %p219 = por %p217, %p218
      %p220 = scmp.ne.s32.totalorder %s208, %s209
      %p221 = scmp.eq.s32.totalorder %s26, 1
      %p222 = por %p220, %p221
      %p224 = scmp.ne.s32.totalorder %s209, %s223
      %p225 = scmp.eq.s32.totalorder %s26, 0
      %p226 = por %p224, %p225
      %s228 = sadd.s32 %s227, 1
      %p231 = scmp.eq.s32.totalorder %s20, 1
      %p232 = scmp.ne.s32.totalorder %s227, %s229
      %p233 = scmp.eq.s32.totalorder %s20, 0
      %p234 = por %p232, %p233
      %p235 = scmp.ne.s32.totalorder %s227, %s229
      %p236 = scmp.eq.s32.totalorder %s25, 1
      %p237 = por %p235, %p236
      %p238 = scmp.ne.s32.totalorder %s229, %s230
      %p239 = scmp.eq.s32.totalorder %s25, 0
      %p240 = por %p238, %p239
      %p241 = scmp.ne.s32.totalorder %s229, %s230
      %p242 = scmp.eq.s32.totalorder %s26, 1
      %p243 = por %p241, %p242
      %p245 = scmp.ne.s32.totalorder %s230, %s244
      %p246 = scmp.eq.s32.totalorder %s26, 0
      %p247 = por %p245, %p246
      %s248 = ssub.s32 %s20, %s27
      %p249 = scmp.eq.s32.totalorder %s248, 0
      %s251 = sadd.s32 %s250, 1
      %s252 = scalar_select %p249, %s250, %s251
      %p255 = pneg %p249
      %p256 = scmp.eq.s32.totalorder %s20, 1
      %p257 = por %p255, %p256
      %p258 = scmp.ne.s32.totalorder %s250, %s253
      %p259 = scmp.eq.s32.totalorder %s20, 0
      %p260 = por %p258, %p259
      %p261 = scmp.ne.s32.totalorder %s250, %s253
      %p262 = scmp.eq.s32.totalorder %s25, 1
      %p263 = por %p261, %p262
      %p264 = scmp.ne.s32.totalorder %s253, %s254
      %p265 = scmp.eq.s32.totalorder %s25, 0
      %p266 = por %p264, %p265
      %p267 = scmp.ne.s32.totalorder %s253, %s254
      %p268 = scmp.eq.s32.totalorder %s26, 1
      %p269 = por %p267, %p268
      %p271 = scmp.ne.s32.totalorder %s254, %s270
      %p272 = scmp.eq.s32.totalorder %s26, 0
      %p273 = por %p271, %p272
      %p274 = scmp.le.s32.totalorder 1, %s20
      %p275 = scmp.lt.s32.totalorder %s20, 3
      %p276 = pnand %p274, %p275
      %p277 = pneg %p276
      // Predicated region
      $region9: #{tpu_custom_call.1} parent=5 // pred_check
        _
      $region10: #{tpu_custom_call.1} parent=5 // pred_check_branch
        %279 = sbr.rel (%p276) target = $region12
      $region11: #{tpu_custom_call.1} parent=5 // pred_region
        %s280 = ssub.s32 %s20, 1
        // Predicated region
        $region13: #{tpu_custom_call.1} parent=11 // pred_check
          %p281 = pneg %p93
        $region14: #{tpu_custom_call.1} parent=11 // pred_check_branch
          %283 = sbr.rel (%p281) target = $region16
        $region15: #{tpu_custom_call.1} parent=11 // pred_region
          _
        $region16: #{tpu_custom_call.1} parent=11 // pred_fallthru
          _
        // Predicated region
        $region17: #{tpu_custom_call.1} parent=11 // pred_check
          %p284 = pneg %p114
        $region18: #{tpu_custom_call.1} parent=11 // pred_check_branch
          %286 = sbr.rel (%p284) target = $region20
        $region19: #{tpu_custom_call.1} parent=11 // pred_region
          _
        $region20: #{tpu_custom_call.1} parent=11 // pred_fallthru
          _
        // Predicated region
        $region21: #{tpu_custom_call.1} parent=11 // pred_check
          %p287 = pneg %p135
        $region22: #{tpu_custom_call.1} parent=11 // pred_check_branch
          %289 = sbr.rel (%p287) target = $region24
        $region23: #{tpu_custom_call.1} parent=11 // pred_region
          _
        $region24: #{tpu_custom_call.1} parent=11 // pred_fallthru
          _
        // Predicated region
        $region25: #{tpu_custom_call.1} parent=11 // pred_check
          %p290 = pneg %p156
        $region26: #{tpu_custom_call.1} parent=11 // pred_check_branch
          %292 = sbr.rel (%p290) target = $region28
        $region27: #{tpu_custom_call.1} parent=11 // pred_region
          _
        $region28: #{tpu_custom_call.1} parent=11 // pred_fallthru
          _
        // Predicated region
        $region29: #{tpu_custom_call.1} parent=11 // pred_check
          %p293 = pneg %p177
        $region30: #{tpu_custom_call.1} parent=11 // pred_check_branch
          %295 = sbr.rel (%p293) target = $region32
        $region31: #{tpu_custom_call.1} parent=11 // pred_region
          _
        $region32: #{tpu_custom_call.1} parent=11 // pred_fallthru
          _
        // Predicated region
        $region33: #{tpu_custom_call.1} parent=11 // pred_check
          %p296 = pneg %p198
        $region34: #{tpu_custom_call.1} parent=11 // pred_check_branch
          %298 = sbr.rel (%p296) target = $region36
        $region35: #{tpu_custom_call.1} parent=11 // pred_region
          _
        $region36: #{tpu_custom_call.1} parent=11 // pred_fallthru
          _
        // Predicated region
        $region37: #{tpu_custom_call.1} parent=11 // pred_check
          %p299 = pneg %p219
        $region38: #{tpu_custom_call.1} parent=11 // pred_check_branch
          %301 = sbr.rel (%p299) target = $region40
        $region39: #{tpu_custom_call.1} parent=11 // pred_region
          _
        $region40: #{tpu_custom_call.1} parent=11 // pred_fallthru
          _
        // Predicated region
        $region41: #{tpu_custom_call.1} parent=11 // pred_check
          %p302 = pneg %p240
        $region42: #{tpu_custom_call.1} parent=11 // pred_check_branch
          %304 = sbr.rel (%p302) target = $region44
        $region43: #{tpu_custom_call.1} parent=11 // pred_region
          _
        $region44: #{tpu_custom_call.1} parent=11 // pred_fallthru
          _
      $region12: #{tpu_custom_call.1} parent=5 // pred_fallthru
        _
      %p305 = scmp.lt.s32.totalorder %s20, 2
      // Predicated region
      $region45: #{tpu_custom_call.1} parent=5 // pred_check
        %p306 = pneg %p305
      $region46: #{tpu_custom_call.1} parent=5 // pred_check_branch
        %308 = sbr.rel (%p306) target = $region48
      $region47: #{tpu_custom_call.1} parent=5 // pred_region
        // Predicated region
        $region49: #{tpu_custom_call.1} parent=47 // pred_check
          %p309 = pneg %p40
        $region50: #{tpu_custom_call.1} parent=47 // pred_check_branch
          %311 = sbr.rel (%p309) target = $region52
        $region51: #{tpu_custom_call.1} parent=47 // pred_region
          %s312 = smul.u32 32, %s20
          %p313 = scmp.lt.s32.totalorder %s312, 63
          %s314 = scalar_select %p313, %s312, 63
          %s315 = smul.addr %s314, 4
          %s316 = scalar_lea.vmem %s0, %s315
          %s317 = smul.u32 32, %s20
        $region52: #{tpu_custom_call.1} parent=47 // pred_fallthru
          _
        // Predicated region
        $region53: #{tpu_custom_call.1} parent=47 // pred_check
          %p318 = pneg %p66
        $region54: #{tpu_custom_call.1} parent=47 // pred_check_branch
          %320 = sbr.rel (%p318) target = $region56
        $region55: #{tpu_custom_call.1} parent=47 // pred_region
          %s321 = smul.u32 32, %s20
          %p322 = scmp.lt.s32.totalorder %s321, 63
          %s323 = scalar_select %p322, %s321, 63
          %s324 = smul.addr %s323, 4
          %s325 = scalar_lea.vmem %s1, %s324
          %s326 = smul.u32 32, %s20
        $region56: #{tpu_custom_call.1} parent=47 // pred_fallthru
          _
      $region48: #{tpu_custom_call.1} parent=5 // pred_fallthru
        _
      %p327 = scmp.le.s32.totalorder 1, %s20
      %p328 = scmp.lt.s32.totalorder %s20, 3
      %p329 = pnand %p327, %p328
      %p330 = pneg %p329
      // Predicated region
      $region57: #{tpu_custom_call.1} parent=5 // pred_check
        _
      $region58: #{tpu_custom_call.1} parent=5 // pred_check_branch
        %332 = sbr.rel (%p329) target = $region60
      $region59: #{tpu_custom_call.1} parent=5 // pred_region
        %s333 = ssub.s32 %s20, 1
        %s334 = smul.u32 32, %s25
        %p335 = scmp.lt.s32.totalorder %s334, 63
        %s336 = scalar_select %p335, %s334, 63
        %s337 = smul.addr %s336, 4
        %s338 = scalar_lea.vmem %s0, %s337
        %p339 = pneg %p46
        %p340 = pneg %p43
        %s341 = smul.u32 32, %s25
        %p342 = scmp.lt.s32.totalorder %s341, 63
        %s343 = scalar_select %p342, %s341, 63
        %s344 = smul.addr %s343, 4
        %s345 = scalar_lea.vmem %s1, %s344
        %p346 = pneg %p72
        %p347 = pneg %p69
        %p348 = pneg %p93
        %p349 = pneg %p90
        %p350 = pneg %p114
        %p351 = pneg %p111
        %p352 = pneg %p135
        %p353 = pneg %p132
        %p354 = pneg %p156
        %p355 = pneg %p153
        %p356 = pneg %p177
        %p357 = pneg %p174
        %p358 = pneg %p198
        %p359 = pneg %p195
        %p360 = pneg %p219
        %p361 = pneg %p216
        %p362 = pneg %p240
        %p363 = pneg %p237
        %p364 = pneg %p266
        %p365 = pneg %p263
        %s366 = sand.u32 %s253, 1
        %s367 = scalar_lea.sflag [#allocation4], %s366
        %s368 = sand.u32 %s253, 1
        %s369 = smul.addr %s368, 2
        %s370 = scalar_lea.vmem [#allocation3], %s369
        %s371 = smul.u32 32, %s25
        %p372 = scmp.lt.s32.totalorder %s371, 63
        %s373 = scalar_select %p372, %s371, 63
        %s374 = smul.addr %s373, 4
        %s375 = scalar_lea.vmem %s0, %s374
        %s376 = smul.u32 32, %s25
        %s377 = smul.u32 32, %s25
        %p378 = scmp.lt.s32.totalorder %s377, 63
        %s379 = scalar_select %p378, %s377, 63
        %s380 = smul.addr %s379, 4
        %s381 = scalar_lea.vmem %s1, %s380
        %s382 = smul.u32 32, %s25
        %s383 = smul.u32 2, %s25
        %v385 = vld [vmem:[%s375] sm:$0xf]
        %v386 = vld [vmem:[%s375 + $0x4] sm:$0xf]
        %v387 = vld [vmem:[%s375 + $0x8] sm:$0xf]
        %v388 = vld [vmem:[%s375 + $0xc] sm:$0xf]
        %v389 = vld [vmem:[%s375 + $0x10] sm:$0xf]
        %v390 = vld [vmem:[%s375 + $0x14] sm:$0xf]
        %v391 = vld [vmem:[%s375 + $0x18] sm:$0xf]
        %v392 = vld [vmem:[%s375 + $0x1c] sm:$0xf]
        %v393 = vld [vmem:[%s375 + $0x20] sm:$0xf]
        %v394 = vld [vmem:[%s375 + $0x24] sm:$0xf]
        %v395 = vld [vmem:[%s375 + $0x28] sm:$0xf]
        %v396 = vld [vmem:[%s375 + $0x2c] sm:$0xf]
        %v397 = vld [vmem:[%s375 + $0x30] sm:$0xf]
        %v398 = vld [vmem:[%s375 + $0x34] sm:$0xf]
        %v399 = vld [vmem:[%s375 + $0x38] sm:$0xf]
        %v400 = vld [vmem:[%s375 + $0x3c] sm:$0xf]
        %v401 = vld [vmem:[%s375 + $0x40] sm:$0xf]
        %v402 = vld [vmem:[%s375 + $0x44] sm:$0xf]
        %v403 = vld [vmem:[%s375 + $0x48] sm:$0xf]
        %v404 = vld [vmem:[%s375 + $0x4c] sm:$0xf]
        %v405 = vld [vmem:[%s375 + $0x50] sm:$0xf]
        %v406 = vld [vmem:[%s375 + $0x54] sm:$0xf]
        %v407 = vld [vmem:[%s375 + $0x58] sm:$0xf]
        %v408 = vld [vmem:[%s375 + $0x5c] sm:$0xf]
        %v409 = vld [vmem:[%s375 + $0x60] sm:$0xf]
        %v410 = vld [vmem:[%s375 + $0x64] sm:$0xf]
        %v411 = vld [vmem:[%s375 + $0x68] sm:$0xf]
        %v412 = vld [vmem:[%s375 + $0x6c] sm:$0xf]
        %v413 = vld [vmem:[%s375 + $0x70] sm:$0xf]
        %v414 = vld [vmem:[%s375 + $0x74] sm:$0xf]
        %v415 = vld [vmem:[%s375 + $0x78] sm:$0xf]
        %v416 = vld [vmem:[%s375 + $0x7c] sm:$0xf]
        %v417 = vld [vmem:[%s2] sm:$0xff]
        %v418 = vld [vmem:[%s381] sm:$0xf]
        %v419 = vld [vmem:[%s381 + $0x4] sm:$0xf]
        %v420 = vld [vmem:[%s381 + $0x8] sm:$0xf]
        %v421 = vld [vmem:[%s381 + $0xc] sm:$0xf]
        %v422 = vld [vmem:[%s381 + $0x10] sm:$0xf]
        %v423 = vld [vmem:[%s381 + $0x14] sm:$0xf]
        %v424 = vld [vmem:[%s381 + $0x18] sm:$0xf]
        %v425 = vld [vmem:[%s381 + $0x1c] sm:$0xf]
        %v426 = vld [vmem:[%s381 + $0x20] sm:$0xf]
        %v427 = vld [vmem:[%s381 + $0x24] sm:$0xf]
        %v428 = vld [vmem:[%s381 + $0x28] sm:$0xf]
        %v429 = vld [vmem:[%s381 + $0x2c] sm:$0xf]
        %v430 = vld [vmem:[%s381 + $0x30] sm:$0xf]
        %v431 = vld [vmem:[%s381 + $0x34] sm:$0xf]
        %v432 = vld [vmem:[%s381 + $0x38] sm:$0xf]
        %v433 = vld [vmem:[%s381 + $0x3c] sm:$0xf]
        %v434 = vld [vmem:[%s381 + $0x40] sm:$0xf]
        %v435 = vld [vmem:[%s381 + $0x44] sm:$0xf]
        %v436 = vld [vmem:[%s381 + $0x48] sm:$0xf]
        %v437 = vld [vmem:[%s381 + $0x4c] sm:$0xf]
        %v438 = vld [vmem:[%s381 + $0x50] sm:$0xf]
        %v439 = vld [vmem:[%s381 + $0x54] sm:$0xf]
        %v440 = vld [vmem:[%s381 + $0x58] sm:$0xf]
        %v441 = vld [vmem:[%s381 + $0x5c] sm:$0xf]
        %v442 = vld [vmem:[%s381 + $0x60] sm:$0xf]
        %v443 = vld [vmem:[%s381 + $0x64] sm:$0xf]
        %v444 = vld [vmem:[%s381 + $0x68] sm:$0xf]
        %v445 = vld [vmem:[%s381 + $0x6c] sm:$0xf]
        %v446 = vld [vmem:[%s381 + $0x70] sm:$0xf]
        %v447 = vld [vmem:[%s381 + $0x74] sm:$0xf]
        %v448 = vld [vmem:[%s381 + $0x78] sm:$0xf]
        %v449 = vld [vmem:[%s381 + $0x7c] sm:$0xf]
        %v450 = vld [vmem:[%s3] sm:$0xf]
        %v483 = vunpack.c.l.b16 %v418
        %v484 = vunpack.c.l.b16 %v419
        %v485 = vunpack.c.l.b16 %v420
        %v486 = vunpack.c.l.b16 %v421
        %v487 = vunpack.c.l.b16 %v422
        %v488 = vunpack.c.l.b16 %v423
        %v489 = vunpack.c.l.b16 %v424
        %v490 = vunpack.c.l.b16 %v425
        %v491 = vunpack.c.l.b16 %v426
        %v492 = vunpack.c.l.b16 %v427
        %v493 = vunpack.c.l.b16 %v428
        %v494 = vunpack.c.l.b16 %v429
        %v495 = vunpack.c.l.b16 %v430
        %v496 = vunpack.c.l.b16 %v431
        %v497 = vunpack.c.l.b16 %v432
        %v498 = vunpack.c.l.b16 %v433
        %v499 = vunpack.c.l.b16 %v434
        %v500 = vunpack.c.l.b16 %v435
        %v501 = vunpack.c.l.b16 %v436
        %v502 = vunpack.c.l.b16 %v437
        %v503 = vunpack.c.l.b16 %v438
        %v504 = vunpack.c.l.b16 %v439
        %v505 = vunpack.c.l.b16 %v440
        %v506 = vunpack.c.l.b16 %v441
        %v507 = vunpack.c.l.b16 %v442
        %v508 = vunpack.c.l.b16 %v443
        %v509 = vunpack.c.l.b16 %v444
        %v510 = vunpack.c.l.b16 %v445
        %v511 = vunpack.c.l.b16 %v446
        %v512 = vunpack.c.l.b16 %v447
        %v513 = vunpack.c.l.b16 %v448
        %v514 = vunpack.c.l.b16 %v449
        %v515 = vpack.c.b16 %v484, %v483
        %v516 = vpack.c.b16 %v486, %v485
        %v517 = vpack.c.b16 %v488, %v487
        %v518 = vpack.c.b16 %v490, %v489
        %v519 = vpack.c.b16 %v492, %v491
        %v520 = vpack.c.b16 %v494, %v493
        %v521 = vpack.c.b16 %v496, %v495
        %v522 = vpack.c.b16 %v498, %v497
        %v523 = vpack.c.b16 %v500, %v499
        %v524 = vpack.c.b16 %v502, %v501
        %v525 = vpack.c.b16 %v504, %v503
        %v526 = vpack.c.b16 %v506, %v505
        %v527 = vpack.c.b16 %v508, %v507
        %v528 = vpack.c.b16 %v510, %v509
        %v529 = vpack.c.b16 %v512, %v511
        %v530 = vpack.c.b16 %v514, %v513
        %v533 = vunpack.c.l.s4 1983009808
        %v534 = vunpack.c.0.s8 %v533
        %v535 = vlaneseq
        %v536 = vshrl.u32 %v535, 7
        %v537 = vsub.s32 %v534, %v536
        %v538 = vrot.slane %v450, %v537
        %v539 = vcombine.high %v538, %v538
        %vm540 = vcmask 31744
        %v542 = vsel %vm540, %v515, 0
        %v545 = vsel %vm540, %v516, 0
        %v548 = vsel %vm540, %v517, 0
        %v551 = vsel %vm540, %v518, 0
        %v554 = vsel %vm540, %v519, 0
        %v557 = vsel %vm540, %v520, 0
        %v560 = vsel %vm540, %v521, 0
        %v563 = vsel %vm540, %v522, 0
        %v566 = vsel %vm540, %v523, 0
        %v569 = vsel %vm540, %v524, 0
        %v572 = vsel %vm540, %v525, 0
        %v575 = vsel %vm540, %v526, 0
        %v578 = vsel %vm540, %v527, 0
        %v581 = vsel %vm540, %v528, 0
        %v584 = vsel %vm540, %v529, 0
        %v587 = vsel %vm540, %v530, 0
        %vm589 = vcmask 1041408
        %v591 = vsel %vm589, %v538, 0
        %v594 = vsel %vm589, %v539, 0
        %596 = vmatprep.subr.bf16.mxu0 %v594
        %597 = vmatpush1.bf16.msra.mxu0 %v591
        %598 = vmatprep.subr.bf16.mxu0 0
        %599 = vmatpush1.bf16.msra.mxu0 0
        %600 = vmatprep.subr.bf16.mxu0 0
        %601 = vmatpush1.bf16.msra.mxu0 0
        %602 = vmatprep.subr.bf16.mxu0 0
        %603 = vmatpush1.bf16.msra.mxu0 0
        %604 = vmatprep.subr.bf16.mxu0 0
        %605 = vmatpush1.bf16.msra.mxu0 0
        %606 = vmatprep.subr.bf16.mxu0 0
        %607 = vmatpush1.bf16.msra.mxu0 0
        %608 = vmatprep.subr.bf16.mxu0 0
        %609 = vmatpush1.bf16.msra.mxu0 0
        %610 = vmatprep.subr.bf16.mxu0 0
        %611 = vmatpush1.bf16.msra.mxu0 0
        %612 = vmatprep.subr.bf16.mxu0 0
        %613 = vmatpush1.bf16.msra.mxu0 0
        %614 = vmatprep.subr.bf16.mxu0 0
        %615 = vmatpush1.bf16.msra.mxu0 0
        %616 = vmatprep.subr.bf16.mxu0 0
        %617 = vmatpush1.bf16.msra.mxu0 0
        %618 = vmatprep.subr.bf16.mxu0 0
        %619 = vmatpush1.bf16.msra.mxu0 0
        %620 = vmatprep.subr.bf16.mxu0 0
        %621 = vmatpush1.bf16.msra.mxu0 0
        %622 = vmatprep.subr.bf16.mxu0 0
        %623 = vmatpush1.bf16.msra.mxu0 0
        %624 = vmatprep.subr.bf16.mxu0 0
        %625 = vmatpush1.bf16.msra.mxu0 0
        %626 = vmatprep.subr.bf16.mxu0 0
        %627 = vmatpush1.bf16.msra.mxu0 0
        %628 = vmatprep.mubr.bf16.mxu0 0
        %629 = vmatmul.mubr.bf16.gmra.mrb[0].mxu0 %v542
        %v630 = vpop.f32.mrb[0].mxu0
        %v631 = vadd.f32 0.0, %v630
        %v632 = vpop.f32.mrb[0].mxu0
        %v633 = vadd.f32 0.0, %v632
        %v634 = vpop.f32.mrb[0].mxu0
        %v635 = vadd.f32 0.0, %v634
        %v636 = vpop.f32.mrb[0].mxu0
        %v637 = vadd.f32 0.0, %v636
        %638 = vmatprep.mubr.bf16.mxu0 0
        %639 = vmatmul.mubr.bf16.gmra.mrb[0].mxu0 %v545
        %v640 = vpop.f32.mrb[0].mxu0
        %v641 = vadd.f32 0.0, %v640
        %v642 = vpop.f32.mrb[0].mxu0
        %v643 = vadd.f32 0.0, %v642
        %v644 = vpop.f32.mrb[0].mxu0
        %v645 = vadd.f32 0.0, %v644
        %v646 = vpop.f32.mrb[0].mxu0
        %v647 = vadd.f32 0.0, %v646
        %648 = vmatprep.mubr.bf16.mxu0 0
        %649 = vmatmul.mubr.bf16.gmra.mrb[0].mxu0 %v548
        %v650 = vpop.f32.mrb[0].mxu0
        %v651 = vadd.f32 0.0, %v650
        %v652 = vpop.f32.mrb[0].mxu0
        %v653 = vadd.f32 0.0, %v652
        %v654 = vpop.f32.mrb[0].mxu0
        %v655 = vadd.f32 0.0, %v654
        %v656 = vpop.f32.mrb[0].mxu0
        %v657 = vadd.f32 0.0, %v656
        %658 = vmatprep.mubr.bf16.mxu0 0
        %659 = vmatmul.mubr.bf16.gmra.mrb[0].mxu0 %v551
        %v660 = vpop.f32.mrb[0].mxu0
        %v661 = vadd.f32 0.0, %v660
        %v662 = vpop.f32.mrb[0].mxu0
        %v663 = vadd.f32 0.0, %v662
        %v664 = vpop.f32.mrb[0].mxu0
        %v665 = vadd.f32 0.0, %v664
        %v666 = vpop.f32.mrb[0].mxu0
        %v667 = vadd.f32 0.0, %v666
        %668 = vmatprep.mubr.bf16.mxu0 0
        %669 = vmatmul.mubr.bf16.gmra.mrb[0].mxu0 %v554
        %v670 = vpop.f32.mrb[0].mxu0
        %v671 = vadd.f32 0.0, %v670
        %v672 = vpop.f32.mrb[0].mxu0
        %v673 = vadd.f32 0.0, %v672
        %v674 = vpop.f32.mrb[0].mxu0
        %v675 = vadd.f32 0.0, %v674
        %v676 = vpop.f32.mrb[0].mxu0
        %v677 = vadd.f32 0.0, %v676
        %678 = vmatprep.mubr.bf16.mxu0 0
        %679 = vmatmul.mubr.bf16.gmra.mrb[0].mxu0 %v557
        %v680 = vpop.f32.mrb[0].mxu0
        %v681 = vadd.f32 0.0, %v680
        %v682 = vpop.f32.mrb[0].mxu0
        %v683 = vadd.f32 0.0, %v682
        %v684 = vpop.f32.mrb[0].mxu0
        %v685 = vadd.f32 0.0, %v684
        %v686 = vpop.f32.mrb[0].mxu0
        %v687 = vadd.f32 0.0, %v686
        %688 = vmatprep.mubr.bf16.mxu0 0
        %689 = vmatmul.mubr.bf16.gmra.mrb[0].mxu0 %v560
        %v690 = vpop.f32.mrb[0].mxu0
        %v691 = vadd.f32 0.0, %v690
        %v692 = vpop.f32.mrb[0].mxu0
        %v693 = vadd.f32 0.0, %v692
        %v694 = vpop.f32.mrb[0].mxu0
        %v695 = vadd.f32 0.0, %v694
        %v696 = vpop.f32.mrb[0].mxu0
        %v697 = vadd.f32 0.0, %v696
        %698 = vmatprep.mubr.bf16.mxu0 0
        %699 = vmatmul.mubr.bf16.gmra.mrb[0].mxu0 %v563
        %v700 = vpop.f32.mrb[0].mxu0
        %v701 = vadd.f32 0.0, %v700
        %v702 = vpop.f32.mrb[0].mxu0
        %v703 = vadd.f32 0.0, %v702
        %v704 = vpop.f32.mrb[0].mxu0
        %v705 = vadd.f32 0.0, %v704
        %v706 = vpop.f32.mrb[0].mxu0
        %v707 = vadd.f32 0.0, %v706
        %708 = vmatprep.mubr.bf16.mxu0 0
        %709 = vmatmul.mubr.bf16.gmra.mrb[0].mxu0 %v566
        %v710 = vpop.f32.mrb[0].mxu0
        %v711 = vadd.f32 0.0, %v710
        %v712 = vpop.f32.mrb[0].mxu0
        %v713 = vadd.f32 0.0, %v712
        %v714 = vpop.f32.mrb[0].mxu0
        %v715 = vadd.f32 0.0, %v714
        %v716 = vpop.f32.mrb[0].mxu0
        %v717 = vadd.f32 0.0, %v716
        %718 = vmatprep.mubr.bf16.mxu0 0
        %719 = vmatmul.mubr.bf16.gmra.mrb[0].mxu0 %v569
        %v720 = vpop.f32.mrb[0].mxu0
        %v721 = vadd.f32 0.0, %v720
        %v722 = vpop.f32.mrb[0].mxu0
        %v723 = vadd.f32 0.0, %v722
        %v724 = vpop.f32.mrb[0].mxu0
        %v725 = vadd.f32 0.0, %v724
        %v726 = vpop.f32.mrb[0].mxu0
        %v727 = vadd.f32 0.0, %v726
        %728 = vmatprep.mubr.bf16.mxu0 0
        %729 = vmatmul.mubr.bf16.gmra.mrb[0].mxu0 %v572
        %v730 = vpop.f32.mrb[0].mxu0
        %v731 = vadd.f32 0.0, %v730
        %v732 = vpop.f32.mrb[0].mxu0
        %v733 = vadd.f32 0.0, %v732
        %v734 = vpop.f32.mrb[0].mxu0
        %v735 = vadd.f32 0.0, %v734
        %v736 = vpop.f32.mrb[0].mxu0
        %v737 = vadd.f32 0.0, %v736
        %738 = vmatprep.mubr.bf16.mxu0 0
        %739 = vmatmul.mubr.bf16.gmra.mrb[0].mxu0 %v575
        %v740 = vpop.f32.mrb[0].mxu0
        %v741 = vadd.f32 0.0, %v740
        %v742 = vpop.f32.mrb[0].mxu0
        %v743 = vadd.f32 0.0, %v742
        %v744 = vpop.f32.mrb[0].mxu0
        %v745 = vadd.f32 0.0, %v744
        %v746 = vpop.f32.mrb[0].mxu0
        %v747 = vadd.f32 0.0, %v746
        %748 = vmatprep.mubr.bf16.mxu0 0
        %749 = vmatmul.mubr.bf16.gmra.mrb[0].mxu0 %v578
        %v750 = vpop.f32.mrb[0].mxu0
        %v751 = vadd.f32 0.0, %v750
        %v752 = vpop.f32.mrb[0].mxu0
        %v753 = vadd.f32 0.0, %v752
        %v754 = vpop.f32.mrb[0].mxu0
        %v755 = vadd.f32 0.0, %v754
        %v756 = vpop.f32.mrb[0].mxu0
        %v757 = vadd.f32 0.0, %v756
        %758 = vmatprep.mubr.bf16.mxu0 0
        %759 = vmatmul.mubr.bf16.gmra.mrb[0].mxu0 %v581
        %v760 = vpop.f32.mrb[0].mxu0
        %v761 = vadd.f32 0.0, %v760
        %v762 = vpop.f32.mrb[0].mxu0
        %v763 = vadd.f32 0.0, %v762
        %v764 = vpop.f32.mrb[0].mxu0
        %v765 = vadd.f32 0.0, %v764
        %v766 = vpop.f32.mrb[0].mxu0
        %v767 = vadd.f32 0.0, %v766
        %768 = vmatprep.mubr.bf16.mxu0 0
        %769 = vmatmul.mubr.bf16.gmra.mrb[0].mxu0 %v584
        %v770 = vpop.f32.mrb[0].mxu0
        %v771 = vadd.f32 0.0, %v770
        %v772 = vpop.f32.mrb[0].mxu0
        %v773 = vadd.f32 0.0, %v772
        %v774 = vpop.f32.mrb[0].mxu0
        %v775 = vadd.f32 0.0, %v774
        %v776 = vpop.f32.mrb[0].mxu0
        %v777 = vadd.f32 0.0, %v776
        %778 = vmatprep.mubr.bf16.mxu0 0
        %779 = vmatmul.mubr.bf16.gmra.mrb[0].mxu0 %v587
        %v780 = vpop.f32.mrb[0].mxu0
        %v781 = vadd.f32 0.0, %v780
        %v782 = vpop.f32.mrb[0].mxu0
        %v783 = vadd.f32 0.0, %v782
        %v784 = vpop.f32.mrb[0].mxu0
        %v785 = vadd.f32 0.0, %v784
        %v786 = vpop.f32.mrb[0].mxu0
        %v787 = vadd.f32 0.0, %v786
        %788 = vdwg.mxu0
        %v821 = vunpack.c.l.b16 %v385
        %v822 = vunpack.c.l.b16 %v386
        %v823 = vunpack.c.l.b16 %v387
        %v824 = vunpack.c.l.b16 %v388
        %v825 = vunpack.c.l.b16 %v389
        %v826 = vunpack.c.l.b16 %v390
        %v827 = vunpack.c.l.b16 %v391
        %v828 = vunpack.c.l.b16 %v392
        %v829 = vunpack.c.l.b16 %v393
        %v830 = vunpack.c.l.b16 %v394
        %v831 = vunpack.c.l.b16 %v395
        %v832 = vunpack.c.l.b16 %v396
        %v833 = vunpack.c.l.b16 %v397
        %v834 = vunpack.c.l.b16 %v398
        %v835 = vunpack.c.l.b16 %v399
        %v836 = vunpack.c.l.b16 %v400
        %v837 = vunpack.c.l.b16 %v401
        %v838 = vunpack.c.l.b16 %v402
        %v839 = vunpack.c.l.b16 %v403
        %v840 = vunpack.c.l.b16 %v404
        %v841 = vunpack.c.l.b16 %v405
        %v842 = vunpack.c.l.b16 %v406
        %v843 = vunpack.c.l.b16 %v407
        %v844 = vunpack.c.l.b16 %v408
        %v845 = vunpack.c.l.b16 %v409
        %v846 = vunpack.c.l.b16 %v410
        %v847 = vunpack.c.l.b16 %v411
        %v848 = vunpack.c.l.b16 %v412
        %v849 = vunpack.c.l.b16 %v413
        %v850 = vunpack.c.l.b16 %v414
        %v851 = vunpack.c.l.b16 %v415
        %v852 = vunpack.c.l.b16 %v416
        %v853 = vpack.c.b16 %v822, %v821
        %v854 = vpack.c.b16 %v824, %v823
        %v855 = vpack.c.b16 %v826, %v825
        %v856 = vpack.c.b16 %v828, %v827
        %v857 = vpack.c.b16 %v830, %v829
        %v858 = vpack.c.b16 %v832, %v831
        %v859 = vpack.c.b16 %v834, %v833
        %v860 = vpack.c.b16 %v836, %v835
        %v861 = vpack.c.b16 %v838, %v837
        %v862 = vpack.c.b16 %v840, %v839
        %v863 = vpack.c.b16 %v842, %v841
        %v864 = vpack.c.b16 %v844, %v843
        %v865 = vpack.c.b16 %v846, %v845
        %v866 = vpack.c.b16 %v848, %v847
        %v867 = vpack.c.b16 %v850, %v849
        %v868 = vpack.c.b16 %v852, %v851
        %v870 = vunpack.c.l.b16 %v417
        %v871 = vunpack.c.h.b16 %v417
        %v872 = vpack.c.b16 %v870, %v870
        %v873 = vpack.c.b16 %v871, %v871
        %vm874 = vcmask 64512
        %v876 = vsel %vm874, %v853, 0
        %v879 = vsel %vm874, %v854, 0
        %v882 = vsel %vm874, %v855, 0
        %v885 = vsel %vm874, %v856, 0
        %v888 = vsel %vm874, %v857, 0
        %v891 = vsel %vm874, %v858, 0
        %v894 = vsel %vm874, %v859, 0
        %v897 = vsel %vm874, %v860, 0
        %v900 = vsel %vm874, %v861, 0
        %v903 = vsel %vm874, %v862, 0
        %v906 = vsel %vm874, %v863, 0
        %v909 = vsel %vm874, %v864, 0
        %v912 = vsel %vm874, %v865, 0
        %v915 = vsel %vm874, %v866, 0
        %v918 = vsel %vm874, %v867, 0
        %v921 = vsel %vm874, %v868, 0
        %vm923 = vcmask 1043456
        %v925 = vsel %vm923, %v872, 0
        %v928 = vsel %vm923, %v873, 0
        %930 = vmatprep.subr.bf16.mxu0 %v928
        %931 = vmatpush1.bf16.msra.mxu0 %v925
        %932 = vmatprep.subr.bf16.mxu0 0
        %933 = vmatpush1.bf16.msra.mxu0 0
        %934 = vmatprep.subr.bf16.mxu0 0
        %935 = vmatpush1.bf16.msra.mxu0 0
        %936 = vmatprep.subr.bf16.mxu0 0
        %937 = vmatpush1.bf16.msra.mxu0 0
        %938 = vmatprep.subr.bf16.mxu0 0
        %939 = vmatpush1.bf16.msra.mxu0 0
        %940 = vmatprep.subr.bf16.mxu0 0
        %941 = vmatpush1.bf16.msra.mxu0 0
        %942 = vmatprep.subr.bf16.mxu0 0
        %943 = vmatpush1.bf16.msra.mxu0 0
        %944 = vmatprep.subr.bf16.mxu0 0
        %945 = vmatpush1.bf16.msra.mxu0 0
        %946 = vmatprep.subr.bf16.mxu0 0
        %947 = vmatpush1.bf16.msra.mxu0 0
        %948 = vmatprep.subr.bf16.mxu0 0
        %949 = vmatpush1.bf16.msra.mxu0 0
        %950 = vmatprep.subr.bf16.mxu0 0
        %951 = vmatpush1.bf16.msra.mxu0 0
        %952 = vmatprep.subr.bf16.mxu0 0
        %953 = vmatpush1.bf16.msra.mxu0 0
        %954 = vmatprep.subr.bf16.mxu0 0
        %955 = vmatpush1.bf16.msra.mxu0 0
        %956 = vmatprep.subr.bf16.mxu0 0
        %957 = vmatpush1.bf16.msra.mxu0 0
        %958 = vmatprep.subr.bf16.mxu0 0
        %959 = vmatpush1.bf16.msra.mxu0 0
        %960 = vmatprep.subr.bf16.mxu0 0
        %961 = vmatpush1.bf16.msra.mxu0 0
        %962 = vmatprep.mubr.bf16.mxu0 0
        %963 = vmatmul.mubr.bf16.gmra.mrb[0].mxu0 %v876
        %v964 = vpop.f32.mrb[0].mxu0
        %v965 = vadd.f32 %v631, %v964
        %v966 = vpop.f32.mrb[0].mxu0
        %v967 = vadd.f32 %v633, %v966
        %v968 = vpop.f32.mrb[0].mxu0
        %v969 = vadd.f32 %v635, %v968
        %v970 = vpop.f32.mrb[0].mxu0
        %v971 = vadd.f32 %v637, %v970
        %972 = vmatprep.mubr.bf16.mxu0 0
        %973 = vmatmul.mubr.bf16.gmra.mrb[0].mxu0 %v879
        %v974 = vpop.f32.mrb[0].mxu0
        %v975 = vadd.f32 %v641, %v974
        %v976 = vpop.f32.mrb[0].mxu0
        %v977 = vadd.f32 %v643, %v976
        %v978 = vpop.f32.mrb[0].mxu0
        %v979 = vadd.f32 %v645, %v978
        %v980 = vpop.f32.mrb[0].mxu0
        %v981 = vadd.f32 %v647, %v980
        %982 = vmatprep.mubr.bf16.mxu0 0
        %983 = vmatmul.mubr.bf16.gmra.mrb[0].mxu0 %v882
        %v984 = vpop.f32.mrb[0].mxu0
        %v985 = vadd.f32 %v651, %v984
        %v986 = vpop.f32.mrb[0].mxu0
        %v987 = vadd.f32 %v653, %v986
        %v988 = vpop.f32.mrb[0].mxu0
        %v989 = vadd.f32 %v655, %v988
        %v990 = vpop.f32.mrb[0].mxu0
        %v991 = vadd.f32 %v657, %v990
        %992 = vmatprep.mubr.bf16.mxu0 0
        %993 = vmatmul.mubr.bf16.gmra.mrb[0].mxu0 %v885
        %v994 = vpop.f32.mrb[0].mxu0
        %v995 = vadd.f32 %v661, %v994
        %v996 = vpop.f32.mrb[0].mxu0
        %v997 = vadd.f32 %v663, %v996
        %v998 = vpop.f32.mrb[0].mxu0
        %v999 = vadd.f32 %v665, %v998
        %v1000 = vpop.f32.mrb[0].mxu0
        %v1001 = vadd.f32 %v667, %v1000
        %1002 = vmatprep.mubr.bf16.mxu0 0
        %1003 = vmatmul.mubr.bf16.gmra.mrb[0].mxu0 %v888
        %v1004 = vpop.f32.mrb[0].mxu0
        %v1005 = vadd.f32 %v671, %v1004
        %v1006 = vpop.f32.mrb[0].mxu0
        %v1007 = vadd.f32 %v673, %v1006
        %v1008 = vpop.f32.mrb[0].mxu0
        %v1009 = vadd.f32 %v675, %v1008
        %v1010 = vpop.f32.mrb[0].mxu0
        %v1011 = vadd.f32 %v677, %v1010
        %1012 = vmatprep.mubr.bf16.mxu0 0
        %1013 = vmatmul.mubr.bf16.gmra.mrb[0].mxu0 %v891
        %v1014 = vpop.f32.mrb[0].mxu0
        %v1015 = vadd.f32 %v681, %v1014
        %v1016 = vpop.f32.mrb[0].mxu0
        %v1017 = vadd.f32 %v683, %v1016
        %v1018 = vpop.f32.mrb[0].mxu0
        %v1019 = vadd.f32 %v685, %v1018
        %v1020 = vpop.f32.mrb[0].mxu0
        %v1021 = vadd.f32 %v687, %v1020
        %1022 = vmatprep.mubr.bf16.mxu0 0
        %1023 = vmatmul.mubr.bf16.gmra.mrb[0].mxu0 %v894
        %v1024 = vpop.f32.mrb[0].mxu0
        %v1025 = vadd.f32 %v691, %v1024
        %v1026 = vpop.f32.mrb[0].mxu0
        %v1027 = vadd.f32 %v693, %v1026
        %v1028 = vpop.f32.mrb[0].mxu0
        %v1029 = vadd.f32 %v695, %v1028
        %v1030 = vpop.f32.mrb[0].mxu0
        %v1031 = vadd.f32 %v697, %v1030
        %1032 = vmatprep.mubr.bf16.mxu0 0
        %1033 = vmatmul.mubr.bf16.gmra.mrb[0].mxu0 %v897
        %v1034 = vpop.f32.mrb[0].mxu0
        %v1035 = vadd.f32 %v701, %v1034
        %v1036 = vpop.f32.mrb[0].mxu0
        %v1037 = vadd.f32 %v703, %v1036
        %v1038 = vpop.f32.mrb[0].mxu0
        %v1039 = vadd.f32 %v705, %v1038
        %v1040 = vpop.f32.mrb[0].mxu0
        %v1041 = vadd.f32 %v707, %v1040
        %1042 = vmatprep.mubr.bf16.mxu0 0
        %1043 = vmatmul.mubr.bf16.gmra.mrb[0].mxu0 %v900
        %v1044 = vpop.f32.mrb[0].mxu0
        %v1045 = vadd.f32 %v711, %v1044
        %v1046 = vpop.f32.mrb[0].mxu0
        %v1047 = vadd.f32 %v713, %v1046
        %v1048 = vpop.f32.mrb[0].mxu0
        %v1049 = vadd.f32 %v715, %v1048
        %v1050 = vpop.f32.mrb[0].mxu0
        %v1051 = vadd.f32 %v717, %v1050
        %1052 = vmatprep.mubr.bf16.mxu0 0
        %1053 = vmatmul.mubr.bf16.gmra.mrb[0].mxu0 %v903
        %v1054 = vpop.f32.mrb[0].mxu0
        %v1055 = vadd.f32 %v721, %v1054
        %v1056 = vpop.f32.mrb[0].mxu0
        %v1057 = vadd.f32 %v723, %v1056
        %v1058 = vpop.f32.mrb[0].mxu0
        %v1059 = vadd.f32 %v725, %v1058
        %v1060 = vpop.f32.mrb[0].mxu0
        %v1061 = vadd.f32 %v727, %v1060
        %1062 = vmatprep.mubr.bf16.mxu0 0
        %1063 = vmatmul.mubr.bf16.gmra.mrb[0].mxu0 %v906
        %v1064 = vpop.f32.mrb[0].mxu0
        %v1065 = vadd.f32 %v731, %v1064
        %v1066 = vpop.f32.mrb[0].mxu0
        %v1067 = vadd.f32 %v733, %v1066
        %v1068 = vpop.f32.mrb[0].mxu0
        %v1069 = vadd.f32 %v735, %v1068
        %v1070 = vpop.f32.mrb[0].mxu0
        %v1071 = vadd.f32 %v737, %v1070
        %1072 = vmatprep.mubr.bf16.mxu0 0
        %1073 = vmatmul.mubr.bf16.gmra.mrb[0].mxu0 %v909
        %v1074 = vpop.f32.mrb[0].mxu0
        %v1075 = vadd.f32 %v741, %v1074
        %v1076 = vpop.f32.mrb[0].mxu0
        %v1077 = vadd.f32 %v743, %v1076
        %v1078 = vpop.f32.mrb[0].mxu0
        %v1079 = vadd.f32 %v745, %v1078
        %v1080 = vpop.f32.mrb[0].mxu0
        %v1081 = vadd.f32 %v747, %v1080
        %1082 = vmatprep.mubr.bf16.mxu0 0
        %1083 = vmatmul.mubr.bf16.gmra.mrb[0].mxu0 %v912
        %v1084 = vpop.f32.mrb[0].mxu0
        %v1085 = vadd.f32 %v751, %v1084
        %v1086 = vpop.f32.mrb[0].mxu0
        %v1087 = vadd.f32 %v753, %v1086
        %v1088 = vpop.f32.mrb[0].mxu0
        %v1089 = vadd.f32 %v755, %v1088
        %v1090 = vpop.f32.mrb[0].mxu0
        %v1091 = vadd.f32 %v757, %v1090
        %1092 = vmatprep.mubr.bf16.mxu0 0
        %1093 = vmatmul.mubr.bf16.gmra.mrb[0].mxu0 %v915
        %v1094 = vpop.f32.mrb[0].mxu0
        %v1095 = vadd.f32 %v761, %v1094
        %v1096 = vpop.f32.mrb[0].mxu0
        %v1097 = vadd.f32 %v763, %v1096
        %v1098 = vpop.f32.mrb[0].mxu0
        %v1099 = vadd.f32 %v765, %v1098
        %v1100 = vpop.f32.mrb[0].mxu0
        %v1101 = vadd.f32 %v767, %v1100
        %1102 = vmatprep.mubr.bf16.mxu0 0
        %1103 = vmatmul.mubr.bf16.gmra.mrb[0].mxu0 %v918
        %v1104 = vpop.f32.mrb[0].mxu0
        %v1105 = vadd.f32 %v771, %v1104
        %v1106 = vpop.f32.mrb[0].mxu0
        %v1107 = vadd.f32 %v773, %v1106
        %v1108 = vpop.f32.mrb[0].mxu0
        %v1109 = vadd.f32 %v775, %v1108
        %v1110 = vpop.f32.mrb[0].mxu0
        %v1111 = vadd.f32 %v777, %v1110
        %1112 = vmatprep.mubr.bf16.mxu0 0
        %1113 = vmatmul.mubr.bf16.gmra.mrb[0].mxu0 %v921
        %v1114 = vpop.f32.mrb[0].mxu0
        %v1115 = vadd.f32 %v781, %v1114
        %v1116 = vpop.f32.mrb[0].mxu0
        %v1117 = vadd.f32 %v783, %v1116
        %v1118 = vpop.f32.mrb[0].mxu0
        %v1119 = vadd.f32 %v785, %v1118
        %v1120 = vpop.f32.mrb[0].mxu0
        %v1121 = vadd.f32 %v787, %v1120
        %1122 = vdwg.mxu0
        %v1123 = vld [vmem:[%s6] ss:$4 sm:$0x3]
        %v1125 = vlaneseq
        %v1126 = vshrl.u32 %v1125, 7
        %v1127 = vsub.s32 0, %v1126
        %v1128 = vrot.slane %v1123, %v1127
        %v1129 = vlaneseq
        %v1130 = vshrl.u32 %v1129, 7
        %v1131 = vsub.s32 1, %v1130
        %v1132 = vrot.slane %v1123, %v1131
        %v1135 = vadd.f32 %v965, %v1128
        %v1136 = vadd.f32 %v967, %v1132
        %v1137 = vadd.f32 %v969, %v1128
        %v1138 = vadd.f32 %v971, %v1132
        %v1139 = vadd.f32 %v975, %v1128
        %v1140 = vadd.f32 %v977, %v1132
        %v1141 = vadd.f32 %v979, %v1128
        %v1142 = vadd.f32 %v981, %v1132
        %v1143 = vadd.f32 %v985, %v1128
        %v1144 = vadd.f32 %v987, %v1132
        %v1145 = vadd.f32 %v989, %v1128
        %v1146 = vadd.f32 %v991, %v1132
        %v1147 = vadd.f32 %v995, %v1128
        %v1148 = vadd.f32 %v997, %v1132
        %v1149 = vadd.f32 %v999, %v1128
        %v1150 = vadd.f32 %v1001, %v1132
        %v1151 = vadd.f32 %v1005, %v1128
        %v1152 = vadd.f32 %v1007, %v1132
        %v1153 = vadd.f32 %v1009, %v1128
        %v1154 = vadd.f32 %v1011, %v1132
        %v1155 = vadd.f32 %v1015, %v1128
        %v1156 = vadd.f32 %v1017, %v1132
        %v1157 = vadd.f32 %v1019, %v1128
        %v1158 = vadd.f32 %v1021, %v1132
        %v1159 = vadd.f32 %v1025, %v1128
        %v1160 = vadd.f32 %v1027, %v1132
        %v1161 = vadd.f32 %v1029, %v1128
        %v1162 = vadd.f32 %v1031, %v1132
        %v1163 = vadd.f32 %v1035, %v1128
        %v1164 = vadd.f32 %v1037, %v1132
        %v1165 = vadd.f32 %v1039, %v1128
        %v1166 = vadd.f32 %v1041, %v1132
        %v1167 = vadd.f32 %v1045, %v1128
        %v1168 = vadd.f32 %v1047, %v1132
        %v1169 = vadd.f32 %v1049, %v1128
        %v1170 = vadd.f32 %v1051, %v1132
        %v1171 = vadd.f32 %v1055, %v1128
        %v1172 = vadd.f32 %v1057, %v1132
        %v1173 = vadd.f32 %v1059, %v1128
        %v1174 = vadd.f32 %v1061, %v1132
        %v1175 = vadd.f32 %v1065, %v1128
        %v1176 = vadd.f32 %v1067, %v1132
        %v1177 = vadd.f32 %v1069, %v1128
        %v1178 = vadd.f32 %v1071, %v1132
        %v1179 = vadd.f32 %v1075, %v1128
        %v1180 = vadd.f32 %v1077, %v1132
        %v1181 = vadd.f32 %v1079, %v1128
        %v1182 = vadd.f32 %v1081, %v1132
        %v1183 = vadd.f32 %v1085, %v1128
        %v1184 = vadd.f32 %v1087, %v1132
        %v1185 = vadd.f32 %v1089, %v1128
        %v1186 = vadd.f32 %v1091, %v1132
        %v1187 = vadd.f32 %v1095, %v1128
        %v1188 = vadd.f32 %v1097, %v1132
        %v1189 = vadd.f32 %v1099, %v1128
        %v1190 = vadd.f32 %v1101, %v1132
        %v1191 = vadd.f32 %v1105, %v1128
        %v1192 = vadd.f32 %v1107, %v1132
        %v1193 = vadd.f32 %v1109, %v1128
        %v1194 = vadd.f32 %v1111, %v1132
        %v1195 = vadd.f32 %v1115, %v1128
        %v1196 = vadd.f32 %v1117, %v1132
        %v1197 = vadd.f32 %v1119, %v1128
        %v1198 = vadd.f32 %v1121, %v1132
        %v1199 = vld [vmem:[%s7] sm:$0x11]
        %v1200 = vadd.f32 %v1135, %v1136
        %1201 = vadd.xlane.f32.xlu0 %v1200
        %v1202 = vpop.xlane.xlu0 %1201
        %v1203 = vadd.f32 %v1137, %v1138
        %1204 = vadd.xlane.f32.xlu0 %v1203
        %v1205 = vpop.xlane.xlu0 %1204
        %v1206 = vadd.f32 %v1139, %v1140
        %1207 = vadd.xlane.f32.xlu0 %v1206
        %v1208 = vpop.xlane.xlu0 %1207
        %v1209 = vadd.f32 %v1141, %v1142
        %1210 = vadd.xlane.f32.xlu0 %v1209
        %v1211 = vpop.xlane.xlu0 %1210
        %v1212 = vadd.f32 %v1143, %v1144
        %1213 = vadd.xlane.f32.xlu0 %v1212
        %v1214 = vpop.xlane.xlu0 %1213
        %v1215 = vadd.f32 %v1145, %v1146
        %1216 = vadd.xlane.f32.xlu0 %v1215
        %v1217 = vpop.xlane.xlu0 %1216
        %v1218 = vadd.f32 %v1147, %v1148
        %1219 = vadd.xlane.f32.xlu0 %v1218
        %v1220 = vpop.xlane.xlu0 %1219
        %v1221 = vadd.f32 %v1149, %v1150
        %1222 = vadd.xlane.f32.xlu0 %v1221
        %v1223 = vpop.xlane.xlu0 %1222
        %v1224 = vadd.f32 %v1151, %v1152
        %1225 = vadd.xlane.f32.xlu0 %v1224
        %v1226 = vpop.xlane.xlu0 %1225
        %v1227 = vadd.f32 %v1153, %v1154
        %1228 = vadd.xlane.f32.xlu0 %v1227
        %v1229 = vpop.xlane.xlu0 %1228
        %v1230 = vadd.f32 %v1155, %v1156
        %1231 = vadd.xlane.f32.xlu0 %v1230
        %v1232 = vpop.xlane.xlu0 %1231
        %v1233 = vadd.f32 %v1157, %v1158
        %1234 = vadd.xlane.f32.xlu0 %v1233
        %v1235 = vpop.xlane.xlu0 %1234
        %v1236 = vadd.f32 %v1159, %v1160
        %1237 = vadd.xlane.f32.xlu0 %v1236
        %v1238 = vpop.xlane.xlu0 %1237
        %v1239 = vadd.f32 %v1161, %v1162
        %1240 = vadd.xlane.f32.xlu0 %v1239
        %v1241 = vpop.xlane.xlu0 %1240
        %v1242 = vadd.f32 %v1163, %v1164
        %1243 = vadd.xlane.f32.xlu0 %v1242
        %v1244 = vpop.xlane.xlu0 %1243
        %v1245 = vadd.f32 %v1165, %v1166
        %1246 = vadd.xlane.f32.xlu0 %v1245
        %v1247 = vpop.xlane.xlu0 %1246
        %v1248 = vadd.f32 %v1167, %v1168
        %1249 = vadd.xlane.f32.xlu0 %v1248
        %v1250 = vpop.xlane.xlu0 %1249
        %v1251 = vadd.f32 %v1169, %v1170
        %1252 = vadd.xlane.f32.xlu0 %v1251
        %v1253 = vpop.xlane.xlu0 %1252
        %v1254 = vadd.f32 %v1171, %v1172
        %1255 = vadd.xlane.f32.xlu0 %v1254
        %v1256 = vpop.xlane.xlu0 %1255
        %v1257 = vadd.f32 %v1173, %v1174
        %1258 = vadd.xlane.f32.xlu0 %v1257
        %v1259 = vpop.xlane.xlu0 %1258
        %v1260 = vadd.f32 %v1175, %v1176
        %1261 = vadd.xlane.f32.xlu0 %v1260
        %v1262 = vpop.xlane.xlu0 %1261
        %v1263 = vadd.f32 %v1177, %v1178
        %1264 = vadd.xlane.f32.xlu0 %v1263
        %v1265 = vpop.xlane.xlu0 %1264
        %v1266 = vadd.f32 %v1179, %v1180
        %1267 = vadd.xlane.f32.xlu0 %v1266
        %v1268 = vpop.xlane.xlu0 %1267
        %v1269 = vadd.f32 %v1181, %v1182
        %1270 = vadd.xlane.f32.xlu0 %v1269
        %v1271 = vpop.xlane.xlu0 %1270
        %v1272 = vadd.f32 %v1183, %v1184
        %1273 = vadd.xlane.f32.xlu0 %v1272
        %v1274 = vpop.xlane.xlu0 %1273
        %v1275 = vadd.f32 %v1185, %v1186
        %1276 = vadd.xlane.f32.xlu0 %v1275
        %v1277 = vpop.xlane.xlu0 %1276
        %v1278 = vadd.f32 %v1187, %v1188
        %1279 = vadd.xlane.f32.xlu0 %v1278
        %v1280 = vpop.xlane.xlu0 %1279
        %v1281 = vadd.f32 %v1189, %v1190
        %1282 = vadd.xlane.f32.xlu0 %v1281
        %v1283 = vpop.xlane.xlu0 %1282
        %v1284 = vadd.f32 %v1191, %v1192
        %1285 = vadd.xlane.f32.xlu0 %v1284
        %v1286 = vpop.xlane.xlu0 %1285
        %v1287 = vadd.f32 %v1193, %v1194
        %1288 = vadd.xlane.f32.xlu0 %v1287
        %v1289 = vpop.xlane.xlu0 %1288
        %v1290 = vadd.f32 %v1195, %v1196
        %1291 = vadd.xlane.f32.xlu0 %v1290
        %v1292 = vpop.xlane.xlu0 %1291
        %v1293 = vadd.f32 %v1197, %v1198
        %1294 = vadd.xlane.f32.xlu0 %v1293
        %v1295 = vpop.xlane.xlu0 %1294
        %v1296 = vrcp.pop 256.0
        %v1297 = vmul.f32 %v1202, %v1296
        %v1298 = vmul.f32 %v1205, %v1296
        %v1299 = vmul.f32 %v1208, %v1296
        %v1300 = vmul.f32 %v1211, %v1296
        %v1301 = vmul.f32 %v1214, %v1296
        %v1302 = vmul.f32 %v1217, %v1296
        %v1303 = vmul.f32 %v1220, %v1296
        %v1304 = vmul.f32 %v1223, %v1296
        %v1305 = vmul.f32 %v1226, %v1296
        %v1306 = vmul.f32 %v1229, %v1296
        %v1307 = vmul.f32 %v1232, %v1296
        %v1308 = vmul.f32 %v1235, %v1296
        %v1309 = vmul.f32 %v1238, %v1296
        %v1310 = vmul.f32 %v1241, %v1296
        %v1311 = vmul.f32 %v1244, %v1296
        %v1312 = vmul.f32 %v1247, %v1296
        %v1313 = vmul.f32 %v1250, %v1296
        %v1314 = vmul.f32 %v1253, %v1296
        %v1315 = vmul.f32 %v1256, %v1296
        %v1316 = vmul.f32 %v1259, %v1296
        %v1317 = vmul.f32 %v1262, %v1296
        %v1318 = vmul.f32 %v1265, %v1296
        %v1319 = vmul.f32 %v1268, %v1296
        %v1320 = vmul.f32 %v1271, %v1296
        %v1321 = vmul.f32 %v1274, %v1296
        %v1322 = vmul.f32 %v1277, %v1296
        %v1323 = vmul.f32 %v1280, %v1296
        %v1324 = vmul.f32 %v1283, %v1296
        %v1325 = vmul.f32 %v1286, %v1296
        %v1326 = vmul.f32 %v1289, %v1296
        %v1327 = vmul.f32 %v1292, %v1296
        %v1328 = vmul.f32 %v1295, %v1296
        %v1329 = vsub.f32 %v1135, %v1297
        %v1330 = vsub.f32 %v1136, %v1297
        %v1331 = vsub.f32 %v1137, %v1298
        %v1332 = vsub.f32 %v1138, %v1298
        %v1333 = vsub.f32 %v1139, %v1299
        %v1334 = vsub.f32 %v1140, %v1299
        %v1335 = vsub.f32 %v1141, %v1300
        %v1336 = vsub.f32 %v1142, %v1300
        %v1337 = vsub.f32 %v1143, %v1301
        %v1338 = vsub.f32 %v1144, %v1301
        %v1339 = vsub.f32 %v1145, %v1302
        %v1340 = vsub.f32 %v1146, %v1302
        %v1341 = vsub.f32 %v1147, %v1303
        %v1342 = vsub.f32 %v1148, %v1303
        %v1343 = vsub.f32 %v1149, %v1304
        %v1344 = vsub.f32 %v1150, %v1304
        %v1345 = vsub.f32 %v1151, %v1305
        %v1346 = vsub.f32 %v1152, %v1305
        %v1347 = vsub.f32 %v1153, %v1306
        %v1348 = vsub.f32 %v1154, %v1306
        %v1349 = vsub.f32 %v1155, %v1307
        %v1350 = vsub.f32 %v1156, %v1307
        %v1351 = vsub.f32 %v1157, %v1308
        %v1352 = vsub.f32 %v1158, %v1308
        %v1353 = vsub.f32 %v1159, %v1309
        %v1354 = vsub.f32 %v1160, %v1309
        %v1355 = vsub.f32 %v1161, %v1310
        %v1356 = vsub.f32 %v1162, %v1310
        %v1357 = vsub.f32 %v1163, %v1311
        %v1358 = vsub.f32 %v1164, %v1311
        %v1359 = vsub.f32 %v1165, %v1312
        %v1360 = vsub.f32 %v1166, %v1312
        %v1361 = vsub.f32 %v1167, %v1313
        %v1362 = vsub.f32 %v1168, %v1313
        %v1363 = vsub.f32 %v1169, %v1314
        %v1364 = vsub.f32 %v1170, %v1314
        %v1365 = vsub.f32 %v1171, %v1315
        %v1366 = vsub.f32 %v1172, %v1315
        %v1367 = vsub.f32 %v1173, %v1316
        %v1368 = vsub.f32 %v1174, %v1316
        %v1369 = vsub.f32 %v1175, %v1317
        %v1370 = vsub.f32 %v1176, %v1317
        %v1371 = vsub.f32 %v1177, %v1318
        %v1372 = vsub.f32 %v1178, %v1318
        %v1373 = vsub.f32 %v1179, %v1319
        %v1374 = vsub.f32 %v1180, %v1319
        %v1375 = vsub.f32 %v1181, %v1320
        %v1376 = vsub.f32 %v1182, %v1320
        %v1377 = vsub.f32 %v1183, %v1321
        %v1378 = vsub.f32 %v1184, %v1321
        %v1379 = vsub.f32 %v1185, %v1322
        %v1380 = vsub.f32 %v1186, %v1322
        %v1381 = vsub.f32 %v1187, %v1323
        %v1382 = vsub.f32 %v1188, %v1323
        %v1383 = vsub.f32 %v1189, %v1324
        %v1384 = vsub.f32 %v1190, %v1324
        %v1385 = vsub.f32 %v1191, %v1325
        %v1386 = vsub.f32 %v1192, %v1325
        %v1387 = vsub.f32 %v1193, %v1326
        %v1388 = vsub.f32 %v1194, %v1326
        %v1389 = vsub.f32 %v1195, %v1327
        %v1390 = vsub.f32 %v1196, %v1327
        %v1391 = vsub.f32 %v1197, %v1328
        %v1392 = vsub.f32 %v1198, %v1328
        %v1393 = vmul.f32 %v1329, %v1329
        %v1394 = vmul.f32 %v1330, %v1330
        %v1395 = vmul.f32 %v1331, %v1331
        %v1396 = vmul.f32 %v1332, %v1332
        %v1397 = vmul.f32 %v1333, %v1333
        %v1398 = vmul.f32 %v1334, %v1334
        %v1399 = vmul.f32 %v1335, %v1335
        %v1400 = vmul.f32 %v1336, %v1336
        %v1401 = vmul.f32 %v1337, %v1337
        %v1402 = vmul.f32 %v1338, %v1338
        %v1403 = vmul.f32 %v1339, %v1339
        %v1404 = vmul.f32 %v1340, %v1340
        %v1405 = vmul.f32 %v1341, %v1341
        %v1406 = vmul.f32 %v1342, %v1342
        %v1407 = vmul.f32 %v1343, %v1343
        %v1408 = vmul.f32 %v1344, %v1344
        %v1409 = vmul.f32 %v1345, %v1345
        %v1410 = vmul.f32 %v1346, %v1346
        %v1411 = vmul.f32 %v1347, %v1347
        %v1412 = vmul.f32 %v1348, %v1348
        %v1413 = vmul.f32 %v1349, %v1349
        %v1414 = vmul.f32 %v1350, %v1350
        %v1415 = vmul.f32 %v1351, %v1351
        %v1416 = vmul.f32 %v1352, %v1352
        %v1417 = vmul.f32 %v1353, %v1353
        %v1418 = vmul.f32 %v1354, %v1354
        %v1419 = vmul.f32 %v1355, %v1355
        %v1420 = vmul.f32 %v1356, %v1356
        %v1421 = vmul.f32 %v1357, %v1357
        %v1422 = vmul.f32 %v1358, %v1358
        %v1423 = vmul.f32 %v1359, %v1359
        %v1424 = vmul.f32 %v1360, %v1360
        %v1425 = vmul.f32 %v1361, %v1361
        %v1426 = vmul.f32 %v1362, %v1362
        %v1427 = vmul.f32 %v1363, %v1363
        %v1428 = vmul.f32 %v1364, %v1364
        %v1429 = vmul.f32 %v1365, %v1365
        %v1430 = vmul.f32 %v1366, %v1366
        %v1431 = vmul.f32 %v1367, %v1367
        %v1432 = vmul.f32 %v1368, %v1368
        %v1433 = vmul.f32 %v1369, %v1369
        %v1434 = vmul.f32 %v1370, %v1370
        %v1435 = vmul.f32 %v1371, %v1371
        %v1436 = vmul.f32 %v1372, %v1372
        %v1437 = vmul.f32 %v1373, %v1373
        %v1438 = vmul.f32 %v1374, %v1374
        %v1439 = vmul.f32 %v1375, %v1375
        %v1440 = vmul.f32 %v1376, %v1376
        %v1441 = vmul.f32 %v1377, %v1377
        %v1442 = vmul.f32 %v1378, %v1378
        %v1443 = vmul.f32 %v1379, %v1379
        %v1444 = vmul.f32 %v1380, %v1380
        %v1445 = vmul.f32 %v1381, %v1381
        %v1446 = vmul.f32 %v1382, %v1382
        %v1447 = vmul.f32 %v1383, %v1383
        %v1448 = vmul.f32 %v1384, %v1384
        %v1449 = vmul.f32 %v1385, %v1385
        %v1450 = vmul.f32 %v1386, %v1386
        %v1451 = vmul.f32 %v1387, %v1387
        %v1452 = vmul.f32 %v1388, %v1388
        %v1453 = vmul.f32 %v1389, %v1389
        %v1454 = vmul.f32 %v1390, %v1390
        %v1455 = vmul.f32 %v1391, %v1391
        %v1456 = vmul.f32 %v1392, %v1392
        %v1457 = vadd.f32 %v1393, %v1394
        %1458 = vadd.xlane.f32.xlu0 %v1457
        %v1459 = vpop.xlane.xlu0 %1458
        %v1460 = vadd.f32 %v1395, %v1396
        %1461 = vadd.xlane.f32.xlu0 %v1460
        %v1462 = vpop.xlane.xlu0 %1461
        %v1463 = vadd.f32 %v1397, %v1398
        %1464 = vadd.xlane.f32.xlu0 %v1463
        %v1465 = vpop.xlane.xlu0 %1464
        %v1466 = vadd.f32 %v1399, %v1400
        %1467 = vadd.xlane.f32.xlu0 %v1466
        %v1468 = vpop.xlane.xlu0 %1467
        %v1469 = vadd.f32 %v1401, %v1402
        %1470 = vadd.xlane.f32.xlu0 %v1469
        %v1471 = vpop.xlane.xlu0 %1470
        %v1472 = vadd.f32 %v1403, %v1404
        %1473 = vadd.xlane.f32.xlu0 %v1472
        %v1474 = vpop.xlane.xlu0 %1473
        %v1475 = vadd.f32 %v1405, %v1406
        %1476 = vadd.xlane.f32.xlu0 %v1475
        %v1477 = vpop.xlane.xlu0 %1476
        %v1478 = vadd.f32 %v1407, %v1408
        %1479 = vadd.xlane.f32.xlu0 %v1478
        %v1480 = vpop.xlane.xlu0 %1479
        %v1481 = vadd.f32 %v1409, %v1410
        %1482 = vadd.xlane.f32.xlu0 %v1481
        %v1483 = vpop.xlane.xlu0 %1482
        %v1484 = vadd.f32 %v1411, %v1412
        %1485 = vadd.xlane.f32.xlu0 %v1484
        %v1486 = vpop.xlane.xlu0 %1485
        %v1487 = vadd.f32 %v1413, %v1414
        %1488 = vadd.xlane.f32.xlu0 %v1487
        %v1489 = vpop.xlane.xlu0 %1488
        %v1490 = vadd.f32 %v1415, %v1416
        %1491 = vadd.xlane.f32.xlu0 %v1490
        %v1492 = vpop.xlane.xlu0 %1491
        %v1493 = vadd.f32 %v1417, %v1418
        %1494 = vadd.xlane.f32.xlu0 %v1493
        %v1495 = vpop.xlane.xlu0 %1494
        %v1496 = vadd.f32 %v1419, %v1420
        %1497 = vadd.xlane.f32.xlu0 %v1496
        %v1498 = vpop.xlane.xlu0 %1497
        %v1499 = vadd.f32 %v1421, %v1422
        %1500 = vadd.xlane.f32.xlu0 %v1499
        %v1501 = vpop.xlane.xlu0 %1500
        %v1502 = vadd.f32 %v1423, %v1424
        %1503 = vadd.xlane.f32.xlu0 %v1502
        %v1504 = vpop.xlane.xlu0 %1503
        %v1505 = vadd.f32 %v1425, %v1426
        %1506 = vadd.xlane.f32.xlu0 %v1505
        %v1507 = vpop.xlane.xlu0 %1506
        %v1508 = vadd.f32 %v1427, %v1428
        %1509 = vadd.xlane.f32.xlu0 %v1508
        %v1510 = vpop.xlane.xlu0 %1509
        %v1511 = vadd.f32 %v1429, %v1430
        %1512 = vadd.xlane.f32.xlu0 %v1511
        %v1513 = vpop.xlane.xlu0 %1512
        %v1514 = vadd.f32 %v1431, %v1432
        %1515 = vadd.xlane.f32.xlu0 %v1514
        %v1516 = vpop.xlane.xlu0 %1515
        %v1517 = vadd.f32 %v1433, %v1434
        %1518 = vadd.xlane.f32.xlu0 %v1517
        %v1519 = vpop.xlane.xlu0 %1518
        %v1520 = vadd.f32 %v1435, %v1436
        %1521 = vadd.xlane.f32.xlu0 %v1520
        %v1522 = vpop.xlane.xlu0 %1521
        %v1523 = vadd.f32 %v1437, %v1438
        %1524 = vadd.xlane.f32.xlu0 %v1523
        %v1525 = vpop.xlane.xlu0 %1524
        %v1526 = vadd.f32 %v1439, %v1440
        %1527 = vadd.xlane.f32.xlu0 %v1526
        %v1528 = vpop.xlane.xlu0 %1527
        %v1529 = vadd.f32 %v1441, %v1442
        %1530 = vadd.xlane.f32.xlu0 %v1529
        %v1531 = vpop.xlane.xlu0 %1530
        %v1532 = vadd.f32 %v1443, %v1444
        %1533 = vadd.xlane.f32.xlu0 %v1532
        %v1534 = vpop.xlane.xlu0 %1533
        %v1535 = vadd.f32 %v1445, %v1446
        %1536 = vadd.xlane.f32.xlu0 %v1535
        %v1537 = vpop.xlane.xlu0 %1536
        %v1538 = vadd.f32 %v1447, %v1448
        %1539 = vadd.xlane.f32.xlu0 %v1538
        %v1540 = vpop.xlane.xlu0 %1539
        %v1541 = vadd.f32 %v1449, %v1450
        %1542 = vadd.xlane.f32.xlu0 %v1541
        %v1543 = vpop.xlane.xlu0 %1542
        %v1544 = vadd.f32 %v1451, %v1452
        %1545 = vadd.xlane.f32.xlu0 %v1544
        %v1546 = vpop.xlane.xlu0 %1545
        %v1547 = vadd.f32 %v1453, %v1454
        %1548 = vadd.xlane.f32.xlu0 %v1547
        %v1549 = vpop.xlane.xlu0 %1548
        %v1550 = vadd.f32 %v1455, %v1456
        %1551 = vadd.xlane.f32.xlu0 %v1550
        %v1552 = vpop.xlane.xlu0 %1551
        %v1553 = vmul.f32 %v1459, %v1296
        %v1554 = vmul.f32 %v1462, %v1296
        %v1555 = vmul.f32 %v1465, %v1296
        %v1556 = vmul.f32 %v1468, %v1296
        %v1557 = vmul.f32 %v1471, %v1296
        %v1558 = vmul.f32 %v1474, %v1296
        %v1559 = vmul.f32 %v1477, %v1296
        %v1560 = vmul.f32 %v1480, %v1296
        %v1561 = vmul.f32 %v1483, %v1296
        %v1562 = vmul.f32 %v1486, %v1296
        %v1563 = vmul.f32 %v1489, %v1296
        %v1564 = vmul.f32 %v1492, %v1296
        %v1565 = vmul.f32 %v1495, %v1296
        %v1566 = vmul.f32 %v1498, %v1296
        %v1567 = vmul.f32 %v1501, %v1296
        %v1568 = vmul.f32 %v1504, %v1296
        %v1569 = vmul.f32 %v1507, %v1296
        %v1570 = vmul.f32 %v1510, %v1296
        %v1571 = vmul.f32 %v1513, %v1296
        %v1572 = vmul.f32 %v1516, %v1296
        %v1573 = vmul.f32 %v1519, %v1296
        %v1574 = vmul.f32 %v1522, %v1296
        %v1575 = vmul.f32 %v1525, %v1296
        %v1576 = vmul.f32 %v1528, %v1296
        %v1577 = vmul.f32 %v1531, %v1296
        %v1578 = vmul.f32 %v1534, %v1296
        %v1579 = vmul.f32 %v1537, %v1296
        %v1580 = vmul.f32 %v1540, %v1296
        %v1581 = vmul.f32 %v1543, %v1296
        %v1582 = vmul.f32 %v1546, %v1296
        %v1583 = vmul.f32 %v1549, %v1296
        %v1584 = vmul.f32 %v1552, %v1296
        %v1585 = vadd.f32 %v1553, 1e-05
        %v1586 = vadd.f32 %v1554, 1e-05
        %v1587 = vadd.f32 %v1555, 1e-05
        %v1588 = vadd.f32 %v1556, 1e-05
        %v1589 = vadd.f32 %v1557, 1e-05
        %v1590 = vadd.f32 %v1558, 1e-05
        %v1591 = vadd.f32 %v1559, 1e-05
        %v1592 = vadd.f32 %v1560, 1e-05
        %v1593 = vadd.f32 %v1561, 1e-05
        %v1594 = vadd.f32 %v1562, 1e-05
        %v1595 = vadd.f32 %v1563, 1e-05
        %v1596 = vadd.f32 %v1564, 1e-05
        %v1597 = vadd.f32 %v1565, 1e-05
        %v1598 = vadd.f32 %v1566, 1e-05
        %v1599 = vadd.f32 %v1567, 1e-05
        %v1600 = vadd.f32 %v1568, 1e-05
        %v1601 = vadd.f32 %v1569, 1e-05
        %v1602 = vadd.f32 %v1570, 1e-05
        %v1603 = vadd.f32 %v1571, 1e-05
        %v1604 = vadd.f32 %v1572, 1e-05
        %v1605 = vadd.f32 %v1573, 1e-05
        %v1606 = vadd.f32 %v1574, 1e-05
        %v1607 = vadd.f32 %v1575, 1e-05
        %v1608 = vadd.f32 %v1576, 1e-05
        %v1609 = vadd.f32 %v1577, 1e-05
        %v1610 = vadd.f32 %v1578, 1e-05
        %v1611 = vadd.f32 %v1579, 1e-05
        %v1612 = vadd.f32 %v1580, 1e-05
        %v1613 = vadd.f32 %v1581, 1e-05
        %v1614 = vadd.f32 %v1582, 1e-05
        %v1615 = vadd.f32 %v1583, 1e-05
        %v1616 = vadd.f32 %v1584, 1e-05
        %v1617 = vrsqrt.pop %v1585
        %v1618 = vrsqrt.pop %v1586
        %v1619 = vrsqrt.pop %v1587
        %v1620 = vrsqrt.pop %v1588
        %v1621 = vrsqrt.pop %v1589
        %v1622 = vrsqrt.pop %v1590
        %v1623 = vrsqrt.pop %v1591
        %v1624 = vrsqrt.pop %v1592
        %v1625 = vrsqrt.pop %v1593
        %v1626 = vrsqrt.pop %v1594
        %v1627 = vrsqrt.pop %v1595
        %v1628 = vrsqrt.pop %v1596
        %v1629 = vrsqrt.pop %v1597
        %v1630 = vrsqrt.pop %v1598
        %v1631 = vrsqrt.pop %v1599
        %v1632 = vrsqrt.pop %v1600
        %v1633 = vrsqrt.pop %v1601
        %v1634 = vrsqrt.pop %v1602
        %v1635 = vrsqrt.pop %v1603
        %v1636 = vrsqrt.pop %v1604
        %v1637 = vrsqrt.pop %v1605
        %v1638 = vrsqrt.pop %v1606
        %v1639 = vrsqrt.pop %v1607
        %v1640 = vrsqrt.pop %v1608
        %v1641 = vrsqrt.pop %v1609
        %v1642 = vrsqrt.pop %v1610
        %v1643 = vrsqrt.pop %v1611
        %v1644 = vrsqrt.pop %v1612
        %v1645 = vrsqrt.pop %v1613
        %v1646 = vrsqrt.pop %v1614
        %v1647 = vrsqrt.pop %v1615
        %v1648 = vrsqrt.pop %v1616
        %v1649 = vmul.f32 %v1329, %v1617
        %v1650 = vmul.f32 %v1330, %v1617
        %v1651 = vmul.f32 %v1331, %v1618
        %v1652 = vmul.f32 %v1332, %v1618
        %v1653 = vmul.f32 %v1333, %v1619
        %v1654 = vmul.f32 %v1334, %v1619
        %v1655 = vmul.f32 %v1335, %v1620
        %v1656 = vmul.f32 %v1336, %v1620
        %v1657 = vmul.f32 %v1337, %v1621
        %v1658 = vmul.f32 %v1338, %v1621
        %v1659 = vmul.f32 %v1339, %v1622
        %v1660 = vmul.f32 %v1340, %v1622
        %v1661 = vmul.f32 %v1341, %v1623
        %v1662 = vmul.f32 %v1342, %v1623
        %v1663 = vmul.f32 %v1343, %v1624
        %v1664 = vmul.f32 %v1344, %v1624
        %v1665 = vmul.f32 %v1345, %v1625
        %v1666 = vmul.f32 %v1346, %v1625
        %v1667 = vmul.f32 %v1347, %v1626
        %v1668 = vmul.f32 %v1348, %v1626
        %v1669 = vmul.f32 %v1349, %v1627
        %v1670 = vmul.f32 %v1350, %v1627
        %v1671 = vmul.f32 %v1351, %v1628
        %v1672 = vmul.f32 %v1352, %v1628
        %v1673 = vmul.f32 %v1353, %v1629
        %v1674 = vmul.f32 %v1354, %v1629
        %v1675 = vmul.f32 %v1355, %v1630
        %v1676 = vmul.f32 %v1356, %v1630
        %v1677 = vmul.f32 %v1357, %v1631
        %v1678 = vmul.f32 %v1358, %v1631
        %v1679 = vmul.f32 %v1359, %v1632
        %v1680 = vmul.f32 %v1360, %v1632
        %v1681 = vmul.f32 %v1361, %v1633
        %v1682 = vmul.f32 %v1362, %v1633
        %v1683 = vmul.f32 %v1363, %v1634
        %v1684 = vmul.f32 %v1364, %v1634
        %v1685 = vmul.f32 %v1365, %v1635
        %v1686 = vmul.f32 %v1366, %v1635
        %v1687 = vmul.f32 %v1367, %v1636
        %v1688 = vmul.f32 %v1368, %v1636
        %v1689 = vmul.f32 %v1369, %v1637
        %v1690 = vmul.f32 %v1370, %v1637
        %v1691 = vmul.f32 %v1371, %v1638
        %v1692 = vmul.f32 %v1372, %v1638
        %v1693 = vmul.f32 %v1373, %v1639
        %v1694 = vmul.f32 %v1374, %v1639
        %v1695 = vmul.f32 %v1375, %v1640
        %v1696 = vmul.f32 %v1376, %v1640
        %v1697 = vmul.f32 %v1377, %v1641
        %v1698 = vmul.f32 %v1378, %v1641
        %v1699 = vmul.f32 %v1379, %v1642
        %v1700 = vmul.f32 %v1380, %v1642
        %v1701 = vmul.f32 %v1381, %v1643
        %v1702 = vmul.f32 %v1382, %v1643
        %v1703 = vmul.f32 %v1383, %v1644
        %v1704 = vmul.f32 %v1384, %v1644
        %v1705 = vmul.f32 %v1385, %v1645
        %v1706 = vmul.f32 %v1386, %v1645
        %v1707 = vmul.f32 %v1387, %v1646
        %v1708 = vmul.f32 %v1388, %v1646
        %v1709 = vmul.f32 %v1389, %v1647
        %v1710 = vmul.f32 %v1390, %v1647
        %v1711 = vmul.f32 %v1391, %v1648
        %v1712 = vmul.f32 %v1392, %v1648
        %v1713 = vpack.c.bf16 %v1651, %v1649
        %v1714 = vpack.c.bf16 %v1652, %v1650
        %v1715 = vpack.c.bf16 %v1655, %v1653
        %v1716 = vpack.c.bf16 %v1656, %v1654
        %v1717 = vpack.c.bf16 %v1659, %v1657
        %v1718 = vpack.c.bf16 %v1660, %v1658
        %v1719 = vpack.c.bf16 %v1663, %v1661
        %v1720 = vpack.c.bf16 %v1664, %v1662
        %v1721 = vpack.c.bf16 %v1667, %v1665
        %v1722 = vpack.c.bf16 %v1668, %v1666
        %v1723 = vpack.c.bf16 %v1671, %v1669
        %v1724 = vpack.c.bf16 %v1672, %v1670
        %v1725 = vpack.c.bf16 %v1675, %v1673
        %v1726 = vpack.c.bf16 %v1676, %v1674
        %v1727 = vpack.c.bf16 %v1679, %v1677
        %v1728 = vpack.c.bf16 %v1680, %v1678
        %v1729 = vpack.c.bf16 %v1683, %v1681
        %v1730 = vpack.c.bf16 %v1684, %v1682
        %v1731 = vpack.c.bf16 %v1687, %v1685
        %v1732 = vpack.c.bf16 %v1688, %v1686
        %v1733 = vpack.c.bf16 %v1691, %v1689
        %v1734 = vpack.c.bf16 %v1692, %v1690
        %v1735 = vpack.c.bf16 %v1695, %v1693
        %v1736 = vpack.c.bf16 %v1696, %v1694
        %v1737 = vpack.c.bf16 %v1699, %v1697
        %v1738 = vpack.c.bf16 %v1700, %v1698
        %v1739 = vpack.c.bf16 %v1703, %v1701
        %v1740 = vpack.c.bf16 %v1704, %v1702
        %v1741 = vpack.c.bf16 %v1707, %v1705
        %v1742 = vpack.c.bf16 %v1708, %v1706
        %v1743 = vpack.c.bf16 %v1711, %v1709
        %v1744 = vpack.c.bf16 %v1712, %v1710
        %v1746 = vunpack.c.l.b16 %v1199
        %v1747 = vunpack.c.h.b16 %v1199
        %v1748 = vpack.c.b16 %v1746, %v1746
        %v1749 = vpack.c.b16 %v1747, %v1747
        %v1751 = vpack.i.b16 %v1748, %v1748
        %v1753 = vlaneseq
        %v1754 = vshrl.u32 %v1753, 7
        %v1755 = vsub.s32 0, %v1754
        %v1756 = vrot.slane %v1751, %v1755
        %v1758 = vpack.i.b16 %v1749, %v1749
        %v1760 = vlaneseq
        %v1761 = vshrl.u32 %v1760, 7
        %v1762 = vsub.s32 0, %v1761
        %v1763 = vrot.slane %v1758, %v1762
        %v1764 = vmul.bf16 %v1713, %v1756
        %v1765 = vmul.bf16 %v1714, %v1763
        %v1766 = vmul.bf16 %v1715, %v1756
        %v1767 = vmul.bf16 %v1716, %v1763
        %v1768 = vmul.bf16 %v1717, %v1756
        %v1769 = vmul.bf16 %v1718, %v1763
        %v1770 = vmul.bf16 %v1719, %v1756
        %v1771 = vmul.bf16 %v1720, %v1763
        %v1772 = vmul.bf16 %v1721, %v1756
        %v1773 = vmul.bf16 %v1722, %v1763
        %v1774 = vmul.bf16 %v1723, %v1756
        %v1775 = vmul.bf16 %v1724, %v1763
        %v1776 = vmul.bf16 %v1725, %v1756
        %v1777 = vmul.bf16 %v1726, %v1763
        %v1778 = vmul.bf16 %v1727, %v1756
        %v1779 = vmul.bf16 %v1728, %v1763
        %v1780 = vmul.bf16 %v1729, %v1756
        %v1781 = vmul.bf16 %v1730, %v1763
        %v1782 = vmul.bf16 %v1731, %v1756
        %v1783 = vmul.bf16 %v1732, %v1763
        %v1784 = vmul.bf16 %v1733, %v1756
        %v1785 = vmul.bf16 %v1734, %v1763
        %v1786 = vmul.bf16 %v1735, %v1756
        %v1787 = vmul.bf16 %v1736, %v1763
        %v1788 = vmul.bf16 %v1737, %v1756
        %v1789 = vmul.bf16 %v1738, %v1763
        %v1790 = vmul.bf16 %v1739, %v1756
        %v1791 = vmul.bf16 %v1740, %v1763
        %v1792 = vmul.bf16 %v1741, %v1756
        %v1793 = vmul.bf16 %v1742, %v1763
        %v1794 = vmul.bf16 %v1743, %v1756
        %v1795 = vmul.bf16 %v1744, %v1763
        %v1796 = vshrl.u32 %v1748, 16
        %v1797 = vpack.i.b16 %v1796, %v1796
        %v1799 = vlaneseq
        %v1800 = vshrl.u32 %v1799, 7
        %v1801 = vsub.s32 0, %v1800
        %v1802 = vrot.slane %v1797, %v1801
        %v1803 = vshrl.u32 %v1749, 16
        %v1804 = vpack.i.b16 %v1803, %v1803
        %v1806 = vlaneseq
        %v1807 = vshrl.u32 %v1806, 7
        %v1808 = vsub.s32 0, %v1807
        %v1809 = vrot.slane %v1804, %v1808
        %v1810 = vadd.bf16 %v1764, %v1802
        %v1811 = vadd.bf16 %v1765, %v1809
        %v1812 = vadd.bf16 %v1766, %v1802
        %v1813 = vadd.bf16 %v1767, %v1809
        %v1814 = vadd.bf16 %v1768, %v1802
        %v1815 = vadd.bf16 %v1769, %v1809
        %v1816 = vadd.bf16 %v1770, %v1802
        %v1817 = vadd.bf16 %v1771, %v1809
        %v1818 = vadd.bf16 %v1772, %v1802
        %v1819 = vadd.bf16 %v1773, %v1809
        %v1820 = vadd.bf16 %v1774, %v1802
        %v1821 = vadd.bf16 %v1775, %v1809
        %v1822 = vadd.bf16 %v1776, %v1802
        %v1823 = vadd.bf16 %v1777, %v1809
        %v1824 = vadd.bf16 %v1778, %v1802
        %v1825 = vadd.bf16 %v1779, %v1809
        %v1826 = vadd.bf16 %v1780, %v1802
        %v1827 = vadd.bf16 %v1781, %v1809
        %v1828 = vadd.bf16 %v1782, %v1802
        %v1829 = vadd.bf16 %v1783, %v1809
        %v1830 = vadd.bf16 %v1784, %v1802
        %v1831 = vadd.bf16 %v1785, %v1809
        %v1832 = vadd.bf16 %v1786, %v1802
        %v1833 = vadd.bf16 %v1787, %v1809
        %v1834 = vadd.bf16 %v1788, %v1802
        %v1835 = vadd.bf16 %v1789, %v1809
        %v1836 = vadd.bf16 %v1790, %v1802
        %v1837 = vadd.bf16 %v1791, %v1809
        %v1838 = vadd.bf16 %v1792, %v1802
        %v1839 = vadd.bf16 %v1793, %v1809
        %v1840 = vadd.bf16 %v1794, %v1802
        %v1841 = vadd.bf16 %v1795, %v1809
        %v1842 = vunpack.c.l.bf16 %v1810
        %v1843 = vunpack.c.l.bf16 %v1811
        %v1844 = vunpack.c.h.bf16 %v1810
        %v1845 = vunpack.c.h.bf16 %v1811
        %v1846 = vunpack.c.l.bf16 %v1812
        %v1847 = vunpack.c.l.bf16 %v1813
        %v1848 = vunpack.c.h.bf16 %v1812
        %v1849 = vunpack.c.h.bf16 %v1813
        %v1850 = vunpack.c.l.bf16 %v1814
        %v1851 = vunpack.c.l.bf16 %v1815
        %v1852 = vunpack.c.h.bf16 %v1814
        %v1853 = vunpack.c.h.bf16 %v1815
        %v1854 = vunpack.c.l.bf16 %v1816
        %v1855 = vunpack.c.l.bf16 %v1817
        %v1856 = vunpack.c.h.bf16 %v1816
        %v1857 = vunpack.c.h.bf16 %v1817
        %v1858 = vunpack.c.l.bf16 %v1818
        %v1859 = vunpack.c.l.bf16 %v1819
        %v1860 = vunpack.c.h.bf16 %v1818
        %v1861 = vunpack.c.h.bf16 %v1819
        %v1862 = vunpack.c.l.bf16 %v1820
        %v1863 = vunpack.c.l.bf16 %v1821
        %v1864 = vunpack.c.h.bf16 %v1820
        %v1865 = vunpack.c.h.bf16 %v1821
        %v1866 = vunpack.c.l.bf16 %v1822
        %v1867 = vunpack.c.l.bf16 %v1823
        %v1868 = vunpack.c.h.bf16 %v1822
        %v1869 = vunpack.c.h.bf16 %v1823
        %v1870 = vunpack.c.l.bf16 %v1824
        %v1871 = vunpack.c.l.bf16 %v1825
        %v1872 = vunpack.c.h.bf16 %v1824
        %v1873 = vunpack.c.h.bf16 %v1825
        %v1874 = vunpack.c.l.bf16 %v1826
        %v1875 = vunpack.c.l.bf16 %v1827
        %v1876 = vunpack.c.h.bf16 %v1826
        %v1877 = vunpack.c.h.bf16 %v1827
        %v1878 = vunpack.c.l.bf16 %v1828
        %v1879 = vunpack.c.l.bf16 %v1829
        %v1880 = vunpack.c.h.bf16 %v1828
        %v1881 = vunpack.c.h.bf16 %v1829
        %v1882 = vunpack.c.l.bf16 %v1830
        %v1883 = vunpack.c.l.bf16 %v1831
        %v1884 = vunpack.c.h.bf16 %v1830
        %v1885 = vunpack.c.h.bf16 %v1831
        %v1886 = vunpack.c.l.bf16 %v1832
        %v1887 = vunpack.c.l.bf16 %v1833
        %v1888 = vunpack.c.h.bf16 %v1832
        %v1889 = vunpack.c.h.bf16 %v1833
        %v1890 = vunpack.c.l.bf16 %v1834
        %v1891 = vunpack.c.l.bf16 %v1835
        %v1892 = vunpack.c.h.bf16 %v1834
        %v1893 = vunpack.c.h.bf16 %v1835
        %v1894 = vunpack.c.l.bf16 %v1836
        %v1895 = vunpack.c.l.bf16 %v1837
        %v1896 = vunpack.c.h.bf16 %v1836
        %v1897 = vunpack.c.h.bf16 %v1837
        %v1898 = vunpack.c.l.bf16 %v1838
        %v1899 = vunpack.c.l.bf16 %v1839
        %v1900 = vunpack.c.h.bf16 %v1838
        %v1901 = vunpack.c.h.bf16 %v1839
        %v1902 = vunpack.c.l.bf16 %v1840
        %v1903 = vunpack.c.l.bf16 %v1841
        %v1904 = vunpack.c.h.bf16 %v1840
        %v1905 = vunpack.c.h.bf16 %v1841
        %v1906 = vsub.f32 0.0, %v1842
        %v1907 = vsub.f32 0.0, %v1843
        %v1908 = vsub.f32 0.0, %v1844
        %v1909 = vsub.f32 0.0, %v1845
        %v1910 = vsub.f32 0.0, %v1846
        %v1911 = vsub.f32 0.0, %v1847
        %v1912 = vsub.f32 0.0, %v1848
        %v1913 = vsub.f32 0.0, %v1849
        %v1914 = vsub.f32 0.0, %v1850
        %v1915 = vsub.f32 0.0, %v1851
        %v1916 = vsub.f32 0.0, %v1852
        %v1917 = vsub.f32 0.0, %v1853
        %v1918 = vsub.f32 0.0, %v1854
        %v1919 = vsub.f32 0.0, %v1855
        %v1920 = vsub.f32 0.0, %v1856
        %v1921 = vsub.f32 0.0, %v1857
        %v1922 = vsub.f32 0.0, %v1858
        %v1923 = vsub.f32 0.0, %v1859
        %v1924 = vsub.f32 0.0, %v1860
        %v1925 = vsub.f32 0.0, %v1861
        %v1926 = vsub.f32 0.0, %v1862
        %v1927 = vsub.f32 0.0, %v1863
        %v1928 = vsub.f32 0.0, %v1864
        %v1929 = vsub.f32 0.0, %v1865
        %v1930 = vsub.f32 0.0, %v1866
        %v1931 = vsub.f32 0.0, %v1867
        %v1932 = vsub.f32 0.0, %v1868
        %v1933 = vsub.f32 0.0, %v1869
        %v1934 = vsub.f32 0.0, %v1870
        %v1935 = vsub.f32 0.0, %v1871
        %v1936 = vsub.f32 0.0, %v1872
        %v1937 = vsub.f32 0.0, %v1873
        %v1938 = vsub.f32 0.0, %v1874
        %v1939 = vsub.f32 0.0, %v1875
        %v1940 = vsub.f32 0.0, %v1876
        %v1941 = vsub.f32 0.0, %v1877
        %v1942 = vsub.f32 0.0, %v1878
        %v1943 = vsub.f32 0.0, %v1879
        %v1944 = vsub.f32 0.0, %v1880
        %v1945 = vsub.f32 0.0, %v1881
        %v1946 = vsub.f32 0.0, %v1882
        %v1947 = vsub.f32 0.0, %v1883
        %v1948 = vsub.f32 0.0, %v1884
        %v1949 = vsub.f32 0.0, %v1885
        %v1950 = vsub.f32 0.0, %v1886
        %v1951 = vsub.f32 0.0, %v1887
        %v1952 = vsub.f32 0.0, %v1888
        %v1953 = vsub.f32 0.0, %v1889
        %v1954 = vsub.f32 0.0, %v1890
        %v1955 = vsub.f32 0.0, %v1891
        %v1956 = vsub.f32 0.0, %v1892
        %v1957 = vsub.f32 0.0, %v1893
        %v1958 = vsub.f32 0.0, %v1894
        %v1959 = vsub.f32 0.0, %v1895
        %v1960 = vsub.f32 0.0, %v1896
        %v1961 = vsub.f32 0.0, %v1897
        %v1962 = vsub.f32 0.0, %v1898
        %v1963 = vsub.f32 0.0, %v1899
        %v1964 = vsub.f32 0.0, %v1900
        %v1965 = vsub.f32 0.0, %v1901
        %v1966 = vsub.f32 0.0, %v1902
        %v1967 = vsub.f32 0.0, %v1903
        %v1968 = vsub.f32 0.0, %v1904
        %v1969 = vsub.f32 0.0, %v1905
        %v1970 = vmul.f32 %v1906, 1.442695
        %v1971 = vpow.pop %v1970
        %v1972 = vmul.f32 %v1907, 1.442695
        %v1973 = vpow.pop %v1972
        %v1974 = vmul.f32 %v1908, 1.442695
        %v1975 = vpow.pop %v1974
        %v1976 = vmul.f32 %v1909, 1.442695
        %v1977 = vpow.pop %v1976
        %v1978 = vmul.f32 %v1910, 1.442695
        %v1979 = vpow.pop %v1978
        %v1980 = vmul.f32 %v1911, 1.442695
        %v1981 = vpow.pop %v1980
        %v1982 = vmul.f32 %v1912, 1.442695
        %v1983 = vpow.pop %v1982
        %v1984 = vmul.f32 %v1913, 1.442695
        %v1985 = vpow.pop %v1984
        %v1986 = vmul.f32 %v1914, 1.442695
        %v1987 = vpow.pop %v1986
        %v1988 = vmul.f32 %v1915, 1.442695
        %v1989 = vpow.pop %v1988
        %v1990 = vmul.f32 %v1916, 1.442695
        %v1991 = vpow.pop %v1990
        %v1992 = vmul.f32 %v1917, 1.442695
        %v1993 = vpow.pop %v1992
        %v1994 = vmul.f32 %v1918, 1.442695
        %v1995 = vpow.pop %v1994
        %v1996 = vmul.f32 %v1919, 1.442695
        %v1997 = vpow.pop %v1996
        %v1998 = vmul.f32 %v1920, 1.442695
        %v1999 = vpow.pop %v1998
        %v2000 = vmul.f32 %v1921, 1.442695
        %v2001 = vpow.pop %v2000
        %v2002 = vmul.f32 %v1922, 1.442695
        %v2003 = vpow.pop %v2002
        %v2004 = vmul.f32 %v1923, 1.442695
        %v2005 = vpow.pop %v2004
        %v2006 = vmul.f32 %v1924, 1.442695
        %v2007 = vpow.pop %v2006
        %v2008 = vmul.f32 %v1925, 1.442695
        %v2009 = vpow.pop %v2008
        %v2010 = vmul.f32 %v1926, 1.442695
        %v2011 = vpow.pop %v2010
        %v2012 = vmul.f32 %v1927, 1.442695
        %v2013 = vpow.pop %v2012
        %v2014 = vmul.f32 %v1928, 1.442695
        %v2015 = vpow.pop %v2014
        %v2016 = vmul.f32 %v1929, 1.442695
        %v2017 = vpow.pop %v2016
        %v2018 = vmul.f32 %v1930, 1.442695
        %v2019 = vpow.pop %v2018
        %v2020 = vmul.f32 %v1931, 1.442695
        %v2021 = vpow.pop %v2020
        %v2022 = vmul.f32 %v1932, 1.442695
        %v2023 = vpow.pop %v2022
        %v2024 = vmul.f32 %v1933, 1.442695
        %v2025 = vpow.pop %v2024
        %v2026 = vmul.f32 %v1934, 1.442695
        %v2027 = vpow.pop %v2026
        %v2028 = vmul.f32 %v1935, 1.442695
        %v2029 = vpow.pop %v2028
        %v2030 = vmul.f32 %v1936, 1.442695
        %v2031 = vpow.pop %v2030
        %v2032 = vmul.f32 %v1937, 1.442695
        %v2033 = vpow.pop %v2032
        %v2034 = vmul.f32 %v1938, 1.442695
        %v2035 = vpow.pop %v2034
        %v2036 = vmul.f32 %v1939, 1.442695
        %v2037 = vpow.pop %v2036
        %v2038 = vmul.f32 %v1940, 1.442695
        %v2039 = vpow.pop %v2038
        %v2040 = vmul.f32 %v1941, 1.442695
        %v2041 = vpow.pop %v2040
        %v2042 = vmul.f32 %v1942, 1.442695
        %v2043 = vpow.pop %v2042
        %v2044 = vmul.f32 %v1943, 1.442695
        %v2045 = vpow.pop %v2044
        %v2046 = vmul.f32 %v1944, 1.442695
        %v2047 = vpow.pop %v2046
        %v2048 = vmul.f32 %v1945, 1.442695
        %v2049 = vpow.pop %v2048
        %v2050 = vmul.f32 %v1946, 1.442695
        %v2051 = vpow.pop %v2050
        %v2052 = vmul.f32 %v1947, 1.442695
        %v2053 = vpow.pop %v2052
        %v2054 = vmul.f32 %v1948, 1.442695
        %v2055 = vpow.pop %v2054
        %v2056 = vmul.f32 %v1949, 1.442695
        %v2057 = vpow.pop %v2056
        %v2058 = vmul.f32 %v1950, 1.442695
        %v2059 = vpow.pop %v2058
        %v2060 = vmul.f32 %v1951, 1.442695
        %v2061 = vpow.pop %v2060
        %v2062 = vmul.f32 %v1952, 1.442695
        %v2063 = vpow.pop %v2062
        %v2064 = vmul.f32 %v1953, 1.442695
        %v2065 = vpow.pop %v2064
        %v2066 = vmul.f32 %v1954, 1.442695
        %v2067 = vpow.pop %v2066
        %v2068 = vmul.f32 %v1955, 1.442695
        %v2069 = vpow.pop %v2068
        %v2070 = vmul.f32 %v1956, 1.442695
        %v2071 = vpow.pop %v2070
        %v2072 = vmul.f32 %v1957, 1.442695
        %v2073 = vpow.pop %v2072
        %v2074 = vmul.f32 %v1958, 1.442695
        %v2075 = vpow.pop %v2074
        %v2076 = vmul.f32 %v1959, 1.442695
        %v2077 = vpow.pop %v2076
        %v2078 = vmul.f32 %v1960, 1.442695
        %v2079 = vpow.pop %v2078
        %v2080 = vmul.f32 %v1961, 1.442695
        %v2081 = vpow.pop %v2080
        %v2082 = vmul.f32 %v1962, 1.442695
        %v2083 = vpow.pop %v2082
        %v2084 = vmul.f32 %v1963, 1.442695
        %v2085 = vpow.pop %v2084
        %v2086 = vmul.f32 %v1964, 1.442695
        %v2087 = vpow.pop %v2086
        %v2088 = vmul.f32 %v1965, 1.442695
        %v2089 = vpow.pop %v2088
        %v2090 = vmul.f32 %v1966, 1.442695
        %v2091 = vpow.pop %v2090
        %v2092 = vmul.f32 %v1967, 1.442695
        %v2093 = vpow.pop %v2092
        %v2094 = vmul.f32 %v1968, 1.442695
        %v2095 = vpow.pop %v2094
        %v2096 = vmul.f32 %v1969, 1.442695
        %v2097 = vpow.pop %v2096
        %v2098 = vadd.f32 %v1971, 1.0
        %v2099 = vadd.f32 %v1973, 1.0
        %v2100 = vadd.f32 %v1975, 1.0
        %v2101 = vadd.f32 %v1977, 1.0
        %v2102 = vadd.f32 %v1979, 1.0
        %v2103 = vadd.f32 %v1981, 1.0
        %v2104 = vadd.f32 %v1983, 1.0
        %v2105 = vadd.f32 %v1985, 1.0
        %v2106 = vadd.f32 %v1987, 1.0
        %v2107 = vadd.f32 %v1989, 1.0
        %v2108 = vadd.f32 %v1991, 1.0
        %v2109 = vadd.f32 %v1993, 1.0
        %v2110 = vadd.f32 %v1995, 1.0
        %v2111 = vadd.f32 %v1997, 1.0
        %v2112 = vadd.f32 %v1999, 1.0
        %v2113 = vadd.f32 %v2001, 1.0
        %v2114 = vadd.f32 %v2003, 1.0
        %v2115 = vadd.f32 %v2005, 1.0
        %v2116 = vadd.f32 %v2007, 1.0
        %v2117 = vadd.f32 %v2009, 1.0
        %v2118 = vadd.f32 %v2011, 1.0
        %v2119 = vadd.f32 %v2013, 1.0
        %v2120 = vadd.f32 %v2015, 1.0
        %v2121 = vadd.f32 %v2017, 1.0
        %v2122 = vadd.f32 %v2019, 1.0
        %v2123 = vadd.f32 %v2021, 1.0
        %v2124 = vadd.f32 %v2023, 1.0
        %v2125 = vadd.f32 %v2025, 1.0
        %v2126 = vadd.f32 %v2027, 1.0
        %v2127 = vadd.f32 %v2029, 1.0
        %v2128 = vadd.f32 %v2031, 1.0
        %v2129 = vadd.f32 %v2033, 1.0
        %v2130 = vadd.f32 %v2035, 1.0
        %v2131 = vadd.f32 %v2037, 1.0
        %v2132 = vadd.f32 %v2039, 1.0
        %v2133 = vadd.f32 %v2041, 1.0
        %v2134 = vadd.f32 %v2043, 1.0
        %v2135 = vadd.f32 %v2045, 1.0
        %v2136 = vadd.f32 %v2047, 1.0
        %v2137 = vadd.f32 %v2049, 1.0
        %v2138 = vadd.f32 %v2051, 1.0
        %v2139 = vadd.f32 %v2053, 1.0
        %v2140 = vadd.f32 %v2055, 1.0
        %v2141 = vadd.f32 %v2057, 1.0
        %v2142 = vadd.f32 %v2059, 1.0
        %v2143 = vadd.f32 %v2061, 1.0
        %v2144 = vadd.f32 %v2063, 1.0
        %v2145 = vadd.f32 %v2065, 1.0
        %v2146 = vadd.f32 %v2067, 1.0
        %v2147 = vadd.f32 %v2069, 1.0
        %v2148 = vadd.f32 %v2071, 1.0
        %v2149 = vadd.f32 %v2073, 1.0
        %v2150 = vadd.f32 %v2075, 1.0
        %v2151 = vadd.f32 %v2077, 1.0
        %v2152 = vadd.f32 %v2079, 1.0
        %v2153 = vadd.f32 %v2081, 1.0
        %v2154 = vadd.f32 %v2083, 1.0
        %v2155 = vadd.f32 %v2085, 1.0
        %v2156 = vadd.f32 %v2087, 1.0
        %v2157 = vadd.f32 %v2089, 1.0
        %v2158 = vadd.f32 %v2091, 1.0
        %v2159 = vadd.f32 %v2093, 1.0
        %v2160 = vadd.f32 %v2095, 1.0
        %v2161 = vadd.f32 %v2097, 1.0
        %v2162 = vrcp.pop %v2098
        %v2163 = vrcp.pop %v2099
        %v2164 = vrcp.pop %v2100
        %v2165 = vrcp.pop %v2101
        %v2166 = vrcp.pop %v2102
        %v2167 = vrcp.pop %v2103
        %v2168 = vrcp.pop %v2104
        %v2169 = vrcp.pop %v2105
        %v2170 = vrcp.pop %v2106
        %v2171 = vrcp.pop %v2107
        %v2172 = vrcp.pop %v2108
        %v2173 = vrcp.pop %v2109
        %v2174 = vrcp.pop %v2110
        %v2175 = vrcp.pop %v2111
        %v2176 = vrcp.pop %v2112
        %v2177 = vrcp.pop %v2113
        %v2178 = vrcp.pop %v2114
        %v2179 = vrcp.pop %v2115
        %v2180 = vrcp.pop %v2116
        %v2181 = vrcp.pop %v2117
        %v2182 = vrcp.pop %v2118
        %v2183 = vrcp.pop %v2119
        %v2184 = vrcp.pop %v2120
        %v2185 = vrcp.pop %v2121
        %v2186 = vrcp.pop %v2122
        %v2187 = vrcp.pop %v2123
        %v2188 = vrcp.pop %v2124
        %v2189 = vrcp.pop %v2125
        %v2190 = vrcp.pop %v2126
        %v2191 = vrcp.pop %v2127
        %v2192 = vrcp.pop %v2128
        %v2193 = vrcp.pop %v2129
        %v2194 = vrcp.pop %v2130
        %v2195 = vrcp.pop %v2131
        %v2196 = vrcp.pop %v2132
        %v2197 = vrcp.pop %v2133
        %v2198 = vrcp.pop %v2134
        %v2199 = vrcp.pop %v2135
        %v2200 = vrcp.pop %v2136
        %v2201 = vrcp.pop %v2137
        %v2202 = vrcp.pop %v2138
        %v2203 = vrcp.pop %v2139
        %v2204 = vrcp.pop %v2140
        %v2205 = vrcp.pop %v2141
        %v2206 = vrcp.pop %v2142
        %v2207 = vrcp.pop %v2143
        %v2208 = vrcp.pop %v2144
        %v2209 = vrcp.pop %v2145
        %v2210 = vrcp.pop %v2146
        %v2211 = vrcp.pop %v2147
        %v2212 = vrcp.pop %v2148
        %v2213 = vrcp.pop %v2149
        %v2214 = vrcp.pop %v2150
        %v2215 = vrcp.pop %v2151
        %v2216 = vrcp.pop %v2152
        %v2217 = vrcp.pop %v2153
        %v2218 = vrcp.pop %v2154
        %v2219 = vrcp.pop %v2155
        %v2220 = vrcp.pop %v2156
        %v2221 = vrcp.pop %v2157
        %v2222 = vrcp.pop %v2158
        %v2223 = vrcp.pop %v2159
        %v2224 = vrcp.pop %v2160
        %v2225 = vrcp.pop %v2161
        %v2226 = vpack.c.bf16 %v2164, %v2162
        %v2227 = vpack.c.bf16 %v2165, %v2163
        %v2228 = vpack.c.bf16 %v2168, %v2166
        %v2229 = vpack.c.bf16 %v2169, %v2167
        %v2230 = vpack.c.bf16 %v2172, %v2170
        %v2231 = vpack.c.bf16 %v2173, %v2171
        %v2232 = vpack.c.bf16 %v2176, %v2174
        %v2233 = vpack.c.bf16 %v2177, %v2175
        %v2234 = vpack.c.bf16 %v2180, %v2178
        %v2235 = vpack.c.bf16 %v2181, %v2179
        %v2236 = vpack.c.bf16 %v2184, %v2182
        %v2237 = vpack.c.bf16 %v2185, %v2183
        %v2238 = vpack.c.bf16 %v2188, %v2186
        %v2239 = vpack.c.bf16 %v2189, %v2187
        %v2240 = vpack.c.bf16 %v2192, %v2190
        %v2241 = vpack.c.bf16 %v2193, %v2191
        %v2242 = vpack.c.bf16 %v2196, %v2194
        %v2243 = vpack.c.bf16 %v2197, %v2195
        %v2244 = vpack.c.bf16 %v2200, %v2198
        %v2245 = vpack.c.bf16 %v2201, %v2199
        %v2246 = vpack.c.bf16 %v2204, %v2202
        %v2247 = vpack.c.bf16 %v2205, %v2203
        %v2248 = vpack.c.bf16 %v2208, %v2206
        %v2249 = vpack.c.bf16 %v2209, %v2207
        %v2250 = vpack.c.bf16 %v2212, %v2210
        %v2251 = vpack.c.bf16 %v2213, %v2211
        %v2252 = vpack.c.bf16 %v2216, %v2214
        %v2253 = vpack.c.bf16 %v2217, %v2215
        %v2254 = vpack.c.bf16 %v2220, %v2218
        %v2255 = vpack.c.bf16 %v2221, %v2219
        %v2256 = vpack.c.bf16 %v2224, %v2222
        %v2257 = vpack.c.bf16 %v2225, %v2223
        %v2258 = vmul.bf16 %v1810, %v2226
        %v2259 = vmul.bf16 %v1811, %v2227
        %v2260 = vmul.bf16 %v1812, %v2228
        %v2261 = vmul.bf16 %v1813, %v2229
        %v2262 = vmul.bf16 %v1814, %v2230
        %v2263 = vmul.bf16 %v1815, %v2231
        %v2264 = vmul.bf16 %v1816, %v2232
        %v2265 = vmul.bf16 %v1817, %v2233
        %v2266 = vmul.bf16 %v1818, %v2234
        %v2267 = vmul.bf16 %v1819, %v2235
        %v2268 = vmul.bf16 %v1820, %v2236
        %v2269 = vmul.bf16 %v1821, %v2237
        %v2270 = vmul.bf16 %v1822, %v2238
        %v2271 = vmul.bf16 %v1823, %v2239
        %v2272 = vmul.bf16 %v1824, %v2240
        %v2273 = vmul.bf16 %v1825, %v2241
        %v2274 = vmul.bf16 %v1826, %v2242
        %v2275 = vmul.bf16 %v1827, %v2243
        %v2276 = vmul.bf16 %v1828, %v2244
        %v2277 = vmul.bf16 %v1829, %v2245
        %v2278 = vmul.bf16 %v1830, %v2246
        %v2279 = vmul.bf16 %v1831, %v2247
        %v2280 = vmul.bf16 %v1832, %v2248
        %v2281 = vmul.bf16 %v1833, %v2249
        %v2282 = vmul.bf16 %v1834, %v2250
        %v2283 = vmul.bf16 %v1835, %v2251
        %v2284 = vmul.bf16 %v1836, %v2252
        %v2285 = vmul.bf16 %v1837, %v2253
        %v2286 = vmul.bf16 %v1838, %v2254
        %v2287 = vmul.bf16 %v1839, %v2255
        %v2288 = vmul.bf16 %v1840, %v2256
        %v2289 = vmul.bf16 %v1841, %v2257
        %v2290 = vld [vmem:[%s4] sm:$0xff]
        %v2291 = vld [vmem:[%s4 + $0x8] sm:$0xff]
        %v2292 = vld [vmem:[%s4 + $0x10] sm:$0xff]
        %v2293 = vld [vmem:[%s4 + $0x18] sm:$0xff]
        %v2294 = vld [vmem:[%s4 + $0x20] sm:$0xff]
        %v2295 = vld [vmem:[%s4 + $0x28] sm:$0xff]
        %v2296 = vld [vmem:[%s4 + $0x30] sm:$0xff]
        %v2297 = vld [vmem:[%s4 + $0x38] sm:$0xff]
        %v2298 = vld [vmem:[%s4 + $0x40] sm:$0xff]
        %v2299 = vld [vmem:[%s4 + $0x48] sm:$0xff]
        %v2300 = vld [vmem:[%s4 + $0x50] sm:$0xff]
        %v2301 = vld [vmem:[%s4 + $0x58] sm:$0xff]
        %v2302 = vld [vmem:[%s4 + $0x60] sm:$0xff]
        %v2303 = vld [vmem:[%s4 + $0x68] sm:$0xff]
        %v2304 = vld [vmem:[%s4 + $0x70] sm:$0xff]
        %v2305 = vld [vmem:[%s4 + $0x78] sm:$0xff]
        %v2306 = vld [vmem:[%s4 + $0x80] sm:$0xff]
        %v2307 = vld [vmem:[%s4 + $0x88] sm:$0xff]
        %v2308 = vld [vmem:[%s4 + $0x90] sm:$0xff]
        %v2309 = vld [vmem:[%s4 + $0x98] sm:$0xff]
        %v2310 = vld [vmem:[%s4 + $0xa0] sm:$0xff]
        %v2311 = vld [vmem:[%s4 + $0xa8] sm:$0xff]
        %v2312 = vld [vmem:[%s4 + $0xb0] sm:$0xff]
        %v2313 = vld [vmem:[%s4 + $0xb8] sm:$0xff]
        %v2314 = vld [vmem:[%s4 + $0xc0] sm:$0xff]
        %v2315 = vld [vmem:[%s4 + $0xc8] sm:$0xff]
        %v2316 = vld [vmem:[%s4 + $0xd0] sm:$0xff]
        %v2317 = vld [vmem:[%s4 + $0xd8] sm:$0xff]
        %v2318 = vld [vmem:[%s4 + $0xe0] sm:$0xff]
        %v2319 = vld [vmem:[%s4 + $0xe8] sm:$0xff]
        %v2320 = vld [vmem:[%s4 + $0xf0] sm:$0xff]
        %v2321 = vld [vmem:[%s4 + $0xf8] sm:$0xff]
        %s2322 = scalar_lea.vmem %s6, 1
        %v2323 = vld [vmem:[%s2322] ss:$4 sm:$0x3]
        %v2325 = vlaneseq
        %v2326 = vshrl.u32 %v2325, 7
        %v2327 = vsub.s32 0, %v2326
        %v2328 = vrot.slane %v2323, %v2327
        %v2329 = vlaneseq
        %v2330 = vshrl.u32 %v2329, 7
        %v2331 = vsub.s32 1, %v2330
        %v2332 = vrot.slane %v2323, %v2331
        %v2367 = vunpack.c.l.b16 %v2290
        %v2368 = vunpack.c.h.b16 %v2290
        %v2369 = vunpack.c.l.b16 %v2291
        %v2370 = vunpack.c.h.b16 %v2291
        %v2371 = vunpack.c.l.b16 %v2292
        %v2372 = vunpack.c.h.b16 %v2292
        %v2373 = vunpack.c.l.b16 %v2293
        %v2374 = vunpack.c.h.b16 %v2293
        %v2375 = vunpack.c.l.b16 %v2294
        %v2376 = vunpack.c.h.b16 %v2294
        %v2377 = vunpack.c.l.b16 %v2295
        %v2378 = vunpack.c.h.b16 %v2295
        %v2379 = vunpack.c.l.b16 %v2296
        %v2380 = vunpack.c.h.b16 %v2296
        %v2381 = vunpack.c.l.b16 %v2297
        %v2382 = vunpack.c.h.b16 %v2297
        %v2383 = vunpack.c.l.b16 %v2298
        %v2384 = vunpack.c.h.b16 %v2298
        %v2385 = vunpack.c.l.b16 %v2299
        %v2386 = vunpack.c.h.b16 %v2299
        %v2387 = vunpack.c.l.b16 %v2300
        %v2388 = vunpack.c.h.b16 %v2300
        %v2389 = vunpack.c.l.b16 %v2301
        %v2390 = vunpack.c.h.b16 %v2301
        %v2391 = vunpack.c.l.b16 %v2302
        %v2392 = vunpack.c.h.b16 %v2302
        %v2393 = vunpack.c.l.b16 %v2303
        %v2394 = vunpack.c.h.b16 %v2303
        %v2395 = vunpack.c.l.b16 %v2304
        %v2396 = vunpack.c.h.b16 %v2304
        %v2397 = vunpack.c.l.b16 %v2305
        %v2398 = vunpack.c.h.b16 %v2305
        %v2399 = vunpack.c.l.b16 %v2306
        %v2400 = vunpack.c.h.b16 %v2306
        %v2401 = vunpack.c.l.b16 %v2307
        %v2402 = vunpack.c.h.b16 %v2307
        %v2403 = vunpack.c.l.b16 %v2308
        %v2404 = vunpack.c.h.b16 %v2308
        %v2405 = vunpack.c.l.b16 %v2309
        %v2406 = vunpack.c.h.b16 %v2309
        %v2407 = vunpack.c.l.b16 %v2310
        %v2408 = vunpack.c.h.b16 %v2310
        %v2409 = vunpack.c.l.b16 %v2311
        %v2410 = vunpack.c.h.b16 %v2311
        %v2411 = vunpack.c.l.b16 %v2312
        %v2412 = vunpack.c.h.b16 %v2312
        %v2413 = vunpack.c.l.b16 %v2313
        %v2414 = vunpack.c.h.b16 %v2313
        %v2415 = vunpack.c.l.b16 %v2314
        %v2416 = vunpack.c.h.b16 %v2314
        %v2417 = vunpack.c.l.b16 %v2315
        %v2418 = vunpack.c.h.b16 %v2315
        %v2419 = vunpack.c.l.b16 %v2316
        %v2420 = vunpack.c.h.b16 %v2316
        %v2421 = vunpack.c.l.b16 %v2317
        %v2422 = vunpack.c.h.b16 %v2317
        %v2423 = vunpack.c.l.b16 %v2318
        %v2424 = vunpack.c.h.b16 %v2318
        %v2425 = vunpack.c.l.b16 %v2319
        %v2426 = vunpack.c.h.b16 %v2319
        %v2427 = vunpack.c.l.b16 %v2320
        %v2428 = vunpack.c.h.b16 %v2320
        %v2429 = vunpack.c.l.b16 %v2321
        %v2430 = vunpack.c.h.b16 %v2321
        %v2431 = vpack.c.b16 %v2369, %v2367
        %v2432 = vpack.c.b16 %v2370, %v2368
        %v2433 = vpack.c.b16 %v2373, %v2371
        %v2434 = vpack.c.b16 %v2374, %v2372
        %v2435 = vpack.c.b16 %v2377, %v2375
        %v2436 = vpack.c.b16 %v2378, %v2376
        %v2437 = vpack.c.b16 %v2381, %v2379
        %v2438 = vpack.c.b16 %v2382, %v2380
        %v2439 = vpack.c.b16 %v2385, %v2383
        %v2440 = vpack.c.b16 %v2386, %v2384
        %v2441 = vpack.c.b16 %v2389, %v2387
        %v2442 = vpack.c.b16 %v2390, %v2388
        %v2443 = vpack.c.b16 %v2393, %v2391
        %v2444 = vpack.c.b16 %v2394, %v2392
        %v2445 = vpack.c.b16 %v2397, %v2395
        %v2446 = vpack.c.b16 %v2398, %v2396
        %v2447 = vpack.c.b16 %v2401, %v2399
        %v2448 = vpack.c.b16 %v2402, %v2400
        %v2449 = vpack.c.b16 %v2405, %v2403
        %v2450 = vpack.c.b16 %v2406, %v2404
        %v2451 = vpack.c.b16 %v2409, %v2407
        %v2452 = vpack.c.b16 %v2410, %v2408
        %v2453 = vpack.c.b16 %v2413, %v2411
        %v2454 = vpack.c.b16 %v2414, %v2412
        %v2455 = vpack.c.b16 %v2417, %v2415
        %v2456 = vpack.c.b16 %v2418, %v2416
        %v2457 = vpack.c.b16 %v2421, %v2419
        %v2458 = vpack.c.b16 %v2422, %v2420
        %v2459 = vpack.c.b16 %v2425, %v2423
        %v2460 = vpack.c.b16 %v2426, %v2424
        %v2461 = vpack.c.b16 %v2429, %v2427
        %v2462 = vpack.c.b16 %v2430, %v2428
        %2495 = vmatprep.subr.bf16.mxu0 %v2432
        %2496 = vmatpush1.bf16.msra.mxu0 %v2431
        %2497 = vmatprep.subr.bf16.mxu0 %v2434
        %2498 = vmatpush1.bf16.msra.mxu0 %v2433
        %2499 = vmatprep.subr.bf16.mxu0 %v2436
        %2500 = vmatpush1.bf16.msra.mxu0 %v2435
        %2501 = vmatprep.subr.bf16.mxu0 %v2438
        %2502 = vmatpush1.bf16.msra.mxu0 %v2437
        %2503 = vmatprep.subr.bf16.mxu0 %v2440
        %2504 = vmatpush1.bf16.msra.mxu0 %v2439
        %2505 = vmatprep.subr.bf16.mxu0 %v2442
        %2506 = vmatpush1.bf16.msra.mxu0 %v2441
        %2507 = vmatprep.subr.bf16.mxu0 %v2444
        %2508 = vmatpush1.bf16.msra.mxu0 %v2443
        %2509 = vmatprep.subr.bf16.mxu0 %v2446
        %2510 = vmatpush1.bf16.msra.mxu0 %v2445
        %2511 = vmatprep.subr.bf16.mxu0 %v2448
        %2512 = vmatpush1.bf16.msra.mxu0 %v2447
        %2513 = vmatprep.subr.bf16.mxu0 %v2450
        %2514 = vmatpush1.bf16.msra.mxu0 %v2449
        %2515 = vmatprep.subr.bf16.mxu0 %v2452
        %2516 = vmatpush1.bf16.msra.mxu0 %v2451
        %2517 = vmatprep.subr.bf16.mxu0 %v2454
        %2518 = vmatpush1.bf16.msra.mxu0 %v2453
        %2519 = vmatprep.subr.bf16.mxu0 %v2456
        %2520 = vmatpush1.bf16.msra.mxu0 %v2455
        %2521 = vmatprep.subr.bf16.mxu0 %v2458
        %2522 = vmatpush1.bf16.msra.mxu0 %v2457
        %2523 = vmatprep.subr.bf16.mxu0 %v2460
        %2524 = vmatpush1.bf16.msra.mxu0 %v2459
        %2525 = vmatprep.subr.bf16.mxu0 %v2462
        %2526 = vmatpush1.bf16.msra.mxu0 %v2461
        %2527 = vmatprep.mubr.bf16.mxu0 %v2259
        %2528 = vmatmul.mubr.bf16.gmra.mrb[0].mxu0 %v2258
        %v2529 = vpop.f32.mrb[0].mxu0
        %v2530 = vadd.f32 %v2328, %v2529
        %v2531 = vpop.f32.mrb[0].mxu0
        %v2532 = vadd.f32 %v2332, %v2531
        %v2533 = vpop.f32.mrb[0].mxu0
        %v2534 = vadd.f32 %v2328, %v2533
        %v2535 = vpop.f32.mrb[0].mxu0
        %v2536 = vadd.f32 %v2332, %v2535
        %2537 = vmatprep.mubr.bf16.mxu0 %v2261
        %2538 = vmatmul.mubr.bf16.gmra.mrb[0].mxu0 %v2260
        %v2539 = vpop.f32.mrb[0].mxu0
        %v2540 = vadd.f32 %v2328, %v2539
        %v2541 = vpop.f32.mrb[0].mxu0
        %v2542 = vadd.f32 %v2332, %v2541
        %v2543 = vpop.f32.mrb[0].mxu0
        %v2544 = vadd.f32 %v2328, %v2543
        %v2545 = vpop.f32.mrb[0].mxu0
        %v2546 = vadd.f32 %v2332, %v2545
        %2547 = vmatprep.mubr.bf16.mxu0 %v2263
        %2548 = vmatmul.mubr.bf16.gmra.mrb[0].mxu0 %v2262
        %v2549 = vpop.f32.mrb[0].mxu0
        %v2550 = vadd.f32 %v2328, %v2549
        %v2551 = vpop.f32.mrb[0].mxu0
        %v2552 = vadd.f32 %v2332, %v2551
        %v2553 = vpop.f32.mrb[0].mxu0
        %v2554 = vadd.f32 %v2328, %v2553
        %v2555 = vpop.f32.mrb[0].mxu0
        %v2556 = vadd.f32 %v2332, %v2555
        %2557 = vmatprep.mubr.bf16.mxu0 %v2265
        %2558 = vmatmul.mubr.bf16.gmra.mrb[0].mxu0 %v2264
        %v2559 = vpop.f32.mrb[0].mxu0
        %v2560 = vadd.f32 %v2328, %v2559
        %v2561 = vpop.f32.mrb[0].mxu0
        %v2562 = vadd.f32 %v2332, %v2561
        %v2563 = vpop.f32.mrb[0].mxu0
        %v2564 = vadd.f32 %v2328, %v2563
        %v2565 = vpop.f32.mrb[0].mxu0
        %v2566 = vadd.f32 %v2332, %v2565
        %2567 = vmatprep.mubr.bf16.mxu0 %v2267
        %2568 = vmatmul.mubr.bf16.gmra.mrb[0].mxu0 %v2266
        %v2569 = vpop.f32.mrb[0].mxu0
        %v2570 = vadd.f32 %v2328, %v2569
        %v2571 = vpop.f32.mrb[0].mxu0
        %v2572 = vadd.f32 %v2332, %v2571
        %v2573 = vpop.f32.mrb[0].mxu0
        %v2574 = vadd.f32 %v2328, %v2573
        %v2575 = vpop.f32.mrb[0].mxu0
        %v2576 = vadd.f32 %v2332, %v2575
        %2577 = vmatprep.mubr.bf16.mxu0 %v2269
        %2578 = vmatmul.mubr.bf16.gmra.mrb[0].mxu0 %v2268
        %v2579 = vpop.f32.mrb[0].mxu0
        %v2580 = vadd.f32 %v2328, %v2579
        %v2581 = vpop.f32.mrb[0].mxu0
        %v2582 = vadd.f32 %v2332, %v2581
        %v2583 = vpop.f32.mrb[0].mxu0
        %v2584 = vadd.f32 %v2328, %v2583
        %v2585 = vpop.f32.mrb[0].mxu0
        %v2586 = vadd.f32 %v2332, %v2585
        %2587 = vmatprep.mubr.bf16.mxu0 %v2271
        %2588 = vmatmul.mubr.bf16.gmra.mrb[0].mxu0 %v2270
        %v2589 = vpop.f32.mrb[0].mxu0
        %v2590 = vadd.f32 %v2328, %v2589
        %v2591 = vpop.f32.mrb[0].mxu0
        %v2592 = vadd.f32 %v2332, %v2591
        %v2593 = vpop.f32.mrb[0].mxu0
        %v2594 = vadd.f32 %v2328, %v2593
        %v2595 = vpop.f32.mrb[0].mxu0
        %v2596 = vadd.f32 %v2332, %v2595
        %2597 = vmatprep.mubr.bf16.mxu0 %v2273
        %2598 = vmatmul.mubr.bf16.gmra.mrb[0].mxu0 %v2272
        %v2599 = vpop.f32.mrb[0].mxu0
        %v2600 = vadd.f32 %v2328, %v2599
        %v2601 = vpop.f32.mrb[0].mxu0
        %v2602 = vadd.f32 %v2332, %v2601
        %v2603 = vpop.f32.mrb[0].mxu0
        %v2604 = vadd.f32 %v2328, %v2603
        %v2605 = vpop.f32.mrb[0].mxu0
        %v2606 = vadd.f32 %v2332, %v2605
        %2607 = vmatprep.mubr.bf16.mxu0 %v2275
        %2608 = vmatmul.mubr.bf16.gmra.mrb[0].mxu0 %v2274
        %v2609 = vpop.f32.mrb[0].mxu0
        %v2610 = vadd.f32 %v2328, %v2609
        %v2611 = vpop.f32.mrb[0].mxu0
        %v2612 = vadd.f32 %v2332, %v2611
        %v2613 = vpop.f32.mrb[0].mxu0
        %v2614 = vadd.f32 %v2328, %v2613
        %v2615 = vpop.f32.mrb[0].mxu0
        %v2616 = vadd.f32 %v2332, %v2615
        %2617 = vmatprep.mubr.bf16.mxu0 %v2277
        %2618 = vmatmul.mubr.bf16.gmra.mrb[0].mxu0 %v2276
        %v2619 = vpop.f32.mrb[0].mxu0
        %v2620 = vadd.f32 %v2328, %v2619
        %v2621 = vpop.f32.mrb[0].mxu0
        %v2622 = vadd.f32 %v2332, %v2621
        %v2623 = vpop.f32.mrb[0].mxu0
        %v2624 = vadd.f32 %v2328, %v2623
        %v2625 = vpop.f32.mrb[0].mxu0
        %v2626 = vadd.f32 %v2332, %v2625
        %2627 = vmatprep.mubr.bf16.mxu0 %v2279
        %2628 = vmatmul.mubr.bf16.gmra.mrb[0].mxu0 %v2278
        %v2629 = vpop.f32.mrb[0].mxu0
        %v2630 = vadd.f32 %v2328, %v2629
        %v2631 = vpop.f32.mrb[0].mxu0
        %v2632 = vadd.f32 %v2332, %v2631
        %v2633 = vpop.f32.mrb[0].mxu0
        %v2634 = vadd.f32 %v2328, %v2633
        %v2635 = vpop.f32.mrb[0].mxu0
        %v2636 = vadd.f32 %v2332, %v2635
        %2637 = vmatprep.mubr.bf16.mxu0 %v2281
        %2638 = vmatmul.mubr.bf16.gmra.mrb[0].mxu0 %v2280
        %v2639 = vpop.f32.mrb[0].mxu0
        %v2640 = vadd.f32 %v2328, %v2639
        %v2641 = vpop.f32.mrb[0].mxu0
        %v2642 = vadd.f32 %v2332, %v2641
        %v2643 = vpop.f32.mrb[0].mxu0
        %v2644 = vadd.f32 %v2328, %v2643
        %v2645 = vpop.f32.mrb[0].mxu0
        %v2646 = vadd.f32 %v2332, %v2645
        %2647 = vmatprep.mubr.bf16.mxu0 %v2283
        %2648 = vmatmul.mubr.bf16.gmra.mrb[0].mxu0 %v2282
        %v2649 = vpop.f32.mrb[0].mxu0
        %v2650 = vadd.f32 %v2328, %v2649
        %v2651 = vpop.f32.mrb[0].mxu0
        %v2652 = vadd.f32 %v2332, %v2651
        %v2653 = vpop.f32.mrb[0].mxu0
        %v2654 = vadd.f32 %v2328, %v2653
        %v2655 = vpop.f32.mrb[0].mxu0
        %v2656 = vadd.f32 %v2332, %v2655
        %2657 = vmatprep.mubr.bf16.mxu0 %v2285
        %2658 = vmatmul.mubr.bf16.gmra.mrb[0].mxu0 %v2284
        %v2659 = vpop.f32.mrb[0].mxu0
        %v2660 = vadd.f32 %v2328, %v2659
        %v2661 = vpop.f32.mrb[0].mxu0
        %v2662 = vadd.f32 %v2332, %v2661
        %v2663 = vpop.f32.mrb[0].mxu0
        %v2664 = vadd.f32 %v2328, %v2663
        %v2665 = vpop.f32.mrb[0].mxu0
        %v2666 = vadd.f32 %v2332, %v2665
        %2667 = vmatprep.mubr.bf16.mxu0 %v2287
        %2668 = vmatmul.mubr.bf16.gmra.mrb[0].mxu0 %v2286
        %v2669 = vpop.f32.mrb[0].mxu0
        %v2670 = vadd.f32 %v2328, %v2669
        %v2671 = vpop.f32.mrb[0].mxu0
        %v2672 = vadd.f32 %v2332, %v2671
        %v2673 = vpop.f32.mrb[0].mxu0
        %v2674 = vadd.f32 %v2328, %v2673
        %v2675 = vpop.f32.mrb[0].mxu0
        %v2676 = vadd.f32 %v2332, %v2675
        %2677 = vmatprep.mubr.bf16.mxu0 %v2289
        %2678 = vmatmul.mubr.bf16.gmra.mrb[0].mxu0 %v2288
        %v2679 = vpop.f32.mrb[0].mxu0
        %v2680 = vadd.f32 %v2328, %v2679
        %v2681 = vpop.f32.mrb[0].mxu0
        %v2682 = vadd.f32 %v2332, %v2681
        %v2683 = vpop.f32.mrb[0].mxu0
        %v2684 = vadd.f32 %v2328, %v2683
        %v2685 = vpop.f32.mrb[0].mxu0
        %v2686 = vadd.f32 %v2332, %v2685
        %2687 = vdwg.mxu0
        %v2688 = vld [vmem:[%s7] sm:$0x22]
        %v2689 = vadd.f32 %v2530, %v2532
        %2690 = vadd.xlane.f32.xlu0 %v2689
        %v2691 = vpop.xlane.xlu0 %2690
        %v2692 = vadd.f32 %v2534, %v2536
        %2693 = vadd.xlane.f32.xlu0 %v2692
        %v2694 = vpop.xlane.xlu0 %2693
        %v2695 = vadd.f32 %v2540, %v2542
        %2696 = vadd.xlane.f32.xlu0 %v2695
        %v2697 = vpop.xlane.xlu0 %2696
        %v2698 = vadd.f32 %v2544, %v2546
        %2699 = vadd.xlane.f32.xlu0 %v2698
        %v2700 = vpop.xlane.xlu0 %2699
        %v2701 = vadd.f32 %v2550, %v2552
        %2702 = vadd.xlane.f32.xlu0 %v2701
        %v2703 = vpop.xlane.xlu0 %2702
        %v2704 = vadd.f32 %v2554, %v2556
        %2705 = vadd.xlane.f32.xlu0 %v2704
        %v2706 = vpop.xlane.xlu0 %2705
        %v2707 = vadd.f32 %v2560, %v2562
        %2708 = vadd.xlane.f32.xlu0 %v2707
        %v2709 = vpop.xlane.xlu0 %2708
        %v2710 = vadd.f32 %v2564, %v2566
        %2711 = vadd.xlane.f32.xlu0 %v2710
        %v2712 = vpop.xlane.xlu0 %2711
        %v2713 = vadd.f32 %v2570, %v2572
        %2714 = vadd.xlane.f32.xlu0 %v2713
        %v2715 = vpop.xlane.xlu0 %2714
        %v2716 = vadd.f32 %v2574, %v2576
        %2717 = vadd.xlane.f32.xlu0 %v2716
        %v2718 = vpop.xlane.xlu0 %2717
        %v2719 = vadd.f32 %v2580, %v2582
        %2720 = vadd.xlane.f32.xlu0 %v2719
        %v2721 = vpop.xlane.xlu0 %2720
        %v2722 = vadd.f32 %v2584, %v2586
        %2723 = vadd.xlane.f32.xlu0 %v2722
        %v2724 = vpop.xlane.xlu0 %2723
        %v2725 = vadd.f32 %v2590, %v2592
        %2726 = vadd.xlane.f32.xlu0 %v2725
        %v2727 = vpop.xlane.xlu0 %2726
        %v2728 = vadd.f32 %v2594, %v2596
        %2729 = vadd.xlane.f32.xlu0 %v2728
        %v2730 = vpop.xlane.xlu0 %2729
        %v2731 = vadd.f32 %v2600, %v2602
        %2732 = vadd.xlane.f32.xlu0 %v2731
        %v2733 = vpop.xlane.xlu0 %2732
        %v2734 = vadd.f32 %v2604, %v2606
        %2735 = vadd.xlane.f32.xlu0 %v2734
        %v2736 = vpop.xlane.xlu0 %2735
        %v2737 = vadd.f32 %v2610, %v2612
        %2738 = vadd.xlane.f32.xlu0 %v2737
        %v2739 = vpop.xlane.xlu0 %2738
        %v2740 = vadd.f32 %v2614, %v2616
        %2741 = vadd.xlane.f32.xlu0 %v2740
        %v2742 = vpop.xlane.xlu0 %2741
        %v2743 = vadd.f32 %v2620, %v2622
        %2744 = vadd.xlane.f32.xlu0 %v2743
        %v2745 = vpop.xlane.xlu0 %2744
        %v2746 = vadd.f32 %v2624, %v2626
        %2747 = vadd.xlane.f32.xlu0 %v2746
        %v2748 = vpop.xlane.xlu0 %2747
        %v2749 = vadd.f32 %v2630, %v2632
        %2750 = vadd.xlane.f32.xlu0 %v2749
        %v2751 = vpop.xlane.xlu0 %2750
        %v2752 = vadd.f32 %v2634, %v2636
        %2753 = vadd.xlane.f32.xlu0 %v2752
        %v2754 = vpop.xlane.xlu0 %2753
        %v2755 = vadd.f32 %v2640, %v2642
        %2756 = vadd.xlane.f32.xlu0 %v2755
        %v2757 = vpop.xlane.xlu0 %2756
        %v2758 = vadd.f32 %v2644, %v2646
        %2759 = vadd.xlane.f32.xlu0 %v2758
        %v2760 = vpop.xlane.xlu0 %2759
        %v2761 = vadd.f32 %v2650, %v2652
        %2762 = vadd.xlane.f32.xlu0 %v2761
        %v2763 = vpop.xlane.xlu0 %2762
        %v2764 = vadd.f32 %v2654, %v2656
        %2765 = vadd.xlane.f32.xlu0 %v2764
        %v2766 = vpop.xlane.xlu0 %2765
        %v2767 = vadd.f32 %v2660, %v2662
        %2768 = vadd.xlane.f32.xlu0 %v2767
        %v2769 = vpop.xlane.xlu0 %2768
        %v2770 = vadd.f32 %v2664, %v2666
        %2771 = vadd.xlane.f32.xlu0 %v2770
        %v2772 = vpop.xlane.xlu0 %2771
        %v2773 = vadd.f32 %v2670, %v2672
        %2774 = vadd.xlane.f32.xlu0 %v2773
        %v2775 = vpop.xlane.xlu0 %2774
        %v2776 = vadd.f32 %v2674, %v2676
        %2777 = vadd.xlane.f32.xlu0 %v2776
        %v2778 = vpop.xlane.xlu0 %2777
        %v2779 = vadd.f32 %v2680, %v2682
        %2780 = vadd.xlane.f32.xlu0 %v2779
        %v2781 = vpop.xlane.xlu0 %2780
        %v2782 = vadd.f32 %v2684, %v2686
        %2783 = vadd.xlane.f32.xlu0 %v2782
        %v2784 = vpop.xlane.xlu0 %2783
        %v2785 = vmul.f32 %v2691, %v1296
        %v2786 = vmul.f32 %v2694, %v1296
        %v2787 = vmul.f32 %v2697, %v1296
        %v2788 = vmul.f32 %v2700, %v1296
        %v2789 = vmul.f32 %v2703, %v1296
        %v2790 = vmul.f32 %v2706, %v1296
        %v2791 = vmul.f32 %v2709, %v1296
        %v2792 = vmul.f32 %v2712, %v1296
        %v2793 = vmul.f32 %v2715, %v1296
        %v2794 = vmul.f32 %v2718, %v1296
        %v2795 = vmul.f32 %v2721, %v1296
        %v2796 = vmul.f32 %v2724, %v1296
        %v2797 = vmul.f32 %v2727, %v1296
        %v2798 = vmul.f32 %v2730, %v1296
        %v2799 = vmul.f32 %v2733, %v1296
        %v2800 = vmul.f32 %v2736, %v1296
        %v2801 = vmul.f32 %v2739, %v1296
        %v2802 = vmul.f32 %v2742, %v1296
        %v2803 = vmul.f32 %v2745, %v1296
        %v2804 = vmul.f32 %v2748, %v1296
        %v2805 = vmul.f32 %v2751, %v1296
        %v2806 = vmul.f32 %v2754, %v1296
        %v2807 = vmul.f32 %v2757, %v1296
        %v2808 = vmul.f32 %v2760, %v1296
        %v2809 = vmul.f32 %v2763, %v1296
        %v2810 = vmul.f32 %v2766, %v1296
        %v2811 = vmul.f32 %v2769, %v1296
        %v2812 = vmul.f32 %v2772, %v1296
        %v2813 = vmul.f32 %v2775, %v1296
        %v2814 = vmul.f32 %v2778, %v1296
        %v2815 = vmul.f32 %v2781, %v1296
        %v2816 = vmul.f32 %v2784, %v1296
        %v2817 = vsub.f32 %v2530, %v2785
        %v2818 = vsub.f32 %v2532, %v2785
        %v2819 = vsub.f32 %v2534, %v2786
        %v2820 = vsub.f32 %v2536, %v2786
        %v2821 = vsub.f32 %v2540, %v2787
        %v2822 = vsub.f32 %v2542, %v2787
        %v2823 = vsub.f32 %v2544, %v2788
        %v2824 = vsub.f32 %v2546, %v2788
        %v2825 = vsub.f32 %v2550, %v2789
        %v2826 = vsub.f32 %v2552, %v2789
        %v2827 = vsub.f32 %v2554, %v2790
        %v2828 = vsub.f32 %v2556, %v2790
        %v2829 = vsub.f32 %v2560, %v2791
        %v2830 = vsub.f32 %v2562, %v2791
        %v2831 = vsub.f32 %v2564, %v2792
        %v2832 = vsub.f32 %v2566, %v2792
        %v2833 = vsub.f32 %v2570, %v2793
        %v2834 = vsub.f32 %v2572, %v2793
        %v2835 = vsub.f32 %v2574, %v2794
        %v2836 = vsub.f32 %v2576, %v2794
        %v2837 = vsub.f32 %v2580, %v2795
        %v2838 = vsub.f32 %v2582, %v2795
        %v2839 = vsub.f32 %v2584, %v2796
        %v2840 = vsub.f32 %v2586, %v2796
        %v2841 = vsub.f32 %v2590, %v2797
        %v2842 = vsub.f32 %v2592, %v2797
        %v2843 = vsub.f32 %v2594, %v2798
        %v2844 = vsub.f32 %v2596, %v2798
        %v2845 = vsub.f32 %v2600, %v2799
        %v2846 = vsub.f32 %v2602, %v2799
        %v2847 = vsub.f32 %v2604, %v2800
        %v2848 = vsub.f32 %v2606, %v2800
        %v2849 = vsub.f32 %v2610, %v2801
        %v2850 = vsub.f32 %v2612, %v2801
        %v2851 = vsub.f32 %v2614, %v2802
        %v2852 = vsub.f32 %v2616, %v2802
        %v2853 = vsub.f32 %v2620, %v2803
        %v2854 = vsub.f32 %v2622, %v2803
        %v2855 = vsub.f32 %v2624, %v2804
        %v2856 = vsub.f32 %v2626, %v2804
        %v2857 = vsub.f32 %v2630, %v2805
        %v2858 = vsub.f32 %v2632, %v2805
        %v2859 = vsub.f32 %v2634, %v2806
        %v2860 = vsub.f32 %v2636, %v2806
        %v2861 = vsub.f32 %v2640, %v2807
        %v2862 = vsub.f32 %v2642, %v2807
        %v2863 = vsub.f32 %v2644, %v2808
        %v2864 = vsub.f32 %v2646, %v2808
        %v2865 = vsub.f32 %v2650, %v2809
        %v2866 = vsub.f32 %v2652, %v2809
        %v2867 = vsub.f32 %v2654, %v2810
        %v2868 = vsub.f32 %v2656, %v2810
        %v2869 = vsub.f32 %v2660, %v2811
        %v2870 = vsub.f32 %v2662, %v2811
        %v2871 = vsub.f32 %v2664, %v2812
        %v2872 = vsub.f32 %v2666, %v2812
        %v2873 = vsub.f32 %v2670, %v2813
        %v2874 = vsub.f32 %v2672, %v2813
        %v2875 = vsub.f32 %v2674, %v2814
        %v2876 = vsub.f32 %v2676, %v2814
        %v2877 = vsub.f32 %v2680, %v2815
        %v2878 = vsub.f32 %v2682, %v2815
        %v2879 = vsub.f32 %v2684, %v2816
        %v2880 = vsub.f32 %v2686, %v2816
        %v2881 = vmul.f32 %v2817, %v2817
        %v2882 = vmul.f32 %v2818, %v2818
        %v2883 = vmul.f32 %v2819, %v2819
        %v2884 = vmul.f32 %v2820, %v2820
        %v2885 = vmul.f32 %v2821, %v2821
        %v2886 = vmul.f32 %v2822, %v2822
        %v2887 = vmul.f32 %v2823, %v2823
        %v2888 = vmul.f32 %v2824, %v2824
        %v2889 = vmul.f32 %v2825, %v2825
        %v2890 = vmul.f32 %v2826, %v2826
        %v2891 = vmul.f32 %v2827, %v2827
        %v2892 = vmul.f32 %v2828, %v2828
        %v2893 = vmul.f32 %v2829, %v2829
        %v2894 = vmul.f32 %v2830, %v2830
        %v2895 = vmul.f32 %v2831, %v2831
        %v2896 = vmul.f32 %v2832, %v2832
        %v2897 = vmul.f32 %v2833, %v2833
        %v2898 = vmul.f32 %v2834, %v2834
        %v2899 = vmul.f32 %v2835, %v2835
        %v2900 = vmul.f32 %v2836, %v2836
        %v2901 = vmul.f32 %v2837, %v2837
        %v2902 = vmul.f32 %v2838, %v2838
        %v2903 = vmul.f32 %v2839, %v2839
        %v2904 = vmul.f32 %v2840, %v2840
        %v2905 = vmul.f32 %v2841, %v2841
        %v2906 = vmul.f32 %v2842, %v2842
        %v2907 = vmul.f32 %v2843, %v2843
        %v2908 = vmul.f32 %v2844, %v2844
        %v2909 = vmul.f32 %v2845, %v2845
        %v2910 = vmul.f32 %v2846, %v2846
        %v2911 = vmul.f32 %v2847, %v2847
        %v2912 = vmul.f32 %v2848, %v2848
        %v2913 = vmul.f32 %v2849, %v2849
        %v2914 = vmul.f32 %v2850, %v2850
        %v2915 = vmul.f32 %v2851, %v2851
        %v2916 = vmul.f32 %v2852, %v2852
        %v2917 = vmul.f32 %v2853, %v2853
        %v2918 = vmul.f32 %v2854, %v2854
        %v2919 = vmul.f32 %v2855, %v2855
        %v2920 = vmul.f32 %v2856, %v2856
        %v2921 = vmul.f32 %v2857, %v2857
        %v2922 = vmul.f32 %v2858, %v2858
        %v2923 = vmul.f32 %v2859, %v2859
        %v2924 = vmul.f32 %v2860, %v2860
        %v2925 = vmul.f32 %v2861, %v2861
        %v2926 = vmul.f32 %v2862, %v2862
        %v2927 = vmul.f32 %v2863, %v2863
        %v2928 = vmul.f32 %v2864, %v2864
        %v2929 = vmul.f32 %v2865, %v2865
        %v2930 = vmul.f32 %v2866, %v2866
        %v2931 = vmul.f32 %v2867, %v2867
        %v2932 = vmul.f32 %v2868, %v2868
        %v2933 = vmul.f32 %v2869, %v2869
        %v2934 = vmul.f32 %v2870, %v2870
        %v2935 = vmul.f32 %v2871, %v2871
        %v2936 = vmul.f32 %v2872, %v2872
        %v2937 = vmul.f32 %v2873, %v2873
        %v2938 = vmul.f32 %v2874, %v2874
        %v2939 = vmul.f32 %v2875, %v2875
        %v2940 = vmul.f32 %v2876, %v2876
        %v2941 = vmul.f32 %v2877, %v2877
        %v2942 = vmul.f32 %v2878, %v2878
        %v2943 = vmul.f32 %v2879, %v2879
        %v2944 = vmul.f32 %v2880, %v2880
        %v2945 = vadd.f32 %v2881, %v2882
        %2946 = vadd.xlane.f32.xlu0 %v2945
        %v2947 = vpop.xlane.xlu0 %2946
        %v2948 = vadd.f32 %v2883, %v2884
        %2949 = vadd.xlane.f32.xlu0 %v2948
        %v2950 = vpop.xlane.xlu0 %2949
        %v2951 = vadd.f32 %v2885, %v2886
        %2952 = vadd.xlane.f32.xlu0 %v2951
        %v2953 = vpop.xlane.xlu0 %2952
        %v2954 = vadd.f32 %v2887, %v2888
        %2955 = vadd.xlane.f32.xlu0 %v2954
        %v2956 = vpop.xlane.xlu0 %2955
        %v2957 = vadd.f32 %v2889, %v2890
        %2958 = vadd.xlane.f32.xlu0 %v2957
        %v2959 = vpop.xlane.xlu0 %2958
        %v2960 = vadd.f32 %v2891, %v2892
        %2961 = vadd.xlane.f32.xlu0 %v2960
        %v2962 = vpop.xlane.xlu0 %2961
        %v2963 = vadd.f32 %v2893, %v2894
        %2964 = vadd.xlane.f32.xlu0 %v2963
        %v2965 = vpop.xlane.xlu0 %2964
        %v2966 = vadd.f32 %v2895, %v2896
        %2967 = vadd.xlane.f32.xlu0 %v2966
        %v2968 = vpop.xlane.xlu0 %2967
        %v2969 = vadd.f32 %v2897, %v2898
        %2970 = vadd.xlane.f32.xlu0 %v2969
        %v2971 = vpop.xlane.xlu0 %2970
        %v2972 = vadd.f32 %v2899, %v2900
        %2973 = vadd.xlane.f32.xlu0 %v2972
        %v2974 = vpop.xlane.xlu0 %2973
        %v2975 = vadd.f32 %v2901, %v2902
        %2976 = vadd.xlane.f32.xlu0 %v2975
        %v2977 = vpop.xlane.xlu0 %2976
        %v2978 = vadd.f32 %v2903, %v2904
        %2979 = vadd.xlane.f32.xlu0 %v2978
        %v2980 = vpop.xlane.xlu0 %2979
        %v2981 = vadd.f32 %v2905, %v2906
        %2982 = vadd.xlane.f32.xlu0 %v2981
        %v2983 = vpop.xlane.xlu0 %2982
        %v2984 = vadd.f32 %v2907, %v2908
        %2985 = vadd.xlane.f32.xlu0 %v2984
        %v2986 = vpop.xlane.xlu0 %2985
        %v2987 = vadd.f32 %v2909, %v2910
        %2988 = vadd.xlane.f32.xlu0 %v2987
        %v2989 = vpop.xlane.xlu0 %2988
        %v2990 = vadd.f32 %v2911, %v2912
        %2991 = vadd.xlane.f32.xlu0 %v2990
        %v2992 = vpop.xlane.xlu0 %2991
        %v2993 = vadd.f32 %v2913, %v2914
        %2994 = vadd.xlane.f32.xlu0 %v2993
        %v2995 = vpop.xlane.xlu0 %2994
        %v2996 = vadd.f32 %v2915, %v2916
        %2997 = vadd.xlane.f32.xlu0 %v2996
        %v2998 = vpop.xlane.xlu0 %2997
        %v2999 = vadd.f32 %v2917, %v2918
        %3000 = vadd.xlane.f32.xlu0 %v2999
        %v3001 = vpop.xlane.xlu0 %3000
        %v3002 = vadd.f32 %v2919, %v2920
        %3003 = vadd.xlane.f32.xlu0 %v3002
        %v3004 = vpop.xlane.xlu0 %3003
        %v3005 = vadd.f32 %v2921, %v2922
        %3006 = vadd.xlane.f32.xlu0 %v3005
        %v3007 = vpop.xlane.xlu0 %3006
        %v3008 = vadd.f32 %v2923, %v2924
        %3009 = vadd.xlane.f32.xlu0 %v3008
        %v3010 = vpop.xlane.xlu0 %3009
        %v3011 = vadd.f32 %v2925, %v2926
        %3012 = vadd.xlane.f32.xlu0 %v3011
        %v3013 = vpop.xlane.xlu0 %3012
        %v3014 = vadd.f32 %v2927, %v2928
        %3015 = vadd.xlane.f32.xlu0 %v3014
        %v3016 = vpop.xlane.xlu0 %3015
        %v3017 = vadd.f32 %v2929, %v2930
        %3018 = vadd.xlane.f32.xlu0 %v3017
        %v3019 = vpop.xlane.xlu0 %3018
        %v3020 = vadd.f32 %v2931, %v2932
        %3021 = vadd.xlane.f32.xlu0 %v3020
        %v3022 = vpop.xlane.xlu0 %3021
        %v3023 = vadd.f32 %v2933, %v2934
        %3024 = vadd.xlane.f32.xlu0 %v3023
        %v3025 = vpop.xlane.xlu0 %3024
        %v3026 = vadd.f32 %v2935, %v2936
        %3027 = vadd.xlane.f32.xlu0 %v3026
        %v3028 = vpop.xlane.xlu0 %3027
        %v3029 = vadd.f32 %v2937, %v2938
        %3030 = vadd.xlane.f32.xlu0 %v3029
        %v3031 = vpop.xlane.xlu0 %3030
        %v3032 = vadd.f32 %v2939, %v2940
        %3033 = vadd.xlane.f32.xlu0 %v3032
        %v3034 = vpop.xlane.xlu0 %3033
        %v3035 = vadd.f32 %v2941, %v2942
        %3036 = vadd.xlane.f32.xlu0 %v3035
        %v3037 = vpop.xlane.xlu0 %3036
        %v3038 = vadd.f32 %v2943, %v2944
        %3039 = vadd.xlane.f32.xlu0 %v3038
        %v3040 = vpop.xlane.xlu0 %3039
        %v3041 = vmul.f32 %v2947, %v1296
        %v3042 = vmul.f32 %v2950, %v1296
        %v3043 = vmul.f32 %v2953, %v1296
        %v3044 = vmul.f32 %v2956, %v1296
        %v3045 = vmul.f32 %v2959, %v1296
        %v3046 = vmul.f32 %v2962, %v1296
        %v3047 = vmul.f32 %v2965, %v1296
        %v3048 = vmul.f32 %v2968, %v1296
        %v3049 = vmul.f32 %v2971, %v1296
        %v3050 = vmul.f32 %v2974, %v1296
        %v3051 = vmul.f32 %v2977, %v1296
        %v3052 = vmul.f32 %v2980, %v1296
        %v3053 = vmul.f32 %v2983, %v1296
        %v3054 = vmul.f32 %v2986, %v1296
        %v3055 = vmul.f32 %v2989, %v1296
        %v3056 = vmul.f32 %v2992, %v1296
        %v3057 = vmul.f32 %v2995, %v1296
        %v3058 = vmul.f32 %v2998, %v1296
        %v3059 = vmul.f32 %v3001, %v1296
        %v3060 = vmul.f32 %v3004, %v1296
        %v3061 = vmul.f32 %v3007, %v1296
        %v3062 = vmul.f32 %v3010, %v1296
        %v3063 = vmul.f32 %v3013, %v1296
        %v3064 = vmul.f32 %v3016, %v1296
        %v3065 = vmul.f32 %v3019, %v1296
        %v3066 = vmul.f32 %v3022, %v1296
        %v3067 = vmul.f32 %v3025, %v1296
        %v3068 = vmul.f32 %v3028, %v1296
        %v3069 = vmul.f32 %v3031, %v1296
        %v3070 = vmul.f32 %v3034, %v1296
        %v3071 = vmul.f32 %v3037, %v1296
        %v3072 = vmul.f32 %v3040, %v1296
        %v3073 = vadd.f32 %v3041, 1e-05
        %v3074 = vadd.f32 %v3042, 1e-05
        %v3075 = vadd.f32 %v3043, 1e-05
        %v3076 = vadd.f32 %v3044, 1e-05
        %v3077 = vadd.f32 %v3045, 1e-05
        %v3078 = vadd.f32 %v3046, 1e-05
        %v3079 = vadd.f32 %v3047, 1e-05
        %v3080 = vadd.f32 %v3048, 1e-05
        %v3081 = vadd.f32 %v3049, 1e-05
        %v3082 = vadd.f32 %v3050, 1e-05
        %v3083 = vadd.f32 %v3051, 1e-05
        %v3084 = vadd.f32 %v3052, 1e-05
        %v3085 = vadd.f32 %v3053, 1e-05
        %v3086 = vadd.f32 %v3054, 1e-05
        %v3087 = vadd.f32 %v3055, 1e-05
        %v3088 = vadd.f32 %v3056, 1e-05
        %v3089 = vadd.f32 %v3057, 1e-05
        %v3090 = vadd.f32 %v3058, 1e-05
        %v3091 = vadd.f32 %v3059, 1e-05
        %v3092 = vadd.f32 %v3060, 1e-05
        %v3093 = vadd.f32 %v3061, 1e-05
        %v3094 = vadd.f32 %v3062, 1e-05
        %v3095 = vadd.f32 %v3063, 1e-05
        %v3096 = vadd.f32 %v3064, 1e-05
        %v3097 = vadd.f32 %v3065, 1e-05
        %v3098 = vadd.f32 %v3066, 1e-05
        %v3099 = vadd.f32 %v3067, 1e-05
        %v3100 = vadd.f32 %v3068, 1e-05
        %v3101 = vadd.f32 %v3069, 1e-05
        %v3102 = vadd.f32 %v3070, 1e-05
        %v3103 = vadd.f32 %v3071, 1e-05
        %v3104 = vadd.f32 %v3072, 1e-05
        %v3105 = vrsqrt.pop %v3073
        %v3106 = vrsqrt.pop %v3074
        %v3107 = vrsqrt.pop %v3075
        %v3108 = vrsqrt.pop %v3076
        %v3109 = vrsqrt.pop %v3077
        %v3110 = vrsqrt.pop %v3078
        %v3111 = vrsqrt.pop %v3079
        %v3112 = vrsqrt.pop %v3080
        %v3113 = vrsqrt.pop %v3081
        %v3114 = vrsqrt.pop %v3082
        %v3115 = vrsqrt.pop %v3083
        %v3116 = vrsqrt.pop %v3084
        %v3117 = vrsqrt.pop %v3085
        %v3118 = vrsqrt.pop %v3086
        %v3119 = vrsqrt.pop %v3087
        %v3120 = vrsqrt.pop %v3088
        %v3121 = vrsqrt.pop %v3089
        %v3122 = vrsqrt.pop %v3090
        %v3123 = vrsqrt.pop %v3091
        %v3124 = vrsqrt.pop %v3092
        %v3125 = vrsqrt.pop %v3093
        %v3126 = vrsqrt.pop %v3094
        %v3127 = vrsqrt.pop %v3095
        %v3128 = vrsqrt.pop %v3096
        %v3129 = vrsqrt.pop %v3097
        %v3130 = vrsqrt.pop %v3098
        %v3131 = vrsqrt.pop %v3099
        %v3132 = vrsqrt.pop %v3100
        %v3133 = vrsqrt.pop %v3101
        %v3134 = vrsqrt.pop %v3102
        %v3135 = vrsqrt.pop %v3103
        %v3136 = vrsqrt.pop %v3104
        %v3137 = vmul.f32 %v2817, %v3105
        %v3138 = vmul.f32 %v2818, %v3105
        %v3139 = vmul.f32 %v2819, %v3106
        %v3140 = vmul.f32 %v2820, %v3106
        %v3141 = vmul.f32 %v2821, %v3107
        %v3142 = vmul.f32 %v2822, %v3107
        %v3143 = vmul.f32 %v2823, %v3108
        %v3144 = vmul.f32 %v2824, %v3108
        %v3145 = vmul.f32 %v2825, %v3109
        %v3146 = vmul.f32 %v2826, %v3109
        %v3147 = vmul.f32 %v2827, %v3110
        %v3148 = vmul.f32 %v2828, %v3110
        %v3149 = vmul.f32 %v2829, %v3111
        %v3150 = vmul.f32 %v2830, %v3111
        %v3151 = vmul.f32 %v2831, %v3112
        %v3152 = vmul.f32 %v2832, %v3112
        %v3153 = vmul.f32 %v2833, %v3113
        %v3154 = vmul.f32 %v2834, %v3113
        %v3155 = vmul.f32 %v2835, %v3114
        %v3156 = vmul.f32 %v2836, %v3114
        %v3157 = vmul.f32 %v2837, %v3115
        %v3158 = vmul.f32 %v2838, %v3115
        %v3159 = vmul.f32 %v2839, %v3116
        %v3160 = vmul.f32 %v2840, %v3116
        %v3161 = vmul.f32 %v2841, %v3117
        %v3162 = vmul.f32 %v2842, %v3117
        %v3163 = vmul.f32 %v2843, %v3118
        %v3164 = vmul.f32 %v2844, %v3118
        %v3165 = vmul.f32 %v2845, %v3119
        %v3166 = vmul.f32 %v2846, %v3119
        %v3167 = vmul.f32 %v2847, %v3120
        %v3168 = vmul.f32 %v2848, %v3120
        %v3169 = vmul.f32 %v2849, %v3121
        %v3170 = vmul.f32 %v2850, %v3121
        %v3171 = vmul.f32 %v2851, %v3122
        %v3172 = vmul.f32 %v2852, %v3122
        %v3173 = vmul.f32 %v2853, %v3123
        %v3174 = vmul.f32 %v2854, %v3123
        %v3175 = vmul.f32 %v2855, %v3124
        %v3176 = vmul.f32 %v2856, %v3124
        %v3177 = vmul.f32 %v2857, %v3125
        %v3178 = vmul.f32 %v2858, %v3125
        %v3179 = vmul.f32 %v2859, %v3126
        %v3180 = vmul.f32 %v2860, %v3126
        %v3181 = vmul.f32 %v2861, %v3127
        %v3182 = vmul.f32 %v2862, %v3127
        %v3183 = vmul.f32 %v2863, %v3128
        %v3184 = vmul.f32 %v2864, %v3128
        %v3185 = vmul.f32 %v2865, %v3129
        %v3186 = vmul.f32 %v2866, %v3129
        %v3187 = vmul.f32 %v2867, %v3130
        %v3188 = vmul.f32 %v2868, %v3130
        %v3189 = vmul.f32 %v2869, %v3131
        %v3190 = vmul.f32 %v2870, %v3131
        %v3191 = vmul.f32 %v2871, %v3132
        %v3192 = vmul.f32 %v2872, %v3132
        %v3193 = vmul.f32 %v2873, %v3133
        %v3194 = vmul.f32 %v2874, %v3133
        %v3195 = vmul.f32 %v2875, %v3134
        %v3196 = vmul.f32 %v2876, %v3134
        %v3197 = vmul.f32 %v2877, %v3135
        %v3198 = vmul.f32 %v2878, %v3135
        %v3199 = vmul.f32 %v2879, %v3136
        %v3200 = vmul.f32 %v2880, %v3136
        %v3201 = vpack.c.bf16 %v3139, %v3137
        %v3202 = vpack.c.bf16 %v3140, %v3138
        %v3203 = vpack.c.bf16 %v3143, %v3141
        %v3204 = vpack.c.bf16 %v3144, %v3142
        %v3205 = vpack.c.bf16 %v3147, %v3145
        %v3206 = vpack.c.bf16 %v3148, %v3146
        %v3207 = vpack.c.bf16 %v3151, %v3149
        %v3208 = vpack.c.bf16 %v3152, %v3150
        %v3209 = vpack.c.bf16 %v3155, %v3153
        %v3210 = vpack.c.bf16 %v3156, %v3154
        %v3211 = vpack.c.bf16 %v3159, %v3157
        %v3212 = vpack.c.bf16 %v3160, %v3158
        %v3213 = vpack.c.bf16 %v3163, %v3161
        %v3214 = vpack.c.bf16 %v3164, %v3162
        %v3215 = vpack.c.bf16 %v3167, %v3165
        %v3216 = vpack.c.bf16 %v3168, %v3166
        %v3217 = vpack.c.bf16 %v3171, %v3169
        %v3218 = vpack.c.bf16 %v3172, %v3170
        %v3219 = vpack.c.bf16 %v3175, %v3173
        %v3220 = vpack.c.bf16 %v3176, %v3174
        %v3221 = vpack.c.bf16 %v3179, %v3177
        %v3222 = vpack.c.bf16 %v3180, %v3178
        %v3223 = vpack.c.bf16 %v3183, %v3181
        %v3224 = vpack.c.bf16 %v3184, %v3182
        %v3225 = vpack.c.bf16 %v3187, %v3185
        %v3226 = vpack.c.bf16 %v3188, %v3186
        %v3227 = vpack.c.bf16 %v3191, %v3189
        %v3228 = vpack.c.bf16 %v3192, %v3190
        %v3229 = vpack.c.bf16 %v3195, %v3193
        %v3230 = vpack.c.bf16 %v3196, %v3194
        %v3231 = vpack.c.bf16 %v3199, %v3197
        %v3232 = vpack.c.bf16 %v3200, %v3198
        %v3234 = vunpack.c.l.b16 %v2688
        %v3235 = vunpack.c.h.b16 %v2688
        %v3236 = vpack.c.b16 %v3234, %v3234
        %v3237 = vpack.c.b16 %v3235, %v3235
        %v3239 = vpack.i.b16 %v3236, %v3236
        %v3241 = vlaneseq
        %v3242 = vshrl.u32 %v3241, 7
        %v3243 = vsub.s32 1, %v3242
        %v3244 = vrot.slane %v3239, %v3243
        %v3246 = vpack.i.b16 %v3237, %v3237
        %v3248 = vlaneseq
        %v3249 = vshrl.u32 %v3248, 7
        %v3250 = vsub.s32 1, %v3249
        %v3251 = vrot.slane %v3246, %v3250
        %v3252 = vmul.bf16 %v3201, %v3244
        %v3253 = vmul.bf16 %v3202, %v3251
        %v3254 = vmul.bf16 %v3203, %v3244
        %v3255 = vmul.bf16 %v3204, %v3251
        %v3256 = vmul.bf16 %v3205, %v3244
        %v3257 = vmul.bf16 %v3206, %v3251
        %v3258 = vmul.bf16 %v3207, %v3244
        %v3259 = vmul.bf16 %v3208, %v3251
        %v3260 = vmul.bf16 %v3209, %v3244
        %v3261 = vmul.bf16 %v3210, %v3251
        %v3262 = vmul.bf16 %v3211, %v3244
        %v3263 = vmul.bf16 %v3212, %v3251
        %v3264 = vmul.bf16 %v3213, %v3244
        %v3265 = vmul.bf16 %v3214, %v3251
        %v3266 = vmul.bf16 %v3215, %v3244
        %v3267 = vmul.bf16 %v3216, %v3251
        %v3268 = vmul.bf16 %v3217, %v3244
        %v3269 = vmul.bf16 %v3218, %v3251
        %v3270 = vmul.bf16 %v3219, %v3244
        %v3271 = vmul.bf16 %v3220, %v3251
        %v3272 = vmul.bf16 %v3221, %v3244
        %v3273 = vmul.bf16 %v3222, %v3251
        %v3274 = vmul.bf16 %v3223, %v3244
        %v3275 = vmul.bf16 %v3224, %v3251
        %v3276 = vmul.bf16 %v3225, %v3244
        %v3277 = vmul.bf16 %v3226, %v3251
        %v3278 = vmul.bf16 %v3227, %v3244
        %v3279 = vmul.bf16 %v3228, %v3251
        %v3280 = vmul.bf16 %v3229, %v3244
        %v3281 = vmul.bf16 %v3230, %v3251
        %v3282 = vmul.bf16 %v3231, %v3244
        %v3283 = vmul.bf16 %v3232, %v3251
        %v3284 = vshrl.u32 %v3236, 16
        %v3285 = vpack.i.b16 %v3284, %v3284
        %v3287 = vlaneseq
        %v3288 = vshrl.u32 %v3287, 7
        %v3289 = vsub.s32 1, %v3288
        %v3290 = vrot.slane %v3285, %v3289
        %v3291 = vshrl.u32 %v3237, 16
        %v3292 = vpack.i.b16 %v3291, %v3291
        %v3294 = vlaneseq
        %v3295 = vshrl.u32 %v3294, 7
        %v3296 = vsub.s32 1, %v3295
        %v3297 = vrot.slane %v3292, %v3296
        %v3298 = vadd.bf16 %v3252, %v3290
        %v3299 = vadd.bf16 %v3253, %v3297
        %v3300 = vadd.bf16 %v3254, %v3290
        %v3301 = vadd.bf16 %v3255, %v3297
        %v3302 = vadd.bf16 %v3256, %v3290
        %v3303 = vadd.bf16 %v3257, %v3297
        %v3304 = vadd.bf16 %v3258, %v3290
        %v3305 = vadd.bf16 %v3259, %v3297
        %v3306 = vadd.bf16 %v3260, %v3290
        %v3307 = vadd.bf16 %v3261, %v3297
        %v3308 = vadd.bf16 %v3262, %v3290
        %v3309 = vadd.bf16 %v3263, %v3297
        %v3310 = vadd.bf16 %v3264, %v3290
        %v3311 = vadd.bf16 %v3265, %v3297
        %v3312 = vadd.bf16 %v3266, %v3290
        %v3313 = vadd.bf16 %v3267, %v3297
        %v3314 = vadd.bf16 %v3268, %v3290
        %v3315 = vadd.bf16 %v3269, %v3297
        %v3316 = vadd.bf16 %v3270, %v3290
        %v3317 = vadd.bf16 %v3271, %v3297
        %v3318 = vadd.bf16 %v3272, %v3290
        %v3319 = vadd.bf16 %v3273, %v3297
        %v3320 = vadd.bf16 %v3274, %v3290
        %v3321 = vadd.bf16 %v3275, %v3297
        %v3322 = vadd.bf16 %v3276, %v3290
        %v3323 = vadd.bf16 %v3277, %v3297
        %v3324 = vadd.bf16 %v3278, %v3290
        %v3325 = vadd.bf16 %v3279, %v3297
        %v3326 = vadd.bf16 %v3280, %v3290
        %v3327 = vadd.bf16 %v3281, %v3297
        %v3328 = vadd.bf16 %v3282, %v3290
        %v3329 = vadd.bf16 %v3283, %v3297
        %v3330 = vunpack.c.l.bf16 %v3298
        %v3331 = vunpack.c.l.bf16 %v3299
        %v3332 = vunpack.c.h.bf16 %v3298
        %v3333 = vunpack.c.h.bf16 %v3299
        %v3334 = vunpack.c.l.bf16 %v3300
        %v3335 = vunpack.c.l.bf16 %v3301
        %v3336 = vunpack.c.h.bf16 %v3300
        %v3337 = vunpack.c.h.bf16 %v3301
        %v3338 = vunpack.c.l.bf16 %v3302
        %v3339 = vunpack.c.l.bf16 %v3303
        %v3340 = vunpack.c.h.bf16 %v3302
        %v3341 = vunpack.c.h.bf16 %v3303
        %v3342 = vunpack.c.l.bf16 %v3304
        %v3343 = vunpack.c.l.bf16 %v3305
        %v3344 = vunpack.c.h.bf16 %v3304
        %v3345 = vunpack.c.h.bf16 %v3305
        %v3346 = vunpack.c.l.bf16 %v3306
        %v3347 = vunpack.c.l.bf16 %v3307
        %v3348 = vunpack.c.h.bf16 %v3306
        %v3349 = vunpack.c.h.bf16 %v3307
        %v3350 = vunpack.c.l.bf16 %v3308
        %v3351 = vunpack.c.l.bf16 %v3309
        %v3352 = vunpack.c.h.bf16 %v3308
        %v3353 = vunpack.c.h.bf16 %v3309
        %v3354 = vunpack.c.l.bf16 %v3310
        %v3355 = vunpack.c.l.bf16 %v3311
        %v3356 = vunpack.c.h.bf16 %v3310
        %v3357 = vunpack.c.h.bf16 %v3311
        %v3358 = vunpack.c.l.bf16 %v3312
        %v3359 = vunpack.c.l.bf16 %v3313
        %v3360 = vunpack.c.h.bf16 %v3312
        %v3361 = vunpack.c.h.bf16 %v3313
        %v3362 = vunpack.c.l.bf16 %v3314
        %v3363 = vunpack.c.l.bf16 %v3315
        %v3364 = vunpack.c.h.bf16 %v3314
        %v3365 = vunpack.c.h.bf16 %v3315
        %v3366 = vunpack.c.l.bf16 %v3316
        %v3367 = vunpack.c.l.bf16 %v3317
        %v3368 = vunpack.c.h.bf16 %v3316
        %v3369 = vunpack.c.h.bf16 %v3317
        %v3370 = vunpack.c.l.bf16 %v3318
        %v3371 = vunpack.c.l.bf16 %v3319
        %v3372 = vunpack.c.h.bf16 %v3318
        %v3373 = vunpack.c.h.bf16 %v3319
        %v3374 = vunpack.c.l.bf16 %v3320
        %v3375 = vunpack.c.l.bf16 %v3321
        %v3376 = vunpack.c.h.bf16 %v3320
        %v3377 = vunpack.c.h.bf16 %v3321
        %v3378 = vunpack.c.l.bf16 %v3322
        %v3379 = vunpack.c.l.bf16 %v3323
        %v3380 = vunpack.c.h.bf16 %v3322
        %v3381 = vunpack.c.h.bf16 %v3323
        %v3382 = vunpack.c.l.bf16 %v3324
        %v3383 = vunpack.c.l.bf16 %v3325
        %v3384 = vunpack.c.h.bf16 %v3324
        %v3385 = vunpack.c.h.bf16 %v3325
        %v3386 = vunpack.c.l.bf16 %v3326
        %v3387 = vunpack.c.l.bf16 %v3327
        %v3388 = vunpack.c.h.bf16 %v3326
        %v3389 = vunpack.c.h.bf16 %v3327
        %v3390 = vunpack.c.l.bf16 %v3328
        %v3391 = vunpack.c.l.bf16 %v3329
        %v3392 = vunpack.c.h.bf16 %v3328
        %v3393 = vunpack.c.h.bf16 %v3329
        %v3394 = vsub.f32 0.0, %v3330
        %v3395 = vsub.f32 0.0, %v3331
        %v3396 = vsub.f32 0.0, %v3332
        %v3397 = vsub.f32 0.0, %v3333
        %v3398 = vsub.f32 0.0, %v3334
        %v3399 = vsub.f32 0.0, %v3335
        %v3400 = vsub.f32 0.0, %v3336
        %v3401 = vsub.f32 0.0, %v3337
        %v3402 = vsub.f32 0.0, %v3338
        %v3403 = vsub.f32 0.0, %v3339
        %v3404 = vsub.f32 0.0, %v3340
        %v3405 = vsub.f32 0.0, %v3341
        %v3406 = vsub.f32 0.0, %v3342
        %v3407 = vsub.f32 0.0, %v3343
        %v3408 = vsub.f32 0.0, %v3344
        %v3409 = vsub.f32 0.0, %v3345
        %v3410 = vsub.f32 0.0, %v3346
        %v3411 = vsub.f32 0.0, %v3347
        %v3412 = vsub.f32 0.0, %v3348
        %v3413 = vsub.f32 0.0, %v3349
        %v3414 = vsub.f32 0.0, %v3350
        %v3415 = vsub.f32 0.0, %v3351
        %v3416 = vsub.f32 0.0, %v3352
        %v3417 = vsub.f32 0.0, %v3353
        %v3418 = vsub.f32 0.0, %v3354
        %v3419 = vsub.f32 0.0, %v3355
        %v3420 = vsub.f32 0.0, %v3356
        %v3421 = vsub.f32 0.0, %v3357
        %v3422 = vsub.f32 0.0, %v3358
        %v3423 = vsub.f32 0.0, %v3359
        %v3424 = vsub.f32 0.0, %v3360
        %v3425 = vsub.f32 0.0, %v3361
        %v3426 = vsub.f32 0.0, %v3362
        %v3427 = vsub.f32 0.0, %v3363
        %v3428 = vsub.f32 0.0, %v3364
        %v3429 = vsub.f32 0.0, %v3365
        %v3430 = vsub.f32 0.0, %v3366
        %v3431 = vsub.f32 0.0, %v3367
        %v3432 = vsub.f32 0.0, %v3368
        %v3433 = vsub.f32 0.0, %v3369
        %v3434 = vsub.f32 0.0, %v3370
        %v3435 = vsub.f32 0.0, %v3371
        %v3436 = vsub.f32 0.0, %v3372
        %v3437 = vsub.f32 0.0, %v3373
        %v3438 = vsub.f32 0.0, %v3374
        %v3439 = vsub.f32 0.0, %v3375
        %v3440 = vsub.f32 0.0, %v3376
        %v3441 = vsub.f32 0.0, %v3377
        %v3442 = vsub.f32 0.0, %v3378
        %v3443 = vsub.f32 0.0, %v3379
        %v3444 = vsub.f32 0.0, %v3380
        %v3445 = vsub.f32 0.0, %v3381
        %v3446 = vsub.f32 0.0, %v3382
        %v3447 = vsub.f32 0.0, %v3383
        %v3448 = vsub.f32 0.0, %v3384
        %v3449 = vsub.f32 0.0, %v3385
        %v3450 = vsub.f32 0.0, %v3386
        %v3451 = vsub.f32 0.0, %v3387
        %v3452 = vsub.f32 0.0, %v3388
        %v3453 = vsub.f32 0.0, %v3389
        %v3454 = vsub.f32 0.0, %v3390
        %v3455 = vsub.f32 0.0, %v3391
        %v3456 = vsub.f32 0.0, %v3392
        %v3457 = vsub.f32 0.0, %v3393
        %v3458 = vmul.f32 %v3394, 1.442695
        %v3459 = vpow.pop %v3458
        %v3460 = vmul.f32 %v3395, 1.442695
        %v3461 = vpow.pop %v3460
        %v3462 = vmul.f32 %v3396, 1.442695
        %v3463 = vpow.pop %v3462
        %v3464 = vmul.f32 %v3397, 1.442695
        %v3465 = vpow.pop %v3464
        %v3466 = vmul.f32 %v3398, 1.442695
        %v3467 = vpow.pop %v3466
        %v3468 = vmul.f32 %v3399, 1.442695
        %v3469 = vpow.pop %v3468
        %v3470 = vmul.f32 %v3400, 1.442695
        %v3471 = vpow.pop %v3470
        %v3472 = vmul.f32 %v3401, 1.442695
        %v3473 = vpow.pop %v3472
        %v3474 = vmul.f32 %v3402, 1.442695
        %v3475 = vpow.pop %v3474
        %v3476 = vmul.f32 %v3403, 1.442695
        %v3477 = vpow.pop %v3476
        %v3478 = vmul.f32 %v3404, 1.442695
        %v3479 = vpow.pop %v3478
        %v3480 = vmul.f32 %v3405, 1.442695
        %v3481 = vpow.pop %v3480
        %v3482 = vmul.f32 %v3406, 1.442695
        %v3483 = vpow.pop %v3482
        %v3484 = vmul.f32 %v3407, 1.442695
        %v3485 = vpow.pop %v3484
        %v3486 = vmul.f32 %v3408, 1.442695
        %v3487 = vpow.pop %v3486
        %v3488 = vmul.f32 %v3409, 1.442695
        %v3489 = vpow.pop %v3488
        %v3490 = vmul.f32 %v3410, 1.442695
        %v3491 = vpow.pop %v3490
        %v3492 = vmul.f32 %v3411, 1.442695
        %v3493 = vpow.pop %v3492
        %v3494 = vmul.f32 %v3412, 1.442695
        %v3495 = vpow.pop %v3494
        %v3496 = vmul.f32 %v3413, 1.442695
        %v3497 = vpow.pop %v3496
        %v3498 = vmul.f32 %v3414, 1.442695
        %v3499 = vpow.pop %v3498
        %v3500 = vmul.f32 %v3415, 1.442695
        %v3501 = vpow.pop %v3500
        %v3502 = vmul.f32 %v3416, 1.442695
        %v3503 = vpow.pop %v3502
        %v3504 = vmul.f32 %v3417, 1.442695
        %v3505 = vpow.pop %v3504
        %v3506 = vmul.f32 %v3418, 1.442695
        %v3507 = vpow.pop %v3506
        %v3508 = vmul.f32 %v3419, 1.442695
        %v3509 = vpow.pop %v3508
        %v3510 = vmul.f32 %v3420, 1.442695
        %v3511 = vpow.pop %v3510
        %v3512 = vmul.f32 %v3421, 1.442695
        %v3513 = vpow.pop %v3512
        %v3514 = vmul.f32 %v3422, 1.442695
        %v3515 = vpow.pop %v3514
        %v3516 = vmul.f32 %v3423, 1.442695
        %v3517 = vpow.pop %v3516
        %v3518 = vmul.f32 %v3424, 1.442695
        %v3519 = vpow.pop %v3518
        %v3520 = vmul.f32 %v3425, 1.442695
        %v3521 = vpow.pop %v3520
        %v3522 = vmul.f32 %v3426, 1.442695
        %v3523 = vpow.pop %v3522
        %v3524 = vmul.f32 %v3427, 1.442695
        %v3525 = vpow.pop %v3524
        %v3526 = vmul.f32 %v3428, 1.442695
        %v3527 = vpow.pop %v3526
        %v3528 = vmul.f32 %v3429, 1.442695
        %v3529 = vpow.pop %v3528
        %v3530 = vmul.f32 %v3430, 1.442695
        %v3531 = vpow.pop %v3530
        %v3532 = vmul.f32 %v3431, 1.442695
        %v3533 = vpow.pop %v3532
        %v3534 = vmul.f32 %v3432, 1.442695
        %v3535 = vpow.pop %v3534
        %v3536 = vmul.f32 %v3433, 1.442695
        %v3537 = vpow.pop %v3536
        %v3538 = vmul.f32 %v3434, 1.442695
        %v3539 = vpow.pop %v3538
        %v3540 = vmul.f32 %v3435, 1.442695
        %v3541 = vpow.pop %v3540
        %v3542 = vmul.f32 %v3436, 1.442695
        %v3543 = vpow.pop %v3542
        %v3544 = vmul.f32 %v3437, 1.442695
        %v3545 = vpow.pop %v3544
        %v3546 = vmul.f32 %v3438, 1.442695
        %v3547 = vpow.pop %v3546
        %v3548 = vmul.f32 %v3439, 1.442695
        %v3549 = vpow.pop %v3548
        %v3550 = vmul.f32 %v3440, 1.442695
        %v3551 = vpow.pop %v3550
        %v3552 = vmul.f32 %v3441, 1.442695
        %v3553 = vpow.pop %v3552
        %v3554 = vmul.f32 %v3442, 1.442695
        %v3555 = vpow.pop %v3554
        %v3556 = vmul.f32 %v3443, 1.442695
        %v3557 = vpow.pop %v3556
        %v3558 = vmul.f32 %v3444, 1.442695
        %v3559 = vpow.pop %v3558
        %v3560 = vmul.f32 %v3445, 1.442695
        %v3561 = vpow.pop %v3560
        %v3562 = vmul.f32 %v3446, 1.442695
        %v3563 = vpow.pop %v3562
        %v3564 = vmul.f32 %v3447, 1.442695
        %v3565 = vpow.pop %v3564
        %v3566 = vmul.f32 %v3448, 1.442695
        %v3567 = vpow.pop %v3566
        %v3568 = vmul.f32 %v3449, 1.442695
        %v3569 = vpow.pop %v3568
        %v3570 = vmul.f32 %v3450, 1.442695
        %v3571 = vpow.pop %v3570
        %v3572 = vmul.f32 %v3451, 1.442695
        %v3573 = vpow.pop %v3572
        %v3574 = vmul.f32 %v3452, 1.442695
        %v3575 = vpow.pop %v3574
        %v3576 = vmul.f32 %v3453, 1.442695
        %v3577 = vpow.pop %v3576
        %v3578 = vmul.f32 %v3454, 1.442695
        %v3579 = vpow.pop %v3578
        %v3580 = vmul.f32 %v3455, 1.442695
        %v3581 = vpow.pop %v3580
        %v3582 = vmul.f32 %v3456, 1.442695
        %v3583 = vpow.pop %v3582
        %v3584 = vmul.f32 %v3457, 1.442695
        %v3585 = vpow.pop %v3584
        %v3586 = vadd.f32 %v3459, 1.0
        %v3587 = vadd.f32 %v3461, 1.0
        %v3588 = vadd.f32 %v3463, 1.0
        %v3589 = vadd.f32 %v3465, 1.0
        %v3590 = vadd.f32 %v3467, 1.0
        %v3591 = vadd.f32 %v3469, 1.0
        %v3592 = vadd.f32 %v3471, 1.0
        %v3593 = vadd.f32 %v3473, 1.0
        %v3594 = vadd.f32 %v3475, 1.0
        %v3595 = vadd.f32 %v3477, 1.0
        %v3596 = vadd.f32 %v3479, 1.0
        %v3597 = vadd.f32 %v3481, 1.0
        %v3598 = vadd.f32 %v3483, 1.0
        %v3599 = vadd.f32 %v3485, 1.0
        %v3600 = vadd.f32 %v3487, 1.0
        %v3601 = vadd.f32 %v3489, 1.0
        %v3602 = vadd.f32 %v3491, 1.0
        %v3603 = vadd.f32 %v3493, 1.0
        %v3604 = vadd.f32 %v3495, 1.0
        %v3605 = vadd.f32 %v3497, 1.0
        %v3606 = vadd.f32 %v3499, 1.0
        %v3607 = vadd.f32 %v3501, 1.0
        %v3608 = vadd.f32 %v3503, 1.0
        %v3609 = vadd.f32 %v3505, 1.0
        %v3610 = vadd.f32 %v3507, 1.0
        %v3611 = vadd.f32 %v3509, 1.0
        %v3612 = vadd.f32 %v3511, 1.0
        %v3613 = vadd.f32 %v3513, 1.0
        %v3614 = vadd.f32 %v3515, 1.0
        %v3615 = vadd.f32 %v3517, 1.0
        %v3616 = vadd.f32 %v3519, 1.0
        %v3617 = vadd.f32 %v3521, 1.0
        %v3618 = vadd.f32 %v3523, 1.0
        %v3619 = vadd.f32 %v3525, 1.0
        %v3620 = vadd.f32 %v3527, 1.0
        %v3621 = vadd.f32 %v3529, 1.0
        %v3622 = vadd.f32 %v3531, 1.0
        %v3623 = vadd.f32 %v3533, 1.0
        %v3624 = vadd.f32 %v3535, 1.0
        %v3625 = vadd.f32 %v3537, 1.0
        %v3626 = vadd.f32 %v3539, 1.0
        %v3627 = vadd.f32 %v3541, 1.0
        %v3628 = vadd.f32 %v3543, 1.0
        %v3629 = vadd.f32 %v3545, 1.0
        %v3630 = vadd.f32 %v3547, 1.0
        %v3631 = vadd.f32 %v3549, 1.0
        %v3632 = vadd.f32 %v3551, 1.0
        %v3633 = vadd.f32 %v3553, 1.0
        %v3634 = vadd.f32 %v3555, 1.0
        %v3635 = vadd.f32 %v3557, 1.0
        %v3636 = vadd.f32 %v3559, 1.0
        %v3637 = vadd.f32 %v3561, 1.0
        %v3638 = vadd.f32 %v3563, 1.0
        %v3639 = vadd.f32 %v3565, 1.0
        %v3640 = vadd.f32 %v3567, 1.0
        %v3641 = vadd.f32 %v3569, 1.0
        %v3642 = vadd.f32 %v3571, 1.0
        %v3643 = vadd.f32 %v3573, 1.0
        %v3644 = vadd.f32 %v3575, 1.0
        %v3645 = vadd.f32 %v3577, 1.0
        %v3646 = vadd.f32 %v3579, 1.0
        %v3647 = vadd.f32 %v3581, 1.0
        %v3648 = vadd.f32 %v3583, 1.0
        %v3649 = vadd.f32 %v3585, 1.0
        %v3650 = vrcp.pop %v3586
        %v3651 = vrcp.pop %v3587
        %v3652 = vrcp.pop %v3588
        %v3653 = vrcp.pop %v3589
        %v3654 = vrcp.pop %v3590
        %v3655 = vrcp.pop %v3591
        %v3656 = vrcp.pop %v3592
        %v3657 = vrcp.pop %v3593
        %v3658 = vrcp.pop %v3594
        %v3659 = vrcp.pop %v3595
        %v3660 = vrcp.pop %v3596
        %v3661 = vrcp.pop %v3597
        %v3662 = vrcp.pop %v3598
        %v3663 = vrcp.pop %v3599
        %v3664 = vrcp.pop %v3600
        %v3665 = vrcp.pop %v3601
        %v3666 = vrcp.pop %v3602
        %v3667 = vrcp.pop %v3603
        %v3668 = vrcp.pop %v3604
        %v3669 = vrcp.pop %v3605
        %v3670 = vrcp.pop %v3606
        %v3671 = vrcp.pop %v3607
        %v3672 = vrcp.pop %v3608
        %v3673 = vrcp.pop %v3609
        %v3674 = vrcp.pop %v3610
        %v3675 = vrcp.pop %v3611
        %v3676 = vrcp.pop %v3612
        %v3677 = vrcp.pop %v3613
        %v3678 = vrcp.pop %v3614
        %v3679 = vrcp.pop %v3615
        %v3680 = vrcp.pop %v3616
        %v3681 = vrcp.pop %v3617
        %v3682 = vrcp.pop %v3618
        %v3683 = vrcp.pop %v3619
        %v3684 = vrcp.pop %v3620
        %v3685 = vrcp.pop %v3621
        %v3686 = vrcp.pop %v3622
        %v3687 = vrcp.pop %v3623
        %v3688 = vrcp.pop %v3624
        %v3689 = vrcp.pop %v3625
        %v3690 = vrcp.pop %v3626
        %v3691 = vrcp.pop %v3627
        %v3692 = vrcp.pop %v3628
        %v3693 = vrcp.pop %v3629
        %v3694 = vrcp.pop %v3630
        %v3695 = vrcp.pop %v3631
        %v3696 = vrcp.pop %v3632
        %v3697 = vrcp.pop %v3633
        %v3698 = vrcp.pop %v3634
        %v3699 = vrcp.pop %v3635
        %v3700 = vrcp.pop %v3636
        %v3701 = vrcp.pop %v3637
        %v3702 = vrcp.pop %v3638
        %v3703 = vrcp.pop %v3639
        %v3704 = vrcp.pop %v3640
        %v3705 = vrcp.pop %v3641
        %v3706 = vrcp.pop %v3642
        %v3707 = vrcp.pop %v3643
        %v3708 = vrcp.pop %v3644
        %v3709 = vrcp.pop %v3645
        %v3710 = vrcp.pop %v3646
        %v3711 = vrcp.pop %v3647
        %v3712 = vrcp.pop %v3648
        %v3713 = vrcp.pop %v3649
        %v3714 = vpack.c.bf16 %v3652, %v3650
        %v3715 = vpack.c.bf16 %v3653, %v3651
        %v3716 = vpack.c.bf16 %v3656, %v3654
        %v3717 = vpack.c.bf16 %v3657, %v3655
        %v3718 = vpack.c.bf16 %v3660, %v3658
        %v3719 = vpack.c.bf16 %v3661, %v3659
        %v3720 = vpack.c.bf16 %v3664, %v3662
        %v3721 = vpack.c.bf16 %v3665, %v3663
        %v3722 = vpack.c.bf16 %v3668, %v3666
        %v3723 = vpack.c.bf16 %v3669, %v3667
        %v3724 = vpack.c.bf16 %v3672, %v3670
        %v3725 = vpack.c.bf16 %v3673, %v3671
        %v3726 = vpack.c.bf16 %v3676, %v3674
        %v3727 = vpack.c.bf16 %v3677, %v3675
        %v3728 = vpack.c.bf16 %v3680, %v3678
        %v3729 = vpack.c.bf16 %v3681, %v3679
        %v3730 = vpack.c.bf16 %v3684, %v3682
        %v3731 = vpack.c.bf16 %v3685, %v3683
        %v3732 = vpack.c.bf16 %v3688, %v3686
        %v3733 = vpack.c.bf16 %v3689, %v3687
        %v3734 = vpack.c.bf16 %v3692, %v3690
        %v3735 = vpack.c.bf16 %v3693, %v3691
        %v3736 = vpack.c.bf16 %v3696, %v3694
        %v3737 = vpack.c.bf16 %v3697, %v3695
        %v3738 = vpack.c.bf16 %v3700, %v3698
        %v3739 = vpack.c.bf16 %v3701, %v3699
        %v3740 = vpack.c.bf16 %v3704, %v3702
        %v3741 = vpack.c.bf16 %v3705, %v3703
        %v3742 = vpack.c.bf16 %v3708, %v3706
        %v3743 = vpack.c.bf16 %v3709, %v3707
        %v3744 = vpack.c.bf16 %v3712, %v3710
        %v3745 = vpack.c.bf16 %v3713, %v3711
        %v3746 = vmul.bf16 %v3298, %v3714
        %v3747 = vmul.bf16 %v3299, %v3715
        %v3748 = vmul.bf16 %v3300, %v3716
        %v3749 = vmul.bf16 %v3301, %v3717
        %v3750 = vmul.bf16 %v3302, %v3718
        %v3751 = vmul.bf16 %v3303, %v3719
        %v3752 = vmul.bf16 %v3304, %v3720
        %v3753 = vmul.bf16 %v3305, %v3721
        %v3754 = vmul.bf16 %v3306, %v3722
        %v3755 = vmul.bf16 %v3307, %v3723
        %v3756 = vmul.bf16 %v3308, %v3724
        %v3757 = vmul.bf16 %v3309, %v3725
        %v3758 = vmul.bf16 %v3310, %v3726
        %v3759 = vmul.bf16 %v3311, %v3727
        %v3760 = vmul.bf16 %v3312, %v3728
        %v3761 = vmul.bf16 %v3313, %v3729
        %v3762 = vmul.bf16 %v3314, %v3730
        %v3763 = vmul.bf16 %v3315, %v3731
        %v3764 = vmul.bf16 %v3316, %v3732
        %v3765 = vmul.bf16 %v3317, %v3733
        %v3766 = vmul.bf16 %v3318, %v3734
        %v3767 = vmul.bf16 %v3319, %v3735
        %v3768 = vmul.bf16 %v3320, %v3736
        %v3769 = vmul.bf16 %v3321, %v3737
        %v3770 = vmul.bf16 %v3322, %v3738
        %v3771 = vmul.bf16 %v3323, %v3739
        %v3772 = vmul.bf16 %v3324, %v3740
        %v3773 = vmul.bf16 %v3325, %v3741
        %v3774 = vmul.bf16 %v3326, %v3742
        %v3775 = vmul.bf16 %v3327, %v3743
        %v3776 = vmul.bf16 %v3328, %v3744
        %v3777 = vmul.bf16 %v3329, %v3745
        %v3778 = vld [vmem:[%s5] sm:$0xff]
        %v3779 = vld [vmem:[%s5 + $0x8] sm:$0xff]
        %v3780 = vld [vmem:[%s5 + $0x10] sm:$0xff]
        %v3781 = vld [vmem:[%s5 + $0x18] sm:$0xff]
        %v3782 = vld [vmem:[%s5 + $0x20] sm:$0xff]
        %v3783 = vld [vmem:[%s5 + $0x28] sm:$0xff]
        %v3784 = vld [vmem:[%s5 + $0x30] sm:$0xff]
        %v3785 = vld [vmem:[%s5 + $0x38] sm:$0xff]
        %v3786 = vld [vmem:[%s5 + $0x40] sm:$0xff]
        %v3787 = vld [vmem:[%s5 + $0x48] sm:$0xff]
        %v3788 = vld [vmem:[%s5 + $0x50] sm:$0xff]
        %v3789 = vld [vmem:[%s5 + $0x58] sm:$0xff]
        %v3790 = vld [vmem:[%s5 + $0x60] sm:$0xff]
        %v3791 = vld [vmem:[%s5 + $0x68] sm:$0xff]
        %v3792 = vld [vmem:[%s5 + $0x70] sm:$0xff]
        %v3793 = vld [vmem:[%s5 + $0x78] sm:$0xff]
        %v3794 = vld [vmem:[%s5 + $0x80] sm:$0xff]
        %v3795 = vld [vmem:[%s5 + $0x88] sm:$0xff]
        %v3796 = vld [vmem:[%s5 + $0x90] sm:$0xff]
        %v3797 = vld [vmem:[%s5 + $0x98] sm:$0xff]
        %v3798 = vld [vmem:[%s5 + $0xa0] sm:$0xff]
        %v3799 = vld [vmem:[%s5 + $0xa8] sm:$0xff]
        %v3800 = vld [vmem:[%s5 + $0xb0] sm:$0xff]
        %v3801 = vld [vmem:[%s5 + $0xb8] sm:$0xff]
        %v3802 = vld [vmem:[%s5 + $0xc0] sm:$0xff]
        %v3803 = vld [vmem:[%s5 + $0xc8] sm:$0xff]
        %v3804 = vld [vmem:[%s5 + $0xd0] sm:$0xff]
        %v3805 = vld [vmem:[%s5 + $0xd8] sm:$0xff]
        %v3806 = vld [vmem:[%s5 + $0xe0] sm:$0xff]
        %v3807 = vld [vmem:[%s5 + $0xe8] sm:$0xff]
        %v3808 = vld [vmem:[%s5 + $0xf0] sm:$0xff]
        %v3809 = vld [vmem:[%s5 + $0xf8] sm:$0xff]
        %s3810 = scalar_lea.vmem %s6, 2
        %v3811 = vld [vmem:[%s3810] ss:$4 sm:$0x3]
        %v3813 = vlaneseq
        %v3814 = vshrl.u32 %v3813, 7
        %v3815 = vsub.s32 0, %v3814
        %v3816 = vrot.slane %v3811, %v3815
        %v3817 = vlaneseq
        %v3818 = vshrl.u32 %v3817, 7
        %v3819 = vsub.s32 1, %v3818
        %v3820 = vrot.slane %v3811, %v3819
        %v3855 = vunpack.c.l.b16 %v3778
        %v3856 = vunpack.c.h.b16 %v3778
        %v3857 = vunpack.c.l.b16 %v3779
        %v3858 = vunpack.c.h.b16 %v3779
        %v3859 = vunpack.c.l.b16 %v3780
        %v3860 = vunpack.c.h.b16 %v3780
        %v3861 = vunpack.c.l.b16 %v3781
        %v3862 = vunpack.c.h.b16 %v3781
        %v3863 = vunpack.c.l.b16 %v3782
        %v3864 = vunpack.c.h.b16 %v3782
        %v3865 = vunpack.c.l.b16 %v3783
        %v3866 = vunpack.c.h.b16 %v3783
        %v3867 = vunpack.c.l.b16 %v3784
        %v3868 = vunpack.c.h.b16 %v3784
        %v3869 = vunpack.c.l.b16 %v3785
        %v3870 = vunpack.c.h.b16 %v3785
        %v3871 = vunpack.c.l.b16 %v3786
        %v3872 = vunpack.c.h.b16 %v3786
        %v3873 = vunpack.c.l.b16 %v3787
        %v3874 = vunpack.c.h.b16 %v3787
        %v3875 = vunpack.c.l.b16 %v3788
        %v3876 = vunpack.c.h.b16 %v3788
        %v3877 = vunpack.c.l.b16 %v3789
        %v3878 = vunpack.c.h.b16 %v3789
        %v3879 = vunpack.c.l.b16 %v3790
        %v3880 = vunpack.c.h.b16 %v3790
        %v3881 = vunpack.c.l.b16 %v3791
        %v3882 = vunpack.c.h.b16 %v3791
        %v3883 = vunpack.c.l.b16 %v3792
        %v3884 = vunpack.c.h.b16 %v3792
        %v3885 = vunpack.c.l.b16 %v3793
        %v3886 = vunpack.c.h.b16 %v3793
        %v3887 = vunpack.c.l.b16 %v3794
        %v3888 = vunpack.c.h.b16 %v3794
        %v3889 = vunpack.c.l.b16 %v3795
        %v3890 = vunpack.c.h.b16 %v3795
        %v3891 = vunpack.c.l.b16 %v3796
        %v3892 = vunpack.c.h.b16 %v3796
        %v3893 = vunpack.c.l.b16 %v3797
        %v3894 = vunpack.c.h.b16 %v3797
        %v3895 = vunpack.c.l.b16 %v3798
        %v3896 = vunpack.c.h.b16 %v3798
        %v3897 = vunpack.c.l.b16 %v3799
        %v3898 = vunpack.c.h.b16 %v3799
        %v3899 = vunpack.c.l.b16 %v3800
        %v3900 = vunpack.c.h.b16 %v3800
        %v3901 = vunpack.c.l.b16 %v3801
        %v3902 = vunpack.c.h.b16 %v3801
        %v3903 = vunpack.c.l.b16 %v3802
        %v3904 = vunpack.c.h.b16 %v3802
        %v3905 = vunpack.c.l.b16 %v3803
        %v3906 = vunpack.c.h.b16 %v3803
        %v3907 = vunpack.c.l.b16 %v3804
        %v3908 = vunpack.c.h.b16 %v3804
        %v3909 = vunpack.c.l.b16 %v3805
        %v3910 = vunpack.c.h.b16 %v3805
        %v3911 = vunpack.c.l.b16 %v3806
        %v3912 = vunpack.c.h.b16 %v3806
        %v3913 = vunpack.c.l.b16 %v3807
        %v3914 = vunpack.c.h.b16 %v3807
        %v3915 = vunpack.c.l.b16 %v3808
        %v3916 = vunpack.c.h.b16 %v3808
        %v3917 = vunpack.c.l.b16 %v3809
        %v3918 = vunpack.c.h.b16 %v3809
        %v3919 = vpack.c.b16 %v3857, %v3855
        %v3920 = vpack.c.b16 %v3858, %v3856
        %v3921 = vpack.c.b16 %v3861, %v3859
        %v3922 = vpack.c.b16 %v3862, %v3860
        %v3923 = vpack.c.b16 %v3865, %v3863
        %v3924 = vpack.c.b16 %v3866, %v3864
        %v3925 = vpack.c.b16 %v3869, %v3867
        %v3926 = vpack.c.b16 %v3870, %v3868
        %v3927 = vpack.c.b16 %v3873, %v3871
        %v3928 = vpack.c.b16 %v3874, %v3872
        %v3929 = vpack.c.b16 %v3877, %v3875
        %v3930 = vpack.c.b16 %v3878, %v3876
        %v3931 = vpack.c.b16 %v3881, %v3879
        %v3932 = vpack.c.b16 %v3882, %v3880
        %v3933 = vpack.c.b16 %v3885, %v3883
        %v3934 = vpack.c.b16 %v3886, %v3884
        %v3935 = vpack.c.b16 %v3889, %v3887
        %v3936 = vpack.c.b16 %v3890, %v3888
        %v3937 = vpack.c.b16 %v3893, %v3891
        %v3938 = vpack.c.b16 %v3894, %v3892
        %v3939 = vpack.c.b16 %v3897, %v3895
        %v3940 = vpack.c.b16 %v3898, %v3896
        %v3941 = vpack.c.b16 %v3901, %v3899
        %v3942 = vpack.c.b16 %v3902, %v3900
        %v3943 = vpack.c.b16 %v3905, %v3903
        %v3944 = vpack.c.b16 %v3906, %v3904
        %v3945 = vpack.c.b16 %v3909, %v3907
        %v3946 = vpack.c.b16 %v3910, %v3908
        %v3947 = vpack.c.b16 %v3913, %v3911
        %v3948 = vpack.c.b16 %v3914, %v3912
        %v3949 = vpack.c.b16 %v3917, %v3915
        %v3950 = vpack.c.b16 %v3918, %v3916
        %3983 = vmatprep.subr.bf16.mxu0 %v3920
        %3984 = vmatpush1.bf16.msra.mxu0 %v3919
        %3985 = vmatprep.subr.bf16.mxu0 %v3922
        %3986 = vmatpush1.bf16.msra.mxu0 %v3921
        %3987 = vmatprep.subr.bf16.mxu0 %v3924
        %3988 = vmatpush1.bf16.msra.mxu0 %v3923
        %3989 = vmatprep.subr.bf16.mxu0 %v3926
        %3990 = vmatpush1.bf16.msra.mxu0 %v3925
        %3991 = vmatprep.subr.bf16.mxu0 %v3928
        %3992 = vmatpush1.bf16.msra.mxu0 %v3927
        %3993 = vmatprep.subr.bf16.mxu0 %v3930
        %3994 = vmatpush1.bf16.msra.mxu0 %v3929
        %3995 = vmatprep.subr.bf16.mxu0 %v3932
        %3996 = vmatpush1.bf16.msra.mxu0 %v3931
        %3997 = vmatprep.subr.bf16.mxu0 %v3934
        %3998 = vmatpush1.bf16.msra.mxu0 %v3933
        %3999 = vmatprep.subr.bf16.mxu0 %v3936
        %4000 = vmatpush1.bf16.msra.mxu0 %v3935
        %4001 = vmatprep.subr.bf16.mxu0 %v3938
        %4002 = vmatpush1.bf16.msra.mxu0 %v3937
        %4003 = vmatprep.subr.bf16.mxu0 %v3940
        %4004 = vmatpush1.bf16.msra.mxu0 %v3939
        %4005 = vmatprep.subr.bf16.mxu0 %v3942
        %4006 = vmatpush1.bf16.msra.mxu0 %v3941
        %4007 = vmatprep.subr.bf16.mxu0 %v3944
        %4008 = vmatpush1.bf16.msra.mxu0 %v3943
        %4009 = vmatprep.subr.bf16.mxu0 %v3946
        %4010 = vmatpush1.bf16.msra.mxu0 %v3945
        %4011 = vmatprep.subr.bf16.mxu0 %v3948
        %4012 = vmatpush1.bf16.msra.mxu0 %v3947
        %4013 = vmatprep.subr.bf16.mxu0 %v3950
        %4014 = vmatpush1.bf16.msra.mxu0 %v3949
        %4015 = vmatprep.mubr.bf16.mxu0 %v3747
        %4016 = vmatmul.mubr.bf16.gmra.mrb[0].mxu0 %v3746
        %v4017 = vpop.f32.mrb[0].mxu0
        %v4018 = vadd.f32 %v3816, %v4017
        %v4019 = vpop.f32.mrb[0].mxu0
        %v4020 = vadd.f32 %v3820, %v4019
        %v4021 = vpop.f32.mrb[0].mxu0
        %v4022 = vadd.f32 %v3816, %v4021
        %v4023 = vpop.f32.mrb[0].mxu0
        %v4024 = vadd.f32 %v3820, %v4023
        %4025 = vmatprep.mubr.bf16.mxu0 %v3749
        %4026 = vmatmul.mubr.bf16.gmra.mrb[0].mxu0 %v3748
        %v4027 = vpop.f32.mrb[0].mxu0
        %v4028 = vadd.f32 %v3816, %v4027
        %v4029 = vpop.f32.mrb[0].mxu0
        %v4030 = vadd.f32 %v3820, %v4029
        %v4031 = vpop.f32.mrb[0].mxu0
        %v4032 = vadd.f32 %v3816, %v4031
        %v4033 = vpop.f32.mrb[0].mxu0
        %v4034 = vadd.f32 %v3820, %v4033
        %4035 = vmatprep.mubr.bf16.mxu0 %v3751
        %4036 = vmatmul.mubr.bf16.gmra.mrb[0].mxu0 %v3750
        %v4037 = vpop.f32.mrb[0].mxu0
        %v4038 = vadd.f32 %v3816, %v4037
        %v4039 = vpop.f32.mrb[0].mxu0
        %v4040 = vadd.f32 %v3820, %v4039
        %v4041 = vpop.f32.mrb[0].mxu0
        %v4042 = vadd.f32 %v3816, %v4041
        %v4043 = vpop.f32.mrb[0].mxu0
        %v4044 = vadd.f32 %v3820, %v4043
        %4045 = vmatprep.mubr.bf16.mxu0 %v3753
        %4046 = vmatmul.mubr.bf16.gmra.mrb[0].mxu0 %v3752
        %v4047 = vpop.f32.mrb[0].mxu0
        %v4048 = vadd.f32 %v3816, %v4047
        %v4049 = vpop.f32.mrb[0].mxu0
        %v4050 = vadd.f32 %v3820, %v4049
        %v4051 = vpop.f32.mrb[0].mxu0
        %v4052 = vadd.f32 %v3816, %v4051
        %v4053 = vpop.f32.mrb[0].mxu0
        %v4054 = vadd.f32 %v3820, %v4053
        %4055 = vmatprep.mubr.bf16.mxu0 %v3755
        %4056 = vmatmul.mubr.bf16.gmra.mrb[0].mxu0 %v3754
        %v4057 = vpop.f32.mrb[0].mxu0
        %v4058 = vadd.f32 %v3816, %v4057
        %v4059 = vpop.f32.mrb[0].mxu0
        %v4060 = vadd.f32 %v3820, %v4059
        %v4061 = vpop.f32.mrb[0].mxu0
        %v4062 = vadd.f32 %v3816, %v4061
        %v4063 = vpop.f32.mrb[0].mxu0
        %v4064 = vadd.f32 %v3820, %v4063
        %4065 = vmatprep.mubr.bf16.mxu0 %v3757
        %4066 = vmatmul.mubr.bf16.gmra.mrb[0].mxu0 %v3756
        %v4067 = vpop.f32.mrb[0].mxu0
        %v4068 = vadd.f32 %v3816, %v4067
        %v4069 = vpop.f32.mrb[0].mxu0
        %v4070 = vadd.f32 %v3820, %v4069
        %v4071 = vpop.f32.mrb[0].mxu0
        %v4072 = vadd.f32 %v3816, %v4071
        %v4073 = vpop.f32.mrb[0].mxu0
        %v4074 = vadd.f32 %v3820, %v4073
        %4075 = vmatprep.mubr.bf16.mxu0 %v3759
        %4076 = vmatmul.mubr.bf16.gmra.mrb[0].mxu0 %v3758
        %v4077 = vpop.f32.mrb[0].mxu0
        %v4078 = vadd.f32 %v3816, %v4077
        %v4079 = vpop.f32.mrb[0].mxu0
        %v4080 = vadd.f32 %v3820, %v4079
        %v4081 = vpop.f32.mrb[0].mxu0
        %v4082 = vadd.f32 %v3816, %v4081
        %v4083 = vpop.f32.mrb[0].mxu0
        %v4084 = vadd.f32 %v3820, %v4083
        %4085 = vmatprep.mubr.bf16.mxu0 %v3761
        %4086 = vmatmul.mubr.bf16.gmra.mrb[0].mxu0 %v3760
        %v4087 = vpop.f32.mrb[0].mxu0
        %v4088 = vadd.f32 %v3816, %v4087
        %v4089 = vpop.f32.mrb[0].mxu0
        %v4090 = vadd.f32 %v3820, %v4089
        %v4091 = vpop.f32.mrb[0].mxu0
        %v4092 = vadd.f32 %v3816, %v4091
        %v4093 = vpop.f32.mrb[0].mxu0
        %v4094 = vadd.f32 %v3820, %v4093
        %4095 = vmatprep.mubr.bf16.mxu0 %v3763
        %4096 = vmatmul.mubr.bf16.gmra.mrb[0].mxu0 %v3762
        %v4097 = vpop.f32.mrb[0].mxu0
        %v4098 = vadd.f32 %v3816, %v4097
        %v4099 = vpop.f32.mrb[0].mxu0
        %v4100 = vadd.f32 %v3820, %v4099
        %v4101 = vpop.f32.mrb[0].mxu0
        %v4102 = vadd.f32 %v3816, %v4101
        %v4103 = vpop.f32.mrb[0].mxu0
        %v4104 = vadd.f32 %v3820, %v4103
        %4105 = vmatprep.mubr.bf16.mxu0 %v3765
        %4106 = vmatmul.mubr.bf16.gmra.mrb[0].mxu0 %v3764
        %v4107 = vpop.f32.mrb[0].mxu0
        %v4108 = vadd.f32 %v3816, %v4107
        %v4109 = vpop.f32.mrb[0].mxu0
        %v4110 = vadd.f32 %v3820, %v4109
        %v4111 = vpop.f32.mrb[0].mxu0
        %v4112 = vadd.f32 %v3816, %v4111
        %v4113 = vpop.f32.mrb[0].mxu0
        %v4114 = vadd.f32 %v3820, %v4113
        %4115 = vmatprep.mubr.bf16.mxu0 %v3767
        %4116 = vmatmul.mubr.bf16.gmra.mrb[0].mxu0 %v3766
        %v4117 = vpop.f32.mrb[0].mxu0
        %v4118 = vadd.f32 %v3816, %v4117
        %v4119 = vpop.f32.mrb[0].mxu0
        %v4120 = vadd.f32 %v3820, %v4119
        %v4121 = vpop.f32.mrb[0].mxu0
        %v4122 = vadd.f32 %v3816, %v4121
        %v4123 = vpop.f32.mrb[0].mxu0
        %v4124 = vadd.f32 %v3820, %v4123
        %4125 = vmatprep.mubr.bf16.mxu0 %v3769
        %4126 = vmatmul.mubr.bf16.gmra.mrb[0].mxu0 %v3768
        %v4127 = vpop.f32.mrb[0].mxu0
        %v4128 = vadd.f32 %v3816, %v4127
        %v4129 = vpop.f32.mrb[0].mxu0
        %v4130 = vadd.f32 %v3820, %v4129
        %v4131 = vpop.f32.mrb[0].mxu0
        %v4132 = vadd.f32 %v3816, %v4131
        %v4133 = vpop.f32.mrb[0].mxu0
        %v4134 = vadd.f32 %v3820, %v4133
        %4135 = vmatprep.mubr.bf16.mxu0 %v3771
        %4136 = vmatmul.mubr.bf16.gmra.mrb[0].mxu0 %v3770
        %v4137 = vpop.f32.mrb[0].mxu0
        %v4138 = vadd.f32 %v3816, %v4137
        %v4139 = vpop.f32.mrb[0].mxu0
        %v4140 = vadd.f32 %v3820, %v4139
        %v4141 = vpop.f32.mrb[0].mxu0
        %v4142 = vadd.f32 %v3816, %v4141
        %v4143 = vpop.f32.mrb[0].mxu0
        %v4144 = vadd.f32 %v3820, %v4143
        %4145 = vmatprep.mubr.bf16.mxu0 %v3773
        %4146 = vmatmul.mubr.bf16.gmra.mrb[0].mxu0 %v3772
        %v4147 = vpop.f32.mrb[0].mxu0
        %v4148 = vadd.f32 %v3816, %v4147
        %v4149 = vpop.f32.mrb[0].mxu0
        %v4150 = vadd.f32 %v3820, %v4149
        %v4151 = vpop.f32.mrb[0].mxu0
        %v4152 = vadd.f32 %v3816, %v4151
        %v4153 = vpop.f32.mrb[0].mxu0
        %v4154 = vadd.f32 %v3820, %v4153
        %4155 = vmatprep.mubr.bf16.mxu0 %v3775
        %4156 = vmatmul.mubr.bf16.gmra.mrb[0].mxu0 %v3774
        %v4157 = vpop.f32.mrb[0].mxu0
        %v4158 = vadd.f32 %v3816, %v4157
        %v4159 = vpop.f32.mrb[0].mxu0
        %v4160 = vadd.f32 %v3820, %v4159
        %v4161 = vpop.f32.mrb[0].mxu0
        %v4162 = vadd.f32 %v3816, %v4161
        %v4163 = vpop.f32.mrb[0].mxu0
        %v4164 = vadd.f32 %v3820, %v4163
        %4165 = vmatprep.mubr.bf16.mxu0 %v3777
        %4166 = vmatmul.mubr.bf16.gmra.mrb[0].mxu0 %v3776
        %v4167 = vpop.f32.mrb[0].mxu0
        %v4168 = vadd.f32 %v3816, %v4167
        %v4169 = vpop.f32.mrb[0].mxu0
        %v4170 = vadd.f32 %v3820, %v4169
        %v4171 = vpop.f32.mrb[0].mxu0
        %v4172 = vadd.f32 %v3816, %v4171
        %v4173 = vpop.f32.mrb[0].mxu0
        %v4174 = vadd.f32 %v3820, %v4173
        %4175 = vdwg.mxu0
        %v4176 = vld [vmem:[%s7] sm:$0x44]
        %v4177 = vadd.f32 %v4018, %v4020
        %4178 = vadd.xlane.f32.xlu0 %v4177
        %v4179 = vpop.xlane.xlu0 %4178
        %v4180 = vadd.f32 %v4022, %v4024
        %4181 = vadd.xlane.f32.xlu0 %v4180
        %v4182 = vpop.xlane.xlu0 %4181
        %v4183 = vadd.f32 %v4028, %v4030
        %4184 = vadd.xlane.f32.xlu0 %v4183
        %v4185 = vpop.xlane.xlu0 %4184
        %v4186 = vadd.f32 %v4032, %v4034
        %4187 = vadd.xlane.f32.xlu0 %v4186
        %v4188 = vpop.xlane.xlu0 %4187
        %v4189 = vadd.f32 %v4038, %v4040
        %4190 = vadd.xlane.f32.xlu0 %v4189
        %v4191 = vpop.xlane.xlu0 %4190
        %v4192 = vadd.f32 %v4042, %v4044
        %4193 = vadd.xlane.f32.xlu0 %v4192
        %v4194 = vpop.xlane.xlu0 %4193
        %v4195 = vadd.f32 %v4048, %v4050
        %4196 = vadd.xlane.f32.xlu0 %v4195
        %v4197 = vpop.xlane.xlu0 %4196
        %v4198 = vadd.f32 %v4052, %v4054
        %4199 = vadd.xlane.f32.xlu0 %v4198
        %v4200 = vpop.xlane.xlu0 %4199
        %v4201 = vadd.f32 %v4058, %v4060
        %4202 = vadd.xlane.f32.xlu0 %v4201
        %v4203 = vpop.xlane.xlu0 %4202
        %v4204 = vadd.f32 %v4062, %v4064
        %4205 = vadd.xlane.f32.xlu0 %v4204
        %v4206 = vpop.xlane.xlu0 %4205
        %v4207 = vadd.f32 %v4068, %v4070
        %4208 = vadd.xlane.f32.xlu0 %v4207
        %v4209 = vpop.xlane.xlu0 %4208
        %v4210 = vadd.f32 %v4072, %v4074
        %4211 = vadd.xlane.f32.xlu0 %v4210
        %v4212 = vpop.xlane.xlu0 %4211
        %v4213 = vadd.f32 %v4078, %v4080
        %4214 = vadd.xlane.f32.xlu0 %v4213
        %v4215 = vpop.xlane.xlu0 %4214
        %v4216 = vadd.f32 %v4082, %v4084
        %4217 = vadd.xlane.f32.xlu0 %v4216
        %v4218 = vpop.xlane.xlu0 %4217
        %v4219 = vadd.f32 %v4088, %v4090
        %4220 = vadd.xlane.f32.xlu0 %v4219
        %v4221 = vpop.xlane.xlu0 %4220
        %v4222 = vadd.f32 %v4092, %v4094
        %4223 = vadd.xlane.f32.xlu0 %v4222
        %v4224 = vpop.xlane.xlu0 %4223
        %v4225 = vadd.f32 %v4098, %v4100
        %4226 = vadd.xlane.f32.xlu0 %v4225
        %v4227 = vpop.xlane.xlu0 %4226
        %v4228 = vadd.f32 %v4102, %v4104
        %4229 = vadd.xlane.f32.xlu0 %v4228
        %v4230 = vpop.xlane.xlu0 %4229
        %v4231 = vadd.f32 %v4108, %v4110
        %4232 = vadd.xlane.f32.xlu0 %v4231
        %v4233 = vpop.xlane.xlu0 %4232
        %v4234 = vadd.f32 %v4112, %v4114
        %4235 = vadd.xlane.f32.xlu0 %v4234
        %v4236 = vpop.xlane.xlu0 %4235
        %v4237 = vadd.f32 %v4118, %v4120
        %4238 = vadd.xlane.f32.xlu0 %v4237
        %v4239 = vpop.xlane.xlu0 %4238
        %v4240 = vadd.f32 %v4122, %v4124
        %4241 = vadd.xlane.f32.xlu0 %v4240
        %v4242 = vpop.xlane.xlu0 %4241
        %v4243 = vadd.f32 %v4128, %v4130
        %4244 = vadd.xlane.f32.xlu0 %v4243
        %v4245 = vpop.xlane.xlu0 %4244
        %v4246 = vadd.f32 %v4132, %v4134
        %4247 = vadd.xlane.f32.xlu0 %v4246
        %v4248 = vpop.xlane.xlu0 %4247
        %v4249 = vadd.f32 %v4138, %v4140
        %4250 = vadd.xlane.f32.xlu0 %v4249
        %v4251 = vpop.xlane.xlu0 %4250
        %v4252 = vadd.f32 %v4142, %v4144
        %4253 = vadd.xlane.f32.xlu0 %v4252
        %v4254 = vpop.xlane.xlu0 %4253
        %v4255 = vadd.f32 %v4148, %v4150
        %4256 = vadd.xlane.f32.xlu0 %v4255
        %v4257 = vpop.xlane.xlu0 %4256
        %v4258 = vadd.f32 %v4152, %v4154
        %4259 = vadd.xlane.f32.xlu0 %v4258
        %v4260 = vpop.xlane.xlu0 %4259
        %v4261 = vadd.f32 %v4158, %v4160
        %4262 = vadd.xlane.f32.xlu0 %v4261
        %v4263 = vpop.xlane.xlu0 %4262
        %v4264 = vadd.f32 %v4162, %v4164
        %4265 = vadd.xlane.f32.xlu0 %v4264
        %v4266 = vpop.xlane.xlu0 %4265
        %v4267 = vadd.f32 %v4168, %v4170
        %4268 = vadd.xlane.f32.xlu0 %v4267
        %v4269 = vpop.xlane.xlu0 %4268
        %v4270 = vadd.f32 %v4172, %v4174
        %4271 = vadd.xlane.f32.xlu0 %v4270
        %v4272 = vpop.xlane.xlu0 %4271
        %v4273 = vmul.f32 %v4179, %v1296
        %v4274 = vmul.f32 %v4182, %v1296
        %v4275 = vmul.f32 %v4185, %v1296
        %v4276 = vmul.f32 %v4188, %v1296
        %v4277 = vmul.f32 %v4191, %v1296
        %v4278 = vmul.f32 %v4194, %v1296
        %v4279 = vmul.f32 %v4197, %v1296
        %v4280 = vmul.f32 %v4200, %v1296
        %v4281 = vmul.f32 %v4203, %v1296
        %v4282 = vmul.f32 %v4206, %v1296
        %v4283 = vmul.f32 %v4209, %v1296
        %v4284 = vmul.f32 %v4212, %v1296
        %v4285 = vmul.f32 %v4215, %v1296
        %v4286 = vmul.f32 %v4218, %v1296
        %v4287 = vmul.f32 %v4221, %v1296
        %v4288 = vmul.f32 %v4224, %v1296
        %v4289 = vmul.f32 %v4227, %v1296
        %v4290 = vmul.f32 %v4230, %v1296
        %v4291 = vmul.f32 %v4233, %v1296
        %v4292 = vmul.f32 %v4236, %v1296
        %v4293 = vmul.f32 %v4239, %v1296
        %v4294 = vmul.f32 %v4242, %v1296
        %v4295 = vmul.f32 %v4245, %v1296
        %v4296 = vmul.f32 %v4248, %v1296
        %v4297 = vmul.f32 %v4251, %v1296
        %v4298 = vmul.f32 %v4254, %v1296
        %v4299 = vmul.f32 %v4257, %v1296
        %v4300 = vmul.f32 %v4260, %v1296
        %v4301 = vmul.f32 %v4263, %v1296
        %v4302 = vmul.f32 %v4266, %v1296
        %v4303 = vmul.f32 %v4269, %v1296
        %v4304 = vmul.f32 %v4272, %v1296
        %v4305 = vsub.f32 %v4018, %v4273
        %v4306 = vsub.f32 %v4020, %v4273
        %v4307 = vsub.f32 %v4022, %v4274
        %v4308 = vsub.f32 %v4024, %v4274
        %v4309 = vsub.f32 %v4028, %v4275
        %v4310 = vsub.f32 %v4030, %v4275
        %v4311 = vsub.f32 %v4032, %v4276
        %v4312 = vsub.f32 %v4034, %v4276
        %v4313 = vsub.f32 %v4038, %v4277
        %v4314 = vsub.f32 %v4040, %v4277
        %v4315 = vsub.f32 %v4042, %v4278
        %v4316 = vsub.f32 %v4044, %v4278
        %v4317 = vsub.f32 %v4048, %v4279
        %v4318 = vsub.f32 %v4050, %v4279
        %v4319 = vsub.f32 %v4052, %v4280
        %v4320 = vsub.f32 %v4054, %v4280
        %v4321 = vsub.f32 %v4058, %v4281
        %v4322 = vsub.f32 %v4060, %v4281
        %v4323 = vsub.f32 %v4062, %v4282
        %v4324 = vsub.f32 %v4064, %v4282
        %v4325 = vsub.f32 %v4068, %v4283
        %v4326 = vsub.f32 %v4070, %v4283
        %v4327 = vsub.f32 %v4072, %v4284
        %v4328 = vsub.f32 %v4074, %v4284
        %v4329 = vsub.f32 %v4078, %v4285
        %v4330 = vsub.f32 %v4080, %v4285
        %v4331 = vsub.f32 %v4082, %v4286
        %v4332 = vsub.f32 %v4084, %v4286
        %v4333 = vsub.f32 %v4088, %v4287
        %v4334 = vsub.f32 %v4090, %v4287
        %v4335 = vsub.f32 %v4092, %v4288
        %v4336 = vsub.f32 %v4094, %v4288
        %v4337 = vsub.f32 %v4098, %v4289
        %v4338 = vsub.f32 %v4100, %v4289
        %v4339 = vsub.f32 %v4102, %v4290
        %v4340 = vsub.f32 %v4104, %v4290
        %v4341 = vsub.f32 %v4108, %v4291
        %v4342 = vsub.f32 %v4110, %v4291
        %v4343 = vsub.f32 %v4112, %v4292
        %v4344 = vsub.f32 %v4114, %v4292
        %v4345 = vsub.f32 %v4118, %v4293
        %v4346 = vsub.f32 %v4120, %v4293
        %v4347 = vsub.f32 %v4122, %v4294
        %v4348 = vsub.f32 %v4124, %v4294
        %v4349 = vsub.f32 %v4128, %v4295
        %v4350 = vsub.f32 %v4130, %v4295
        %v4351 = vsub.f32 %v4132, %v4296
        %v4352 = vsub.f32 %v4134, %v4296
        %v4353 = vsub.f32 %v4138, %v4297
        %v4354 = vsub.f32 %v4140, %v4297
        %v4355 = vsub.f32 %v4142, %v4298
        %v4356 = vsub.f32 %v4144, %v4298
        %v4357 = vsub.f32 %v4148, %v4299
        %v4358 = vsub.f32 %v4150, %v4299
        %v4359 = vsub.f32 %v4152, %v4300
        %v4360 = vsub.f32 %v4154, %v4300
        %v4361 = vsub.f32 %v4158, %v4301
        %v4362 = vsub.f32 %v4160, %v4301
        %v4363 = vsub.f32 %v4162, %v4302
        %v4364 = vsub.f32 %v4164, %v4302
        %v4365 = vsub.f32 %v4168, %v4303
        %v4366 = vsub.f32 %v4170, %v4303
        %v4367 = vsub.f32 %v4172, %v4304
        %v4368 = vsub.f32 %v4174, %v4304
        %v4369 = vmul.f32 %v4305, %v4305
        %v4370 = vmul.f32 %v4306, %v4306
        %v4371 = vmul.f32 %v4307, %v4307
        %v4372 = vmul.f32 %v4308, %v4308
        %v4373 = vmul.f32 %v4309, %v4309
        %v4374 = vmul.f32 %v4310, %v4310
        %v4375 = vmul.f32 %v4311, %v4311
        %v4376 = vmul.f32 %v4312, %v4312
        %v4377 = vmul.f32 %v4313, %v4313
        %v4378 = vmul.f32 %v4314, %v4314
        %v4379 = vmul.f32 %v4315, %v4315
        %v4380 = vmul.f32 %v4316, %v4316
        %v4381 = vmul.f32 %v4317, %v4317
        %v4382 = vmul.f32 %v4318, %v4318
        %v4383 = vmul.f32 %v4319, %v4319
        %v4384 = vmul.f32 %v4320, %v4320
        %v4385 = vmul.f32 %v4321, %v4321
        %v4386 = vmul.f32 %v4322, %v4322
        %v4387 = vmul.f32 %v4323, %v4323
        %v4388 = vmul.f32 %v4324, %v4324
        %v4389 = vmul.f32 %v4325, %v4325
        %v4390 = vmul.f32 %v4326, %v4326
        %v4391 = vmul.f32 %v4327, %v4327
        %v4392 = vmul.f32 %v4328, %v4328
        %v4393 = vmul.f32 %v4329, %v4329
        %v4394 = vmul.f32 %v4330, %v4330
        %v4395 = vmul.f32 %v4331, %v4331
        %v4396 = vmul.f32 %v4332, %v4332
        %v4397 = vmul.f32 %v4333, %v4333
        %v4398 = vmul.f32 %v4334, %v4334
        %v4399 = vmul.f32 %v4335, %v4335
        %v4400 = vmul.f32 %v4336, %v4336
        %v4401 = vmul.f32 %v4337, %v4337
        %v4402 = vmul.f32 %v4338, %v4338
        %v4403 = vmul.f32 %v4339, %v4339
        %v4404 = vmul.f32 %v4340, %v4340
        %v4405 = vmul.f32 %v4341, %v4341
        %v4406 = vmul.f32 %v4342, %v4342
        %v4407 = vmul.f32 %v4343, %v4343
        %v4408 = vmul.f32 %v4344, %v4344
        %v4409 = vmul.f32 %v4345, %v4345
        %v4410 = vmul.f32 %v4346, %v4346
        %v4411 = vmul.f32 %v4347, %v4347
        %v4412 = vmul.f32 %v4348, %v4348
        %v4413 = vmul.f32 %v4349, %v4349
        %v4414 = vmul.f32 %v4350, %v4350
        %v4415 = vmul.f32 %v4351, %v4351
        %v4416 = vmul.f32 %v4352, %v4352
        %v4417 = vmul.f32 %v4353, %v4353
        %v4418 = vmul.f32 %v4354, %v4354
        %v4419 = vmul.f32 %v4355, %v4355
        %v4420 = vmul.f32 %v4356, %v4356
        %v4421 = vmul.f32 %v4357, %v4357
        %v4422 = vmul.f32 %v4358, %v4358
        %v4423 = vmul.f32 %v4359, %v4359
        %v4424 = vmul.f32 %v4360, %v4360
        %v4425 = vmul.f32 %v4361, %v4361
        %v4426 = vmul.f32 %v4362, %v4362
        %v4427 = vmul.f32 %v4363, %v4363
        %v4428 = vmul.f32 %v4364, %v4364
        %v4429 = vmul.f32 %v4365, %v4365
        %v4430 = vmul.f32 %v4366, %v4366
        %v4431 = vmul.f32 %v4367, %v4367
        %v4432 = vmul.f32 %v4368, %v4368
        %v4433 = vadd.f32 %v4369, %v4370
        %4434 = vadd.xlane.f32.xlu0 %v4433
        %v4435 = vpop.xlane.xlu0 %4434
        %v4436 = vadd.f32 %v4371, %v4372
        %4437 = vadd.xlane.f32.xlu0 %v4436
        %v4438 = vpop.xlane.xlu0 %4437
        %v4439 = vadd.f32 %v4373, %v4374
        %4440 = vadd.xlane.f32.xlu0 %v4439
        %v4441 = vpop.xlane.xlu0 %4440
        %v4442 = vadd.f32 %v4375, %v4376
        %4443 = vadd.xlane.f32.xlu0 %v4442
        %v4444 = vpop.xlane.xlu0 %4443
        %v4445 = vadd.f32 %v4377, %v4378
        %4446 = vadd.xlane.f32.xlu0 %v4445
        %v4447 = vpop.xlane.xlu0 %4446
        %v4448 = vadd.f32 %v4379, %v4380
        %4449 = vadd.xlane.f32.xlu0 %v4448
        %v4450 = vpop.xlane.xlu0 %4449
        %v4451 = vadd.f32 %v4381, %v4382
        %4452 = vadd.xlane.f32.xlu0 %v4451
        %v4453 = vpop.xlane.xlu0 %4452
        %v4454 = vadd.f32 %v4383, %v4384
        %4455 = vadd.xlane.f32.xlu0 %v4454
        %v4456 = vpop.xlane.xlu0 %4455
        %v4457 = vadd.f32 %v4385, %v4386
        %4458 = vadd.xlane.f32.xlu0 %v4457
        %v4459 = vpop.xlane.xlu0 %4458
        %v4460 = vadd.f32 %v4387, %v4388
        %4461 = vadd.xlane.f32.xlu0 %v4460
        %v4462 = vpop.xlane.xlu0 %4461
        %v4463 = vadd.f32 %v4389, %v4390
        %4464 = vadd.xlane.f32.xlu0 %v4463
        %v4465 = vpop.xlane.xlu0 %4464
        %v4466 = vadd.f32 %v4391, %v4392
        %4467 = vadd.xlane.f32.xlu0 %v4466
        %v4468 = vpop.xlane.xlu0 %4467
        %v4469 = vadd.f32 %v4393, %v4394
        %4470 = vadd.xlane.f32.xlu0 %v4469
        %v4471 = vpop.xlane.xlu0 %4470
        %v4472 = vadd.f32 %v4395, %v4396
        %4473 = vadd.xlane.f32.xlu0 %v4472
        %v4474 = vpop.xlane.xlu0 %4473
        %v4475 = vadd.f32 %v4397, %v4398
        %4476 = vadd.xlane.f32.xlu0 %v4475
        %v4477 = vpop.xlane.xlu0 %4476
        %v4478 = vadd.f32 %v4399, %v4400
        %4479 = vadd.xlane.f32.xlu0 %v4478
        %v4480 = vpop.xlane.xlu0 %4479
        %v4481 = vadd.f32 %v4401, %v4402
        %4482 = vadd.xlane.f32.xlu0 %v4481
        %v4483 = vpop.xlane.xlu0 %4482
        %v4484 = vadd.f32 %v4403, %v4404
        %4485 = vadd.xlane.f32.xlu0 %v4484
        %v4486 = vpop.xlane.xlu0 %4485
        %v4487 = vadd.f32 %v4405, %v4406
        %4488 = vadd.xlane.f32.xlu0 %v4487
        %v4489 = vpop.xlane.xlu0 %4488
        %v4490 = vadd.f32 %v4407, %v4408
        %4491 = vadd.xlane.f32.xlu0 %v4490
        %v4492 = vpop.xlane.xlu0 %4491
        %v4493 = vadd.f32 %v4409, %v4410
        %4494 = vadd.xlane.f32.xlu0 %v4493
        %v4495 = vpop.xlane.xlu0 %4494
        %v4496 = vadd.f32 %v4411, %v4412
        %4497 = vadd.xlane.f32.xlu0 %v4496
        %v4498 = vpop.xlane.xlu0 %4497
        %v4499 = vadd.f32 %v4413, %v4414
        %4500 = vadd.xlane.f32.xlu0 %v4499
        %v4501 = vpop.xlane.xlu0 %4500
        %v4502 = vadd.f32 %v4415, %v4416
        %4503 = vadd.xlane.f32.xlu0 %v4502
        %v4504 = vpop.xlane.xlu0 %4503
        %v4505 = vadd.f32 %v4417, %v4418
        %4506 = vadd.xlane.f32.xlu0 %v4505
        %v4507 = vpop.xlane.xlu0 %4506
        %v4508 = vadd.f32 %v4419, %v4420
        %4509 = vadd.xlane.f32.xlu0 %v4508
        %v4510 = vpop.xlane.xlu0 %4509
        %v4511 = vadd.f32 %v4421, %v4422
        %4512 = vadd.xlane.f32.xlu0 %v4511
        %v4513 = vpop.xlane.xlu0 %4512
        %v4514 = vadd.f32 %v4423, %v4424
        %4515 = vadd.xlane.f32.xlu0 %v4514
        %v4516 = vpop.xlane.xlu0 %4515
        %v4517 = vadd.f32 %v4425, %v4426
        %4518 = vadd.xlane.f32.xlu0 %v4517
        %v4519 = vpop.xlane.xlu0 %4518
        %v4520 = vadd.f32 %v4427, %v4428
        %4521 = vadd.xlane.f32.xlu0 %v4520
        %v4522 = vpop.xlane.xlu0 %4521
        %v4523 = vadd.f32 %v4429, %v4430
        %4524 = vadd.xlane.f32.xlu0 %v4523
        %v4525 = vpop.xlane.xlu0 %4524
        %v4526 = vadd.f32 %v4431, %v4432
        %4527 = vadd.xlane.f32.xlu0 %v4526
        %v4528 = vpop.xlane.xlu0 %4527
        %v4529 = vmul.f32 %v4435, %v1296
        %v4530 = vmul.f32 %v4438, %v1296
        %v4531 = vmul.f32 %v4441, %v1296
        %v4532 = vmul.f32 %v4444, %v1296
        %v4533 = vmul.f32 %v4447, %v1296
        %v4534 = vmul.f32 %v4450, %v1296
        %v4535 = vmul.f32 %v4453, %v1296
        %v4536 = vmul.f32 %v4456, %v1296
        %v4537 = vmul.f32 %v4459, %v1296
        %v4538 = vmul.f32 %v4462, %v1296
        %v4539 = vmul.f32 %v4465, %v1296
        %v4540 = vmul.f32 %v4468, %v1296
        %v4541 = vmul.f32 %v4471, %v1296
        %v4542 = vmul.f32 %v4474, %v1296
        %v4543 = vmul.f32 %v4477, %v1296
        %v4544 = vmul.f32 %v4480, %v1296
        %v4545 = vmul.f32 %v4483, %v1296
        %v4546 = vmul.f32 %v4486, %v1296
        %v4547 = vmul.f32 %v4489, %v1296
        %v4548 = vmul.f32 %v4492, %v1296
        %v4549 = vmul.f32 %v4495, %v1296
        %v4550 = vmul.f32 %v4498, %v1296
        %v4551 = vmul.f32 %v4501, %v1296
        %v4552 = vmul.f32 %v4504, %v1296
        %v4553 = vmul.f32 %v4507, %v1296
        %v4554 = vmul.f32 %v4510, %v1296
        %v4555 = vmul.f32 %v4513, %v1296
        %v4556 = vmul.f32 %v4516, %v1296
        %v4557 = vmul.f32 %v4519, %v1296
        %v4558 = vmul.f32 %v4522, %v1296
        %v4559 = vmul.f32 %v4525, %v1296
        %v4560 = vmul.f32 %v4528, %v1296
        %v4561 = vadd.f32 %v4529, 1e-05
        %v4562 = vadd.f32 %v4530, 1e-05
        %v4563 = vadd.f32 %v4531, 1e-05
        %v4564 = vadd.f32 %v4532, 1e-05
        %v4565 = vadd.f32 %v4533, 1e-05
        %v4566 = vadd.f32 %v4534, 1e-05
        %v4567 = vadd.f32 %v4535, 1e-05
        %v4568 = vadd.f32 %v4536, 1e-05
        %v4569 = vadd.f32 %v4537, 1e-05
        %v4570 = vadd.f32 %v4538, 1e-05
        %v4571 = vadd.f32 %v4539, 1e-05
        %v4572 = vadd.f32 %v4540, 1e-05
        %v4573 = vadd.f32 %v4541, 1e-05
        %v4574 = vadd.f32 %v4542, 1e-05
        %v4575 = vadd.f32 %v4543, 1e-05
        %v4576 = vadd.f32 %v4544, 1e-05
        %v4577 = vadd.f32 %v4545, 1e-05
        %v4578 = vadd.f32 %v4546, 1e-05
        %v4579 = vadd.f32 %v4547, 1e-05
        %v4580 = vadd.f32 %v4548, 1e-05
        %v4581 = vadd.f32 %v4549, 1e-05
        %v4582 = vadd.f32 %v4550, 1e-05
        %v4583 = vadd.f32 %v4551, 1e-05
        %v4584 = vadd.f32 %v4552, 1e-05
        %v4585 = vadd.f32 %v4553, 1e-05
        %v4586 = vadd.f32 %v4554, 1e-05
        %v4587 = vadd.f32 %v4555, 1e-05
        %v4588 = vadd.f32 %v4556, 1e-05
        %v4589 = vadd.f32 %v4557, 1e-05
        %v4590 = vadd.f32 %v4558, 1e-05
        %v4591 = vadd.f32 %v4559, 1e-05
        %v4592 = vadd.f32 %v4560, 1e-05
        %v4593 = vrsqrt.pop %v4561
        %v4594 = vrsqrt.pop %v4562
        %v4595 = vrsqrt.pop %v4563
        %v4596 = vrsqrt.pop %v4564
        %v4597 = vrsqrt.pop %v4565
        %v4598 = vrsqrt.pop %v4566
        %v4599 = vrsqrt.pop %v4567
        %v4600 = vrsqrt.pop %v4568
        %v4601 = vrsqrt.pop %v4569
        %v4602 = vrsqrt.pop %v4570
        %v4603 = vrsqrt.pop %v4571
        %v4604 = vrsqrt.pop %v4572
        %v4605 = vrsqrt.pop %v4573
        %v4606 = vrsqrt.pop %v4574
        %v4607 = vrsqrt.pop %v4575
        %v4608 = vrsqrt.pop %v4576
        %v4609 = vrsqrt.pop %v4577
        %v4610 = vrsqrt.pop %v4578
        %v4611 = vrsqrt.pop %v4579
        %v4612 = vrsqrt.pop %v4580
        %v4613 = vrsqrt.pop %v4581
        %v4614 = vrsqrt.pop %v4582
        %v4615 = vrsqrt.pop %v4583
        %v4616 = vrsqrt.pop %v4584
        %v4617 = vrsqrt.pop %v4585
        %v4618 = vrsqrt.pop %v4586
        %v4619 = vrsqrt.pop %v4587
        %v4620 = vrsqrt.pop %v4588
        %v4621 = vrsqrt.pop %v4589
        %v4622 = vrsqrt.pop %v4590
        %v4623 = vrsqrt.pop %v4591
        %v4624 = vrsqrt.pop %v4592
        %v4625 = vmul.f32 %v4305, %v4593
        %v4626 = vmul.f32 %v4306, %v4593
        %v4627 = vmul.f32 %v4307, %v4594
        %v4628 = vmul.f32 %v4308, %v4594
        %v4629 = vmul.f32 %v4309, %v4595
        %v4630 = vmul.f32 %v4310, %v4595
        %v4631 = vmul.f32 %v4311, %v4596
        %v4632 = vmul.f32 %v4312, %v4596
        %v4633 = vmul.f32 %v4313, %v4597
        %v4634 = vmul.f32 %v4314, %v4597
        %v4635 = vmul.f32 %v4315, %v4598
        %v4636 = vmul.f32 %v4316, %v4598
        %v4637 = vmul.f32 %v4317, %v4599
        %v4638 = vmul.f32 %v4318, %v4599
        %v4639 = vmul.f32 %v4319, %v4600
        %v4640 = vmul.f32 %v4320, %v4600
        %v4641 = vmul.f32 %v4321, %v4601
        %v4642 = vmul.f32 %v4322, %v4601
        %v4643 = vmul.f32 %v4323, %v4602
        %v4644 = vmul.f32 %v4324, %v4602
        %v4645 = vmul.f32 %v4325, %v4603
        %v4646 = vmul.f32 %v4326, %v4603
        %v4647 = vmul.f32 %v4327, %v4604
        %v4648 = vmul.f32 %v4328, %v4604
        %v4649 = vmul.f32 %v4329, %v4605
        %v4650 = vmul.f32 %v4330, %v4605
        %v4651 = vmul.f32 %v4331, %v4606
        %v4652 = vmul.f32 %v4332, %v4606
        %v4653 = vmul.f32 %v4333, %v4607
        %v4654 = vmul.f32 %v4334, %v4607
        %v4655 = vmul.f32 %v4335, %v4608
        %v4656 = vmul.f32 %v4336, %v4608
        %v4657 = vmul.f32 %v4337, %v4609
        %v4658 = vmul.f32 %v4338, %v4609
        %v4659 = vmul.f32 %v4339, %v4610
        %v4660 = vmul.f32 %v4340, %v4610
        %v4661 = vmul.f32 %v4341, %v4611
        %v4662 = vmul.f32 %v4342, %v4611
        %v4663 = vmul.f32 %v4343, %v4612
        %v4664 = vmul.f32 %v4344, %v4612
        %v4665 = vmul.f32 %v4345, %v4613
        %v4666 = vmul.f32 %v4346, %v4613
        %v4667 = vmul.f32 %v4347, %v4614
        %v4668 = vmul.f32 %v4348, %v4614
        %v4669 = vmul.f32 %v4349, %v4615
        %v4670 = vmul.f32 %v4350, %v4615
        %v4671 = vmul.f32 %v4351, %v4616
        %v4672 = vmul.f32 %v4352, %v4616
        %v4673 = vmul.f32 %v4353, %v4617
        %v4674 = vmul.f32 %v4354, %v4617
        %v4675 = vmul.f32 %v4355, %v4618
        %v4676 = vmul.f32 %v4356, %v4618
        %v4677 = vmul.f32 %v4357, %v4619
        %v4678 = vmul.f32 %v4358, %v4619
        %v4679 = vmul.f32 %v4359, %v4620
        %v4680 = vmul.f32 %v4360, %v4620
        %v4681 = vmul.f32 %v4361, %v4621
        %v4682 = vmul.f32 %v4362, %v4621
        %v4683 = vmul.f32 %v4363, %v4622
        %v4684 = vmul.f32 %v4364, %v4622
        %v4685 = vmul.f32 %v4365, %v4623
        %v4686 = vmul.f32 %v4366, %v4623
        %v4687 = vmul.f32 %v4367, %v4624
        %v4688 = vmul.f32 %v4368, %v4624
        %v4689 = vpack.c.bf16 %v4627, %v4625
        %v4690 = vpack.c.bf16 %v4628, %v4626
        %v4691 = vpack.c.bf16 %v4631, %v4629
        %v4692 = vpack.c.bf16 %v4632, %v4630
        %v4693 = vpack.c.bf16 %v4635, %v4633
        %v4694 = vpack.c.bf16 %v4636, %v4634
        %v4695 = vpack.c.bf16 %v4639, %v4637
        %v4696 = vpack.c.bf16 %v4640, %v4638
        %v4697 = vpack.c.bf16 %v4643, %v4641
        %v4698 = vpack.c.bf16 %v4644, %v4642
        %v4699 = vpack.c.bf16 %v4647, %v4645
        %v4700 = vpack.c.bf16 %v4648, %v4646
        %v4701 = vpack.c.bf16 %v4651, %v4649
        %v4702 = vpack.c.bf16 %v4652, %v4650
        %v4703 = vpack.c.bf16 %v4655, %v4653
        %v4704 = vpack.c.bf16 %v4656, %v4654
        %v4705 = vpack.c.bf16 %v4659, %v4657
        %v4706 = vpack.c.bf16 %v4660, %v4658
        %v4707 = vpack.c.bf16 %v4663, %v4661
        %v4708 = vpack.c.bf16 %v4664, %v4662
        %v4709 = vpack.c.bf16 %v4667, %v4665
        %v4710 = vpack.c.bf16 %v4668, %v4666
        %v4711 = vpack.c.bf16 %v4671, %v4669
        %v4712 = vpack.c.bf16 %v4672, %v4670
        %v4713 = vpack.c.bf16 %v4675, %v4673
        %v4714 = vpack.c.bf16 %v4676, %v4674
        %v4715 = vpack.c.bf16 %v4679, %v4677
        %v4716 = vpack.c.bf16 %v4680, %v4678
        %v4717 = vpack.c.bf16 %v4683, %v4681
        %v4718 = vpack.c.bf16 %v4684, %v4682
        %v4719 = vpack.c.bf16 %v4687, %v4685
        %v4720 = vpack.c.bf16 %v4688, %v4686
        %v4722 = vunpack.c.l.b16 %v4176
        %v4723 = vunpack.c.h.b16 %v4176
        %v4724 = vpack.c.b16 %v4722, %v4722
        %v4725 = vpack.c.b16 %v4723, %v4723
        %v4727 = vpack.i.b16 %v4724, %v4724
        %v4729 = vlaneseq
        %v4730 = vshrl.u32 %v4729, 7
        %v4731 = vsub.s32 2, %v4730
        %v4732 = vrot.slane %v4727, %v4731
        %v4734 = vpack.i.b16 %v4725, %v4725
        %v4736 = vlaneseq
        %v4737 = vshrl.u32 %v4736, 7
        %v4738 = vsub.s32 2, %v4737
        %v4739 = vrot.slane %v4734, %v4738
        %v4740 = vmul.bf16 %v4689, %v4732
        %v4741 = vmul.bf16 %v4690, %v4739
        %v4742 = vmul.bf16 %v4691, %v4732
        %v4743 = vmul.bf16 %v4692, %v4739
        %v4744 = vmul.bf16 %v4693, %v4732
        %v4745 = vmul.bf16 %v4694, %v4739
        %v4746 = vmul.bf16 %v4695, %v4732
        %v4747 = vmul.bf16 %v4696, %v4739
        %v4748 = vmul.bf16 %v4697, %v4732
        %v4749 = vmul.bf16 %v4698, %v4739
        %v4750 = vmul.bf16 %v4699, %v4732
        %v4751 = vmul.bf16 %v4700, %v4739
        %v4752 = vmul.bf16 %v4701, %v4732
        %v4753 = vmul.bf16 %v4702, %v4739
        %v4754 = vmul.bf16 %v4703, %v4732
        %v4755 = vmul.bf16 %v4704, %v4739
        %v4756 = vmul.bf16 %v4705, %v4732
        %v4757 = vmul.bf16 %v4706, %v4739
        %v4758 = vmul.bf16 %v4707, %v4732
        %v4759 = vmul.bf16 %v4708, %v4739
        %v4760 = vmul.bf16 %v4709, %v4732
        %v4761 = vmul.bf16 %v4710, %v4739
        %v4762 = vmul.bf16 %v4711, %v4732
        %v4763 = vmul.bf16 %v4712, %v4739
        %v4764 = vmul.bf16 %v4713, %v4732
        %v4765 = vmul.bf16 %v4714, %v4739
        %v4766 = vmul.bf16 %v4715, %v4732
        %v4767 = vmul.bf16 %v4716, %v4739
        %v4768 = vmul.bf16 %v4717, %v4732
        %v4769 = vmul.bf16 %v4718, %v4739
        %v4770 = vmul.bf16 %v4719, %v4732
        %v4771 = vmul.bf16 %v4720, %v4739
        %v4772 = vshrl.u32 %v4724, 16
        %v4773 = vpack.i.b16 %v4772, %v4772
        %v4775 = vlaneseq
        %v4776 = vshrl.u32 %v4775, 7
        %v4777 = vsub.s32 2, %v4776
        %v4778 = vrot.slane %v4773, %v4777
        %v4779 = vshrl.u32 %v4725, 16
        %v4780 = vpack.i.b16 %v4779, %v4779
        %v4782 = vlaneseq
        %v4783 = vshrl.u32 %v4782, 7
        %v4784 = vsub.s32 2, %v4783
        %v4785 = vrot.slane %v4780, %v4784
        %v4786 = vadd.bf16 %v4740, %v4778
        %v4787 = vadd.bf16 %v4741, %v4785
        %v4788 = vadd.bf16 %v4742, %v4778
        %v4789 = vadd.bf16 %v4743, %v4785
        %v4790 = vadd.bf16 %v4744, %v4778
        %v4791 = vadd.bf16 %v4745, %v4785
        %v4792 = vadd.bf16 %v4746, %v4778
        %v4793 = vadd.bf16 %v4747, %v4785
        %v4794 = vadd.bf16 %v4748, %v4778
        %v4795 = vadd.bf16 %v4749, %v4785
        %v4796 = vadd.bf16 %v4750, %v4778
        %v4797 = vadd.bf16 %v4751, %v4785
        %v4798 = vadd.bf16 %v4752, %v4778
        %v4799 = vadd.bf16 %v4753, %v4785
        %v4800 = vadd.bf16 %v4754, %v4778
        %v4801 = vadd.bf16 %v4755, %v4785
        %v4802 = vadd.bf16 %v4756, %v4778
        %v4803 = vadd.bf16 %v4757, %v4785
        %v4804 = vadd.bf16 %v4758, %v4778
        %v4805 = vadd.bf16 %v4759, %v4785
        %v4806 = vadd.bf16 %v4760, %v4778
        %v4807 = vadd.bf16 %v4761, %v4785
        %v4808 = vadd.bf16 %v4762, %v4778
        %v4809 = vadd.bf16 %v4763, %v4785
        %v4810 = vadd.bf16 %v4764, %v4778
        %v4811 = vadd.bf16 %v4765, %v4785
        %v4812 = vadd.bf16 %v4766, %v4778
        %v4813 = vadd.bf16 %v4767, %v4785
        %v4814 = vadd.bf16 %v4768, %v4778
        %v4815 = vadd.bf16 %v4769, %v4785
        %v4816 = vadd.bf16 %v4770, %v4778
        %v4817 = vadd.bf16 %v4771, %v4785
        %v4818 = vunpack.c.l.bf16 %v4786
        %v4819 = vunpack.c.l.bf16 %v4787
        %v4820 = vunpack.c.h.bf16 %v4786
        %v4821 = vunpack.c.h.bf16 %v4787
        %v4822 = vunpack.c.l.bf16 %v4788
        %v4823 = vunpack.c.l.bf16 %v4789
        %v4824 = vunpack.c.h.bf16 %v4788
        %v4825 = vunpack.c.h.bf16 %v4789
        %v4826 = vunpack.c.l.bf16 %v4790
        %v4827 = vunpack.c.l.bf16 %v4791
        %v4828 = vunpack.c.h.bf16 %v4790
        %v4829 = vunpack.c.h.bf16 %v4791
        %v4830 = vunpack.c.l.bf16 %v4792
        %v4831 = vunpack.c.l.bf16 %v4793
        %v4832 = vunpack.c.h.bf16 %v4792
        %v4833 = vunpack.c.h.bf16 %v4793
        %v4834 = vunpack.c.l.bf16 %v4794
        %v4835 = vunpack.c.l.bf16 %v4795
        %v4836 = vunpack.c.h.bf16 %v4794
        %v4837 = vunpack.c.h.bf16 %v4795
        %v4838 = vunpack.c.l.bf16 %v4796
        %v4839 = vunpack.c.l.bf16 %v4797
        %v4840 = vunpack.c.h.bf16 %v4796
        %v4841 = vunpack.c.h.bf16 %v4797
        %v4842 = vunpack.c.l.bf16 %v4798
        %v4843 = vunpack.c.l.bf16 %v4799
        %v4844 = vunpack.c.h.bf16 %v4798
        %v4845 = vunpack.c.h.bf16 %v4799
        %v4846 = vunpack.c.l.bf16 %v4800
        %v4847 = vunpack.c.l.bf16 %v4801
        %v4848 = vunpack.c.h.bf16 %v4800
        %v4849 = vunpack.c.h.bf16 %v4801
        %v4850 = vunpack.c.l.bf16 %v4802
        %v4851 = vunpack.c.l.bf16 %v4803
        %v4852 = vunpack.c.h.bf16 %v4802
        %v4853 = vunpack.c.h.bf16 %v4803
        %v4854 = vunpack.c.l.bf16 %v4804
        %v4855 = vunpack.c.l.bf16 %v4805
        %v4856 = vunpack.c.h.bf16 %v4804
        %v4857 = vunpack.c.h.bf16 %v4805
        %v4858 = vunpack.c.l.bf16 %v4806
        %v4859 = vunpack.c.l.bf16 %v4807
        %v4860 = vunpack.c.h.bf16 %v4806
        %v4861 = vunpack.c.h.bf16 %v4807
        %v4862 = vunpack.c.l.bf16 %v4808
        %v4863 = vunpack.c.l.bf16 %v4809
        %v4864 = vunpack.c.h.bf16 %v4808
        %v4865 = vunpack.c.h.bf16 %v4809
        %v4866 = vunpack.c.l.bf16 %v4810
        %v4867 = vunpack.c.l.bf16 %v4811
        %v4868 = vunpack.c.h.bf16 %v4810
        %v4869 = vunpack.c.h.bf16 %v4811
        %v4870 = vunpack.c.l.bf16 %v4812
        %v4871 = vunpack.c.l.bf16 %v4813
        %v4872 = vunpack.c.h.bf16 %v4812
        %v4873 = vunpack.c.h.bf16 %v4813
        %v4874 = vunpack.c.l.bf16 %v4814
        %v4875 = vunpack.c.l.bf16 %v4815
        %v4876 = vunpack.c.h.bf16 %v4814
        %v4877 = vunpack.c.h.bf16 %v4815
        %v4878 = vunpack.c.l.bf16 %v4816
        %v4879 = vunpack.c.l.bf16 %v4817
        %v4880 = vunpack.c.h.bf16 %v4816
        %v4881 = vunpack.c.h.bf16 %v4817
        %v4882 = vsub.f32 0.0, %v4818
        %v4883 = vsub.f32 0.0, %v4819
        %v4884 = vsub.f32 0.0, %v4820
        %v4885 = vsub.f32 0.0, %v4821
        %v4886 = vsub.f32 0.0, %v4822
        %v4887 = vsub.f32 0.0, %v4823
        %v4888 = vsub.f32 0.0, %v4824
        %v4889 = vsub.f32 0.0, %v4825
        %v4890 = vsub.f32 0.0, %v4826
        %v4891 = vsub.f32 0.0, %v4827
        %v4892 = vsub.f32 0.0, %v4828
        %v4893 = vsub.f32 0.0, %v4829
        %v4894 = vsub.f32 0.0, %v4830
        %v4895 = vsub.f32 0.0, %v4831
        %v4896 = vsub.f32 0.0, %v4832
        %v4897 = vsub.f32 0.0, %v4833
        %v4898 = vsub.f32 0.0, %v4834
        %v4899 = vsub.f32 0.0, %v4835
        %v4900 = vsub.f32 0.0, %v4836
        %v4901 = vsub.f32 0.0, %v4837
        %v4902 = vsub.f32 0.0, %v4838
        %v4903 = vsub.f32 0.0, %v4839
        %v4904 = vsub.f32 0.0, %v4840
        %v4905 = vsub.f32 0.0, %v4841
        %v4906 = vsub.f32 0.0, %v4842
        %v4907 = vsub.f32 0.0, %v4843
        %v4908 = vsub.f32 0.0, %v4844
        %v4909 = vsub.f32 0.0, %v4845
        %v4910 = vsub.f32 0.0, %v4846
        %v4911 = vsub.f32 0.0, %v4847
        %v4912 = vsub.f32 0.0, %v4848
        %v4913 = vsub.f32 0.0, %v4849
        %v4914 = vsub.f32 0.0, %v4850
        %v4915 = vsub.f32 0.0, %v4851
        %v4916 = vsub.f32 0.0, %v4852
        %v4917 = vsub.f32 0.0, %v4853
        %v4918 = vsub.f32 0.0, %v4854
        %v4919 = vsub.f32 0.0, %v4855
        %v4920 = vsub.f32 0.0, %v4856
        %v4921 = vsub.f32 0.0, %v4857
        %v4922 = vsub.f32 0.0, %v4858
        %v4923 = vsub.f32 0.0, %v4859
        %v4924 = vsub.f32 0.0, %v4860
        %v4925 = vsub.f32 0.0, %v4861
        %v4926 = vsub.f32 0.0, %v4862
        %v4927 = vsub.f32 0.0, %v4863
        %v4928 = vsub.f32 0.0, %v4864
        %v4929 = vsub.f32 0.0, %v4865
        %v4930 = vsub.f32 0.0, %v4866
        %v4931 = vsub.f32 0.0, %v4867
        %v4932 = vsub.f32 0.0, %v4868
        %v4933 = vsub.f32 0.0, %v4869
        %v4934 = vsub.f32 0.0, %v4870
        %v4935 = vsub.f32 0.0, %v4871
        %v4936 = vsub.f32 0.0, %v4872
        %v4937 = vsub.f32 0.0, %v4873
        %v4938 = vsub.f32 0.0, %v4874
        %v4939 = vsub.f32 0.0, %v4875
        %v4940 = vsub.f32 0.0, %v4876
        %v4941 = vsub.f32 0.0, %v4877
        %v4942 = vsub.f32 0.0, %v4878
        %v4943 = vsub.f32 0.0, %v4879
        %v4944 = vsub.f32 0.0, %v4880
        %v4945 = vsub.f32 0.0, %v4881
        %v4946 = vmul.f32 %v4882, 1.442695
        %v4947 = vpow.pop %v4946
        %v4948 = vmul.f32 %v4883, 1.442695
        %v4949 = vpow.pop %v4948
        %v4950 = vmul.f32 %v4884, 1.442695
        %v4951 = vpow.pop %v4950
        %v4952 = vmul.f32 %v4885, 1.442695
        %v4953 = vpow.pop %v4952
        %v4954 = vmul.f32 %v4886, 1.442695
        %v4955 = vpow.pop %v4954
        %v4956 = vmul.f32 %v4887, 1.442695
        %v4957 = vpow.pop %v4956
        %v4958 = vmul.f32 %v4888, 1.442695
        %v4959 = vpow.pop %v4958
        %v4960 = vmul.f32 %v4889, 1.442695
        %v4961 = vpow.pop %v4960
        %v4962 = vmul.f32 %v4890, 1.442695
        %v4963 = vpow.pop %v4962
        %v4964 = vmul.f32 %v4891, 1.442695
        %v4965 = vpow.pop %v4964
        %v4966 = vmul.f32 %v4892, 1.442695
        %v4967 = vpow.pop %v4966
        %v4968 = vmul.f32 %v4893, 1.442695
        %v4969 = vpow.pop %v4968
        %v4970 = vmul.f32 %v4894, 1.442695
        %v4971 = vpow.pop %v4970
        %v4972 = vmul.f32 %v4895, 1.442695
        %v4973 = vpow.pop %v4972
        %v4974 = vmul.f32 %v4896, 1.442695
        %v4975 = vpow.pop %v4974
        %v4976 = vmul.f32 %v4897, 1.442695
        %v4977 = vpow.pop %v4976
        %v4978 = vmul.f32 %v4898, 1.442695
        %v4979 = vpow.pop %v4978
        %v4980 = vmul.f32 %v4899, 1.442695
        %v4981 = vpow.pop %v4980
        %v4982 = vmul.f32 %v4900, 1.442695
        %v4983 = vpow.pop %v4982
        %v4984 = vmul.f32 %v4901, 1.442695
        %v4985 = vpow.pop %v4984
        %v4986 = vmul.f32 %v4902, 1.442695
        %v4987 = vpow.pop %v4986
        %v4988 = vmul.f32 %v4903, 1.442695
        %v4989 = vpow.pop %v4988
        %v4990 = vmul.f32 %v4904, 1.442695
        %v4991 = vpow.pop %v4990
        %v4992 = vmul.f32 %v4905, 1.442695
        %v4993 = vpow.pop %v4992
        %v4994 = vmul.f32 %v4906, 1.442695
        %v4995 = vpow.pop %v4994
        %v4996 = vmul.f32 %v4907, 1.442695
        %v4997 = vpow.pop %v4996
        %v4998 = vmul.f32 %v4908, 1.442695
        %v4999 = vpow.pop %v4998
        %v5000 = vmul.f32 %v4909, 1.442695
        %v5001 = vpow.pop %v5000
        %v5002 = vmul.f32 %v4910, 1.442695
        %v5003 = vpow.pop %v5002
        %v5004 = vmul.f32 %v4911, 1.442695
        %v5005 = vpow.pop %v5004
        %v5006 = vmul.f32 %v4912, 1.442695
        %v5007 = vpow.pop %v5006
        %v5008 = vmul.f32 %v4913, 1.442695
        %v5009 = vpow.pop %v5008
        %v5010 = vmul.f32 %v4914, 1.442695
        %v5011 = vpow.pop %v5010
        %v5012 = vmul.f32 %v4915, 1.442695
        %v5013 = vpow.pop %v5012
        %v5014 = vmul.f32 %v4916, 1.442695
        %v5015 = vpow.pop %v5014
        %v5016 = vmul.f32 %v4917, 1.442695
        %v5017 = vpow.pop %v5016
        %v5018 = vmul.f32 %v4918, 1.442695
        %v5019 = vpow.pop %v5018
        %v5020 = vmul.f32 %v4919, 1.442695
        %v5021 = vpow.pop %v5020
        %v5022 = vmul.f32 %v4920, 1.442695
        %v5023 = vpow.pop %v5022
        %v5024 = vmul.f32 %v4921, 1.442695
        %v5025 = vpow.pop %v5024
        %v5026 = vmul.f32 %v4922, 1.442695
        %v5027 = vpow.pop %v5026
        %v5028 = vmul.f32 %v4923, 1.442695
        %v5029 = vpow.pop %v5028
        %v5030 = vmul.f32 %v4924, 1.442695
        %v5031 = vpow.pop %v5030
        %v5032 = vmul.f32 %v4925, 1.442695
        %v5033 = vpow.pop %v5032
        %v5034 = vmul.f32 %v4926, 1.442695
        %v5035 = vpow.pop %v5034
        %v5036 = vmul.f32 %v4927, 1.442695
        %v5037 = vpow.pop %v5036
        %v5038 = vmul.f32 %v4928, 1.442695
        %v5039 = vpow.pop %v5038
        %v5040 = vmul.f32 %v4929, 1.442695
        %v5041 = vpow.pop %v5040
        %v5042 = vmul.f32 %v4930, 1.442695
        %v5043 = vpow.pop %v5042
        %v5044 = vmul.f32 %v4931, 1.442695
        %v5045 = vpow.pop %v5044
        %v5046 = vmul.f32 %v4932, 1.442695
        %v5047 = vpow.pop %v5046
        %v5048 = vmul.f32 %v4933, 1.442695
        %v5049 = vpow.pop %v5048
        %v5050 = vmul.f32 %v4934, 1.442695
        %v5051 = vpow.pop %v5050
        %v5052 = vmul.f32 %v4935, 1.442695
        %v5053 = vpow.pop %v5052
        %v5054 = vmul.f32 %v4936, 1.442695
        %v5055 = vpow.pop %v5054
        %v5056 = vmul.f32 %v4937, 1.442695
        %v5057 = vpow.pop %v5056
        %v5058 = vmul.f32 %v4938, 1.442695
        %v5059 = vpow.pop %v5058
        %v5060 = vmul.f32 %v4939, 1.442695
        %v5061 = vpow.pop %v5060
        %v5062 = vmul.f32 %v4940, 1.442695
        %v5063 = vpow.pop %v5062
        %v5064 = vmul.f32 %v4941, 1.442695
        %v5065 = vpow.pop %v5064
        %v5066 = vmul.f32 %v4942, 1.442695
        %v5067 = vpow.pop %v5066
        %v5068 = vmul.f32 %v4943, 1.442695
        %v5069 = vpow.pop %v5068
        %v5070 = vmul.f32 %v4944, 1.442695
        %v5071 = vpow.pop %v5070
        %v5072 = vmul.f32 %v4945, 1.442695
        %v5073 = vpow.pop %v5072
        %v5074 = vadd.f32 %v4947, 1.0
        %v5075 = vadd.f32 %v4949, 1.0
        %v5076 = vadd.f32 %v4951, 1.0
        %v5077 = vadd.f32 %v4953, 1.0
        %v5078 = vadd.f32 %v4955, 1.0
        %v5079 = vadd.f32 %v4957, 1.0
        %v5080 = vadd.f32 %v4959, 1.0
        %v5081 = vadd.f32 %v4961, 1.0
        %v5082 = vadd.f32 %v4963, 1.0
        %v5083 = vadd.f32 %v4965, 1.0
        %v5084 = vadd.f32 %v4967, 1.0
        %v5085 = vadd.f32 %v4969, 1.0
        %v5086 = vadd.f32 %v4971, 1.0
        %v5087 = vadd.f32 %v4973, 1.0
        %v5088 = vadd.f32 %v4975, 1.0
        %v5089 = vadd.f32 %v4977, 1.0
        %v5090 = vadd.f32 %v4979, 1.0
        %v5091 = vadd.f32 %v4981, 1.0
        %v5092 = vadd.f32 %v4983, 1.0
        %v5093 = vadd.f32 %v4985, 1.0
        %v5094 = vadd.f32 %v4987, 1.0
        %v5095 = vadd.f32 %v4989, 1.0
        %v5096 = vadd.f32 %v4991, 1.0
        %v5097 = vadd.f32 %v4993, 1.0
        %v5098 = vadd.f32 %v4995, 1.0
        %v5099 = vadd.f32 %v4997, 1.0
        %v5100 = vadd.f32 %v4999, 1.0
        %v5101 = vadd.f32 %v5001, 1.0
        %v5102 = vadd.f32 %v5003, 1.0
        %v5103 = vadd.f32 %v5005, 1.0
        %v5104 = vadd.f32 %v5007, 1.0
        %v5105 = vadd.f32 %v5009, 1.0
        %v5106 = vadd.f32 %v5011, 1.0
        %v5107 = vadd.f32 %v5013, 1.0
        %v5108 = vadd.f32 %v5015, 1.0
        %v5109 = vadd.f32 %v5017, 1.0
        %v5110 = vadd.f32 %v5019, 1.0
        %v5111 = vadd.f32 %v5021, 1.0
        %v5112 = vadd.f32 %v5023, 1.0
        %v5113 = vadd.f32 %v5025, 1.0
        %v5114 = vadd.f32 %v5027, 1.0
        %v5115 = vadd.f32 %v5029, 1.0
        %v5116 = vadd.f32 %v5031, 1.0
        %v5117 = vadd.f32 %v5033, 1.0
        %v5118 = vadd.f32 %v5035, 1.0
        %v5119 = vadd.f32 %v5037, 1.0
        %v5120 = vadd.f32 %v5039, 1.0
        %v5121 = vadd.f32 %v5041, 1.0
        %v5122 = vadd.f32 %v5043, 1.0
        %v5123 = vadd.f32 %v5045, 1.0
        %v5124 = vadd.f32 %v5047, 1.0
        %v5125 = vadd.f32 %v5049, 1.0
        %v5126 = vadd.f32 %v5051, 1.0
        %v5127 = vadd.f32 %v5053, 1.0
        %v5128 = vadd.f32 %v5055, 1.0
        %v5129 = vadd.f32 %v5057, 1.0
        %v5130 = vadd.f32 %v5059, 1.0
        %v5131 = vadd.f32 %v5061, 1.0
        %v5132 = vadd.f32 %v5063, 1.0
        %v5133 = vadd.f32 %v5065, 1.0
        %v5134 = vadd.f32 %v5067, 1.0
        %v5135 = vadd.f32 %v5069, 1.0
        %v5136 = vadd.f32 %v5071, 1.0
        %v5137 = vadd.f32 %v5073, 1.0
        %v5138 = vrcp.pop %v5074
        %v5139 = vrcp.pop %v5075
        %v5140 = vrcp.pop %v5076
        %v5141 = vrcp.pop %v5077
        %v5142 = vrcp.pop %v5078
        %v5143 = vrcp.pop %v5079
        %v5144 = vrcp.pop %v5080
        %v5145 = vrcp.pop %v5081
        %v5146 = vrcp.pop %v5082
        %v5147 = vrcp.pop %v5083
        %v5148 = vrcp.pop %v5084
        %v5149 = vrcp.pop %v5085
        %v5150 = vrcp.pop %v5086
        %v5151 = vrcp.pop %v5087
        %v5152 = vrcp.pop %v5088
        %v5153 = vrcp.pop %v5089
        %v5154 = vrcp.pop %v5090
        %v5155 = vrcp.pop %v5091
        %v5156 = vrcp.pop %v5092
        %v5157 = vrcp.pop %v5093
        %v5158 = vrcp.pop %v5094
        %v5159 = vrcp.pop %v5095
        %v5160 = vrcp.pop %v5096
        %v5161 = vrcp.pop %v5097
        %v5162 = vrcp.pop %v5098
        %v5163 = vrcp.pop %v5099
        %v5164 = vrcp.pop %v5100
        %v5165 = vrcp.pop %v5101
        %v5166 = vrcp.pop %v5102
        %v5167 = vrcp.pop %v5103
        %v5168 = vrcp.pop %v5104
        %v5169 = vrcp.pop %v5105
        %v5170 = vrcp.pop %v5106
        %v5171 = vrcp.pop %v5107
        %v5172 = vrcp.pop %v5108
        %v5173 = vrcp.pop %v5109
        %v5174 = vrcp.pop %v5110
        %v5175 = vrcp.pop %v5111
        %v5176 = vrcp.pop %v5112
        %v5177 = vrcp.pop %v5113
        %v5178 = vrcp.pop %v5114
        %v5179 = vrcp.pop %v5115
        %v5180 = vrcp.pop %v5116
        %v5181 = vrcp.pop %v5117
        %v5182 = vrcp.pop %v5118
        %v5183 = vrcp.pop %v5119
        %v5184 = vrcp.pop %v5120
        %v5185 = vrcp.pop %v5121
        %v5186 = vrcp.pop %v5122
        %v5187 = vrcp.pop %v5123
        %v5188 = vrcp.pop %v5124
        %v5189 = vrcp.pop %v5125
        %v5190 = vrcp.pop %v5126
        %v5191 = vrcp.pop %v5127
        %v5192 = vrcp.pop %v5128
        %v5193 = vrcp.pop %v5129
        %v5194 = vrcp.pop %v5130
        %v5195 = vrcp.pop %v5131
        %v5196 = vrcp.pop %v5132
        %v5197 = vrcp.pop %v5133
        %v5198 = vrcp.pop %v5134
        %v5199 = vrcp.pop %v5135
        %v5200 = vrcp.pop %v5136
        %v5201 = vrcp.pop %v5137
        %v5202 = vpack.c.bf16 %v5140, %v5138
        %v5203 = vpack.c.bf16 %v5141, %v5139
        %v5204 = vpack.c.bf16 %v5144, %v5142
        %v5205 = vpack.c.bf16 %v5145, %v5143
        %v5206 = vpack.c.bf16 %v5148, %v5146
        %v5207 = vpack.c.bf16 %v5149, %v5147
        %v5208 = vpack.c.bf16 %v5152, %v5150
        %v5209 = vpack.c.bf16 %v5153, %v5151
        %v5210 = vpack.c.bf16 %v5156, %v5154
        %v5211 = vpack.c.bf16 %v5157, %v5155
        %v5212 = vpack.c.bf16 %v5160, %v5158
        %v5213 = vpack.c.bf16 %v5161, %v5159
        %v5214 = vpack.c.bf16 %v5164, %v5162
        %v5215 = vpack.c.bf16 %v5165, %v5163
        %v5216 = vpack.c.bf16 %v5168, %v5166
        %v5217 = vpack.c.bf16 %v5169, %v5167
        %v5218 = vpack.c.bf16 %v5172, %v5170
        %v5219 = vpack.c.bf16 %v5173, %v5171
        %v5220 = vpack.c.bf16 %v5176, %v5174
        %v5221 = vpack.c.bf16 %v5177, %v5175
        %v5222 = vpack.c.bf16 %v5180, %v5178
        %v5223 = vpack.c.bf16 %v5181, %v5179
        %v5224 = vpack.c.bf16 %v5184, %v5182
        %v5225 = vpack.c.bf16 %v5185, %v5183
        %v5226 = vpack.c.bf16 %v5188, %v5186
        %v5227 = vpack.c.bf16 %v5189, %v5187
        %v5228 = vpack.c.bf16 %v5192, %v5190
        %v5229 = vpack.c.bf16 %v5193, %v5191
        %v5230 = vpack.c.bf16 %v5196, %v5194
        %v5231 = vpack.c.bf16 %v5197, %v5195
        %v5232 = vpack.c.bf16 %v5200, %v5198
        %v5233 = vpack.c.bf16 %v5201, %v5199
        %v5234 = vmul.bf16 %v4786, %v5202
        %v5235 = vmul.bf16 %v4787, %v5203
        %v5236 = vmul.bf16 %v4788, %v5204
        %v5237 = vmul.bf16 %v4789, %v5205
        %v5238 = vmul.bf16 %v4790, %v5206
        %v5239 = vmul.bf16 %v4791, %v5207
        %v5240 = vmul.bf16 %v4792, %v5208
        %v5241 = vmul.bf16 %v4793, %v5209
        %v5242 = vmul.bf16 %v4794, %v5210
        %v5243 = vmul.bf16 %v4795, %v5211
        %v5244 = vmul.bf16 %v4796, %v5212
        %v5245 = vmul.bf16 %v4797, %v5213
        %v5246 = vmul.bf16 %v4798, %v5214
        %v5247 = vmul.bf16 %v4799, %v5215
        %v5248 = vmul.bf16 %v4800, %v5216
        %v5249 = vmul.bf16 %v4801, %v5217
        %v5250 = vmul.bf16 %v4802, %v5218
        %v5251 = vmul.bf16 %v4803, %v5219
        %v5252 = vmul.bf16 %v4804, %v5220
        %v5253 = vmul.bf16 %v4805, %v5221
        %v5254 = vmul.bf16 %v4806, %v5222
        %v5255 = vmul.bf16 %v4807, %v5223
        %v5256 = vmul.bf16 %v4808, %v5224
        %v5257 = vmul.bf16 %v4809, %v5225
        %v5258 = vmul.bf16 %v4810, %v5226
        %v5259 = vmul.bf16 %v4811, %v5227
        %v5260 = vmul.bf16 %v4812, %v5228
        %v5261 = vmul.bf16 %v4813, %v5229
        %v5262 = vmul.bf16 %v4814, %v5230
        %v5263 = vmul.bf16 %v4815, %v5231
        %v5264 = vmul.bf16 %v4816, %v5232
        %v5265 = vmul.bf16 %v4817, %v5233
        %v5266 = vld [vmem:[%s8] sm:$0x3]
        %s5267 = sld [smem:[#allocation2]]
        %v5268 = vstv %s5267
        %v5271 = vunpack.c.l.s4 1966171168
        %v5272 = vunpack.c.0.s8 %v5271
        %v5273 = vlaneseq
        %v5274 = vshrl.u32 %v5273, 7
        %v5275 = vsub.s32 %v5272, %v5274
        %v5276 = vrot.slane %v5266, %v5275
        %v5277 = vcombine.high %v5276, %v5276
        %v5279 = vunpack.c.l.s4 1966171168
        %v5280 = vunpack.c.0.s8 %v5279
        %v5281 = vlaneseq
        %v5282 = vshrl.u32 %v5281, 7
        %v5283 = vsub.s32 %v5280, %v5282
        %v5284 = vrot.slane %v5276, %v5283
        %v5286 = vunpack.c.l.s4 1966171168
        %v5287 = vunpack.c.0.s8 %v5286
        %v5288 = vlaneseq
        %v5289 = vshrl.u32 %v5288, 7
        %v5290 = vsub.s32 %v5287, %v5289
        %v5291 = vrot.slane %v5277, %v5290
        %5294 = vmatprep.subr.bf16.mxu0 %v5235
        %5295 = vmatpush1.bf16.xpose.msra.mxu0 %v5234
        %5296 = vmatprep.subr.bf16.mxu0 %v5237
        %5297 = vmatpush1.bf16.xpose.msra.mxu0 %v5236
        %5298 = vmatprep.subr.bf16.mxu0 %v5239
        %5299 = vmatpush1.bf16.xpose.msra.mxu0 %v5238
        %5300 = vmatprep.subr.bf16.mxu0 %v5241
        %5301 = vmatpush1.bf16.xpose.msra.mxu0 %v5240
        %5302 = vmatprep.subr.bf16.mxu0 %v5243
        %5303 = vmatpush1.bf16.xpose.msra.mxu0 %v5242
        %5304 = vmatprep.subr.bf16.mxu0 %v5245
        %5305 = vmatpush1.bf16.xpose.msra.mxu0 %v5244
        %5306 = vmatprep.subr.bf16.mxu0 %v5247
        %5307 = vmatpush1.bf16.xpose.msra.mxu0 %v5246
        %5308 = vmatprep.subr.bf16.mxu0 %v5249
        %5309 = vmatpush1.bf16.xpose.msra.mxu0 %v5248
        %5310 = vmatprep.subr.bf16.mxu0 %v5251
        %5311 = vmatpush1.bf16.xpose.msra.mxu0 %v5250
        %5312 = vmatprep.subr.bf16.mxu0 %v5253
        %5313 = vmatpush1.bf16.xpose.msra.mxu0 %v5252
        %5314 = vmatprep.subr.bf16.mxu0 %v5255
        %5315 = vmatpush1.bf16.xpose.msra.mxu0 %v5254
        %5316 = vmatprep.subr.bf16.mxu0 %v5257
        %5317 = vmatpush1.bf16.xpose.msra.mxu0 %v5256
        %5318 = vmatprep.subr.bf16.mxu0 %v5259
        %5319 = vmatpush1.bf16.xpose.msra.mxu0 %v5258
        %5320 = vmatprep.subr.bf16.mxu0 %v5261
        %5321 = vmatpush1.bf16.xpose.msra.mxu0 %v5260
        %5322 = vmatprep.subr.bf16.mxu0 %v5263
        %5323 = vmatpush1.bf16.xpose.msra.mxu0 %v5262
        %5324 = vmatprep.subr.bf16.mxu0 %v5265
        %5325 = vmatpush1.bf16.xpose.msra.mxu0 %v5264
        %5326 = vmatprep.mubr.bf16.mxu0 %v5291
        %5327 = vmatmul.mubr.bf16.gmra.mrb[0].mxu0 %v5284
        %v5328 = vpop.f32.mrb[0].mxu0
        %v5329 = vadd.f32 %v5268, %v5328
        %v5330 = vpop.f32.mrb[0].mxu0
        %v5331 = vadd.f32 %v5268, %v5330
        %v5332 = vpop.f32.mrb[0].mxu0
        %v5333 = vpop.f32.mrb[0].mxu0
        %5334 = vdwg.mxu0
        %v5337 = vcombine.low %v5329, %v5331
        %v5339 = vunpack.c.l.s4 1966171168
        %v5340 = vunpack.c.0.s8 %v5339
        %v5341 = vlaneseq
        %v5342 = vshrl.u32 %v5341, 7
        %v5343 = vsub.s32 %v5340, %v5342
        %v5344 = vrot.slane %v5337, %v5343
        %v5346 = vunpack.c.l.s4 1966171168
        %v5347 = vunpack.c.0.s8 %v5346
        %v5348 = vlaneseq
        %v5349 = vshrl.u32 %v5348, 7
        %v5350 = vsub.s32 %v5347, %v5349
        %v5351 = vrot.slane %v5344, %v5350
        %v5353 = vlaneseq
        %vm5354 = vcmp.ge.s32.totalorder %v5353, 0
        %vm5355 = vcmp.lt.s32.totalorder %v5353, 256
        %vm5356 = vmand %vm5354, %vm5355
        %5357 = vst.msk [vmem:[%s370] sm:$0x3] %vm5356, %v5351
        %s5358 = sand.u32 %s253, 1
        %s5359 = scalar_lea.sflag [#allocation4], %s5358
        %s5360 = sand.u32 %s253, 1
        %s5361 = smul.addr %s5360, 2
        %s5362 = scalar_lea.vmem [#allocation3], %s5361
        // Predicated region
        $region61: #{tpu_custom_call.1} parent=59 // pred_check
          %p5363 = pneg %p263
        $region62: #{tpu_custom_call.1} parent=59 // pred_check_branch
          %5365 = sbr.rel (%p5363) target = $region64
        $region63: #{tpu_custom_call.1} parent=59 // pred_region
          %s5366 = smul.u32 2, %s25
          %s5368 = ssub.s32 32, 32
          %5369 = vsyncadd %s5359, %s5368
          %s5370 = smul.addr %s5366, 16
          %s5371 = scalar_lea.hbm %s10, %s5370
          %s5373 = sshll.u32 %s5362, 4
          %s5374 = int_to_ptr.vmem [resolvable:$true] %s5373
          %5376 = dma.vmem_to_hbm [thread:$0]  %s5374, 32, %s5371, %s5359
        $region64: #{tpu_custom_call.1} parent=59 // pred_fallthru
          _
      $region60: #{tpu_custom_call.1} parent=5 // pred_fallthru
        _
      %p5377 = scmp.le.s32.totalorder 2, %s20
      // Predicated region
      $region65: #{tpu_custom_call.1} parent=5 // pred_check
        %p5378 = pneg %p5377
      $region66: #{tpu_custom_call.1} parent=5 // pred_check_branch
        %5380 = sbr.rel (%p5378) target = $region68
      $region67: #{tpu_custom_call.1} parent=5 // pred_region
        %s5381 = ssub.s32 %s20, 2
        // Predicated region
        $region69: #{tpu_custom_call.1} parent=67 // pred_check
          %p5382 = pneg %p269
        $region70: #{tpu_custom_call.1} parent=67 // pred_check_branch
          %5384 = sbr.rel (%p5382) target = $region72
        $region71: #{tpu_custom_call.1} parent=67 // pred_region
          %s5385 = sand.u32 %s254, 1
          %s5386 = scalar_lea.sflag [#allocation4], %s5385
          %s5387 = sand.u32 %s254, 1
          %s5388 = smul.addr %s5387, 2
          %s5389 = scalar_lea.vmem [#allocation3], %s5388
          %5390 = dma.done %s5386, 32
        $region72: #{tpu_custom_call.1} parent=67 // pred_fallthru
          _
      $region68: #{tpu_custom_call.1} parent=5 // pred_fallthru
        _
    $region6: #{tpu_custom_call.1} parent=1 // loop_footer
      %s24 = sadd.s32 1, %s20
    $region7: #{tpu_custom_call.1} parent=1 // loop_footer_branch
      %19 = sbr.rel target = $region3
    $region8: #{tpu_custom_call.1} parent=1 // loop_exit
      _
    %5391 = vsyncpa [#allocation4], 1
    %s5392 = scalar_lea.sflag [#allocation4], 1
    %5393 = vsyncpa %s5392, 1

</llo_original>
